<compile_context>
chip_gen: v7x
topology: tpu7x:2x2x1
jax: 0.10.0
libtpu: 0.0.40
codegen_flags: <defaults>
</compile_context>

<pallas_src>
import jax
import jax.numpy as jnp
from jax import lax
from jax.experimental import pallas as pl
from jax.experimental.pallas import tpu as pltpu


def _round_up(v, m):
    return ((v + m - 1) // m) * m


# ---------------------------------------------------------------------------
# In-kernel building blocks (operate on VMEM-resident values)
# ---------------------------------------------------------------------------
def _gat_block(x, adj_bias, w, a_srcT, a_dst, b, *, heads, out_ch, concat):
    """One dense masked-softmax GATConv layer (PyG eval semantics, leaky slope 0.2)."""
    n = x.shape[0]
    x_b = x.astype(jnp.bfloat16)
    w_b = w.astype(jnp.bfloat16)
    xp = jnp.dot(x_b, w_b, preferred_element_type=jnp.float32)              # [N, H*C] f32
    xp_b = xp.astype(jnp.bfloat16)

    # Per-head attention logits via whole-layer MXU matmuls (bf16 in, f32 accumulate).
    a_dst_b = a_dst.astype(jnp.bfloat16)                                    # [H*C, H]
    a_srcT_b = a_srcT.astype(jnp.bfloat16)                                  # [H, H*C]
    alpha_dst = jnp.dot(xp_b, a_dst_b, preferred_element_type=jnp.float32)  # [N, H]
    alpha_src_t = lax.dot_general(                                          # [H, N]
        a_srcT_b, xp_b, (((1,), (1,)), ((), ())),
        preferred_element_type=jnp.float32)

    # Analytic row-max bound: one [H,N]->[H,1] reduce per layer (LeakyReLU monotone).
    src_max = jnp.max(alpha_src_t, axis=-1, keepdims=True)                  # [H, 1]

    ones_col = jnp.ones((n, 1), jnp.bfloat16)

    outs = []
    for h in range(heads):
        d_col = alpha_dst[:, h:h + 1]                                       # [N, 1]
        raw = d_col + alpha_src_t[h:h + 1, :]                               # [N, N]
        e = jnp.maximum(raw, 0.2 * raw)                                     # LeakyReLU(0.2)
        bound = d_col + src_max[h:h + 1, :]                                 # [N, 1]
        bound = jnp.maximum(bound, 0.2 * bound)                             # >= true row max
        p = jnp.exp(e - bound + adj_bias)                                   # non-edges -> exactly 0

        # Aggregate + row-sum in ONE MXU matmul: p @ [xh | 1] -> [N, C+1]
        xh_ext = jnp.concatenate(
            [xp_b[:, h * out_ch:(h + 1) * out_ch], ones_col], axis=-1)      # [N, C+1] bf16
        agg_ext = jnp.dot(p.astype(jnp.bfloat16), xh_ext,
                          preferred_element_type=jnp.float32)               # [N, C+1]
        agg = agg_ext[:, :out_ch]                                           # [N, C]
        row_sum = agg_ext[:, out_ch:out_ch + 1]                             # [N, 1]
        outs.append(agg * pl.reciprocal(row_sum, approx=False))

    if concat:
        out = jnp.concatenate(outs, axis=-1)                                # [N, H*C]
    else:
        out = outs[0]
        for o in outs[1:]:
            out = out + o
        out = out * jnp.float32(1.0 / heads)                                # [N, C]
    return out + b


def _build_fused_kernel(ops, entries, n, out_dim, out_pad):
    """Build the single fused forward-pass kernel for a static layer config `ops`."""
    def kernel(x_ref, adj_ref, slab_ref, o_ref):
        def get(idx):
            off, r, c = entries[idx]
            return slab_ref[off:off + r, 0:c]                               # static slice load

        x = x_ref[...]
        # Hoisted once: edge mask as an additive bias, shared by every GAT layer.
        adj_f = adj_ref[...].astype(jnp.float32)
        adj_bias = jnp.where(adj_f > 0.0, jnp.float32(0.0), jnp.float32(-1e30))

        for op in ops:
            if op["kind"] == "gat":
                iw, isrc, idst, ib = op["slots"]
                x = _gat_block(x, adj_bias, get(iw), get(isrc), get(idst), get(ib),
                               heads=op["heads"], out_ch=op["out_ch"],
                               concat=op["concat"])
                # dropout -> identity (eval mode)
            else:  # linear + relu (bf16 matmul inputs, f32 accumulate)
                iw, ib = op["slots"]
                xb = x.astype(jnp.bfloat16)
                wb = get(iw).astype(jnp.bfloat16)
                x = jnp.maximum(
                    jnp.dot(xb, wb, preferred_element_type=jnp.float32) + get(ib), 0.0)

        # Lane-dense store: pad the final [N, out_dim] to a full [N, out_pad] slab.
        if out_pad > out_dim:
            x = jnp.concatenate(
                [x, jnp.zeros((n, out_pad - out_dim), jnp.float32)], axis=-1)
        o_ref[...] = x

    return kernel


# ---------------------------------------------------------------------------
# Plain-JAX glue: block-diagonal attention matrices, params, forward wrapper
# ---------------------------------------------------------------------------
def _block_diag_att(att, heads, out_ch):
    """[1, H*C] attention vector -> [H*C, H] block-diagonal matrix."""
    a = att.reshape(heads, out_ch)                        # [H, C]
    eye = jnp.eye(heads, dtype=att.dtype)                 # [H, H]
    return (a[:, :, None] * eye[:, None, :]).reshape(heads * out_ch, heads)


def init_gat_params(key, f_in, heads, out_ch, concat):
    k1, k2, k3, k4 = jax.random.split(key, 4)
    scale = 1.0 / jnp.sqrt(jnp.float32(f_in))
    w = jax.random.normal(k1, (f_in, heads * out_ch), jnp.float32) * scale
    att_src = jax.random.normal(k2, (1, heads * out_ch), jnp.float32) * 0.1
    att_dst = jax.random.normal(k3, (1, heads * out_ch), jnp.float32) * 0.1
    b_dim = heads * out_ch if concat else out_ch
    b = jax.random.normal(k4, (1, b_dim), jnp.float32) * 0.01
    return dict(w=w, att_src=att_src, att_dst=att_dst, b=b)


def init_linear_params(key, f_in, f_out):
    k1, k2 = jax.random.split(key)
    scale = 1.0 / jnp.sqrt(jnp.float32(f_in))
    w = jax.random.normal(k1, (f_in, f_out), jnp.float32) * scale
    b = jax.random.normal(k2, (1, f_out), jnp.float32) * 0.01
    return dict(w=w, b=b)


def init_autoencoder(key, input_dim, hidden_dim, num_heads, num_layers, fc_hidden_dim):
    keys = jax.random.split(key, 2 * num_layers + 2)
    hxh = hidden_dim * num_heads
    enc = [init_gat_params(keys[0], input_dim, num_heads, hidden_dim, True)]
    for l in range(1, num_layers):
        enc.append(init_gat_params(keys[l], hxh, num_heads, hidden_dim, True))
    fc1 = init_linear_params(keys[num_layers], hxh, fc_hidden_dim)
    fc2 = init_linear_params(keys[num_layers + 1], fc_hidden_dim, hxh)
    dec = []
    for l in range(num_layers - 1):
        dec.append(init_gat_params(keys[num_layers + 2 + l], hxh, num_heads, hidden_dim, True))
    dec.append(init_gat_params(keys[2 * num_layers + 1], hxh, num_heads, input_dim, False))
    return dict(encoder=enc, fc1=fc1, fc2=fc2, decoder=dec,
                hidden_dim=hidden_dim, num_heads=num_heads, input_dim=input_dim)


def autoencoder_forward(x, edge_index, params):
    n = x.shape[0]
    heads = params["num_heads"]
    hidden = params["hidden_dim"]
    input_dim = params["input_dim"]

    # Dense adjacency with self-loops as int8; adj[i, j] = 1 iff edge j -> i exists.
    adj = jnp.zeros((n, n), jnp.int8)
    adj = adj.at[edge_index[1], edge_index[0]].set(1)
    adj = adj.at[jnp.arange(n), jnp.arange(n)].set(1)

    # -------- pack every parameter into one f32 slab (8-row aligned entries) -------
    param_list = []          # jnp arrays in slab order
    ops = []                 # static layer description

    def add_param(arr):
        param_list.append(arr)
        return len(param_list) - 1

    def add_gat(p, out_ch, concat):
        iw = add_param(p["w"])                                              # [F_in, H*C]
        isrc = add_param(_block_diag_att(p["att_src"], heads, out_ch).T)    # [H, H*C]
        idst = add_param(_block_diag_att(p["att_dst"], heads, out_ch))      # [H*C, H]
        ib = add_param(p["b"])                                              # [1, *]
        ops.append(dict(kind="gat", heads=heads, out_ch=out_ch, concat=concat,
                        slots=(iw, isrc, idst, ib)))

    def add_linear(p):
        iw = add_param(p["w"])
        ib = add_param(p["b"])
        ops.append(dict(kind="linear", slots=(iw, ib)))

    for p in params["encoder"]:
        add_gat(p, hidden, True)
    add_linear(params["fc1"])
    add_linear(params["fc2"])
    for p in params["decoder"][:-1]:
        add_gat(p, hidden, True)
    add_gat(params["decoder"][-1], input_dim, False)

    LANES = 128
    entries = []
    off = 0
    for arr in param_list:
        r, c = arr.shape
        entries.append((off, r, c))
        off += _round_up(r, 8)
    slab_rows = _round_up(off, 8)
    slab = jnp.zeros((slab_rows, LANES), jnp.float32)
    for arr, (o, r, c) in zip(param_list, entries):
        slab = slab.at[o:o + r, 0:c].set(arr)
    entries = tuple(entries)

    out_dim = input_dim
    out_pad = _round_up(out_dim, 128)                      # lane-dense output slab

    kernel = _build_fused_kernel(ops, entries, n, out_dim, out_pad)
    out_padded = pl.pallas_call(
        kernel,
        out_shape=jax.ShapeDtypeStruct((n, out_pad), jnp.float32),
        in_specs=[pl.BlockSpec(memory_space=pltpu.MemorySpace.VMEM),   # x
                  pl.BlockSpec(memory_space=pltpu.MemorySpace.VMEM),   # adjacency (int8)
                  pl.BlockSpec(memory_space=pltpu.MemorySpace.VMEM)],  # param slab
        out_specs=pl.BlockSpec(memory_space=pltpu.MemorySpace.VMEM),
        compiler_params=pltpu.CompilerParams(
            vmem_limit_bytes=32 * 1024 * 1024),
    )(x, adj, slab)
    return out_padded[:, :out_dim]


# ---------------------------------------------------------------------------
if __name__ == "__main__":
    key = jax.random.PRNGKey(0)
    N = 8                    # nodes
    input_dim = 16
    hidden_dim = 8
    num_heads = 4
    num_layers = 2
    fc_hidden_dim = 32
    dropout_rate = 0.1       # unused at eval time

    kx, kp = jax.random.split(key)
    x = jax.random.normal(kx, (N, input_dim), jnp.float32)

    # bidirectional ring graph: 16 edges
    src = jnp.concatenate([jnp.arange(N), jnp.arange(N)])
    dst = jnp.concatenate([(jnp.arange(N) + 1) % N, (jnp.arange(N) - 1) % N])
    edge_index = jnp.stack([src, dst]).astype(jnp.int32)   # [2, 16]

    params = init_autoencoder(kp, input_dim, hidden_dim, num_heads,
                              num_layers, fc_hidden_dim)

    out = autoencoder_forward(x, edge_index, params)
    jax.block_until_ready(out)
    assert out.shape == (N, input_dim) and out.dtype == jnp.float32
    assert bool(jnp.all(jnp.isfinite(out)))
    print("KERNEL_OK")
</pallas_src>

<mosaic_0001>
module attributes {stable_mosaic.version = 11 : i64} {
  func.func @kernel(%arg0: memref<8x16xf32, #tpu.memory_space<vmem>>, %arg1: memref<8x8xi8, #tpu.memory_space<vmem>>, %arg2: memref<416x128xf32, #tpu.memory_space<vmem>>, %arg3: memref<8x128xf32, #tpu.memory_space<vmem>>) attributes {dimension_semantics = [], scalar_prefetch = 0 : i64, scratch_operands = 0 : i64, tpu.core_type = #tpu.core_type<tc>} {
    %c0 = arith.constant 0 : index
    %c0_0 = arith.constant 0 : index
    %0 = vector.load %arg0[%c0, %c0_0] : memref<8x16xf32, #tpu.memory_space<vmem>>, vector<8x16xf32>
    %c0_1 = arith.constant 0 : index
    %c0_2 = arith.constant 0 : index
    %1 = vector.load %arg1[%c0_1, %c0_2] : memref<8x8xi8, #tpu.memory_space<vmem>>, vector<8x8xi8>
    %2 = arith.sitofp %1 : vector<8x8xi8> to vector<8x8xf32>
    %cst = arith.constant 0.000000e+00 : f32
    %3 = vector.broadcast %cst : f32 to vector<8x8xf32>
    %4 = arith.cmpf ogt, %2, %3 : vector<8x8xf32>
    %cst_3 = arith.constant 0.000000e+00 : f32
    %cst_4 = arith.constant -1.000000e+30 : f32
    %5 = vector.broadcast %cst_3 : f32 to vector<8x8xf32>
    %6 = vector.broadcast %cst_4 : f32 to vector<8x8xf32>
    %7 = arith.select %4, %5, %6 : vector<8x8xi1>, vector<8x8xf32>
    %c0_5 = arith.constant 0 : index
    %c0_6 = arith.constant 0 : index
    %8 = vector.load %arg2[%c0_5, %c0_6] : memref<416x128xf32, #tpu.memory_space<vmem>>, vector<16x32xf32>
    %c16 = arith.constant 16 : index
    %c0_7 = arith.constant 0 : index
    %9 = vector.load %arg2[%c16, %c0_7] : memref<416x128xf32, #tpu.memory_space<vmem>>, vector<4x32xf32>
    %c24 = arith.constant 24 : index
    %c0_8 = arith.constant 0 : index
    %10 = vector.load %arg2[%c24, %c0_8] : memref<416x128xf32, #tpu.memory_space<vmem>>, vector<32x4xf32>
    %c56 = arith.constant 56 : index
    %c0_9 = arith.constant 0 : index
    %11 = vector.load %arg2[%c56, %c0_9] : memref<416x128xf32, #tpu.memory_space<vmem>>, vector<1x32xf32>
    %12 = arith.truncf %0 : vector<8x16xf32> to vector<8x16xbf16>
    %13 = arith.truncf %8 : vector<16x32xf32> to vector<16x32xbf16>
    %cst_10 = arith.constant dense<0.000000e+00> : vector<8x32xf32>
    %14 = tpu.matmul %12, %13, %cst_10 {dimension_numbers = #tpu.dot_dimension_numbers<[1], [0], [0], [1], [0, 0, 1, 1], [], []>} : vector<8x16xbf16>, vector<16x32xbf16>, vector<8x32xf32> -> vector<8x32xf32>
    %15 = arith.truncf %14 : vector<8x32xf32> to vector<8x32xbf16>
    %16 = arith.truncf %10 : vector<32x4xf32> to vector<32x4xbf16>
    %17 = arith.truncf %9 : vector<4x32xf32> to vector<4x32xbf16>
    %cst_11 = arith.constant dense<0.000000e+00> : vector<8x4xf32>
    %18 = tpu.matmul %15, %16, %cst_11 {dimension_numbers = #tpu.dot_dimension_numbers<[1], [0], [0], [1], [0, 0, 1, 1], [], []>} : vector<8x32xbf16>, vector<32x4xbf16>, vector<8x4xf32> -> vector<8x4xf32>
    %cst_12 = arith.constant dense<0.000000e+00> : vector<4x8xf32>
    %19 = tpu.matmul %17, %15, %cst_12 {dimension_numbers = #tpu.dot_dimension_numbers<[1], [1], [0], [0], [0, 0, 1, 0], [], []>} : vector<4x32xbf16>, vector<8x32xbf16>, vector<4x8xf32> -> vector<4x8xf32>
    %cst_13 = arith.constant dense<0xFF800000> : vector<4xf32>
    %20 = vector.multi_reduction <maximumf>, %19, %cst_13 [1] : vector<4x8xf32> to vector<4xf32>
    %21 = vector.shape_cast %20 : vector<4xf32> to vector<4x1xf32>
    %cst_14 = arith.constant 1.000000e+00 : bf16
    %22 = vector.broadcast %cst_14 : bf16 to vector<8x1xbf16>
    %23 = vector.extract_strided_slice %18 {offsets = [0, 0], sizes = [8, 1], strides = [1, 1]} : vector<8x4xf32> to vector<8x1xf32>
    %24 = vector.extract_strided_slice %19 {offsets = [0, 0], sizes = [1, 8], strides = [1, 1]} : vector<4x8xf32> to vector<1x8xf32>
    %25 = vector.broadcast %23 : vector<8x1xf32> to vector<8x8xf32>
    %26 = vector.broadcast %24 : vector<1x8xf32> to vector<8x8xf32>
    %27 = arith.addf %25, %26 : vector<8x8xf32>
    %cst_15 = arith.constant 2.000000e-01 : f32
    %28 = vector.broadcast %cst_15 : f32 to vector<8x8xf32>
    %29 = arith.mulf %28, %27 : vector<8x8xf32>
    %30 = arith.maximumf %27, %29 : vector<8x8xf32>
    %31 = vector.extract_strided_slice %21 {offsets = [0, 0], sizes = [1, 1], strides = [1, 1]} : vector<4x1xf32> to vector<1x1xf32>
    %32 = vector.broadcast %31 : vector<1x1xf32> to vector<8x1xf32>
    %33 = arith.addf %23, %32 : vector<8x1xf32>
    %cst_16 = arith.constant 2.000000e-01 : f32
    %34 = vector.broadcast %cst_16 : f32 to vector<8x1xf32>
    %35 = arith.mulf %34, %33 : vector<8x1xf32>
    %36 = arith.maximumf %33, %35 : vector<8x1xf32>
    %37 = vector.broadcast %36 : vector<8x1xf32> to vector<8x8xf32>
    %38 = arith.subf %30, %37 : vector<8x8xf32>
    %39 = arith.addf %38, %7 : vector<8x8xf32>
    %40 = math.exp %39 : vector<8x8xf32>
    %41 = vector.extract_strided_slice %15 {offsets = [0, 0], sizes = [8, 8], strides = [1, 1]} : vector<8x32xbf16> to vector<8x8xbf16>
    %42 = tpu.concatenate %41, %22 in 1 : vector<8x8xbf16>, vector<8x1xbf16> -> vector<8x9xbf16>
    %43 = arith.truncf %40 : vector<8x8xf32> to vector<8x8xbf16>
    %cst_17 = arith.constant dense<0.000000e+00> : vector<8x9xf32>
    %44 = tpu.matmul %43, %42, %cst_17 {dimension_numbers = #tpu.dot_dimension_numbers<[1], [0], [0], [1], [0, 0, 1, 1], [], []>} : vector<8x8xbf16>, vector<8x9xbf16>, vector<8x9xf32> -> vector<8x9xf32>
    %45 = vector.extract_strided_slice %44 {offsets = [0, 0], sizes = [8, 8], strides = [1, 1]} : vector<8x9xf32> to vector<8x8xf32>
    %46 = vector.extract_strided_slice %44 {offsets = [0, 8], sizes = [8, 1], strides = [1, 1]} : vector<8x9xf32> to vector<8x1xf32>
    %47 = tpu.reciprocal %46 : vector<8x1xf32> -> vector<8x1xf32>
    %48 = vector.broadcast %47 : vector<8x1xf32> to vector<8x8xf32>
    %49 = arith.mulf %45, %48 : vector<8x8xf32>
    %50 = vector.extract_strided_slice %18 {offsets = [0, 1], sizes = [8, 1], strides = [1, 1]} : vector<8x4xf32> to vector<8x1xf32>
    %51 = vector.extract_strided_slice %19 {offsets = [1, 0], sizes = [1, 8], strides = [1, 1]} : vector<4x8xf32> to vector<1x8xf32>
    %52 = vector.broadcast %50 : vector<8x1xf32> to vector<8x8xf32>
    %53 = vector.broadcast %51 : vector<1x8xf32> to vector<8x8xf32>
    %54 = arith.addf %52, %53 : vector<8x8xf32>
    %cst_18 = arith.constant 2.000000e-01 : f32
    %55 = vector.broadcast %cst_18 : f32 to vector<8x8xf32>
    %56 = arith.mulf %55, %54 : vector<8x8xf32>
    %57 = arith.maximumf %54, %56 : vector<8x8xf32>
    %58 = vector.extract_strided_slice %21 {offsets = [1, 0], sizes = [1, 1], strides = [1, 1]} : vector<4x1xf32> to vector<1x1xf32>
    %59 = vector.broadcast %58 : vector<1x1xf32> to vector<8x1xf32>
    %60 = arith.addf %50, %59 : vector<8x1xf32>
    %cst_19 = arith.constant 2.000000e-01 : f32
    %61 = vector.broadcast %cst_19 : f32 to vector<8x1xf32>
    %62 = arith.mulf %61, %60 : vector<8x1xf32>
    %63 = arith.maximumf %60, %62 : vector<8x1xf32>
    %64 = vector.broadcast %63 : vector<8x1xf32> to vector<8x8xf32>
    %65 = arith.subf %57, %64 : vector<8x8xf32>
    %66 = arith.addf %65, %7 : vector<8x8xf32>
    %67 = math.exp %66 : vector<8x8xf32>
    %68 = vector.extract_strided_slice %15 {offsets = [0, 8], sizes = [8, 8], strides = [1, 1]} : vector<8x32xbf16> to vector<8x8xbf16>
    %69 = tpu.concatenate %68, %22 in 1 : vector<8x8xbf16>, vector<8x1xbf16> -> vector<8x9xbf16>
    %70 = arith.truncf %67 : vector<8x8xf32> to vector<8x8xbf16>
    %cst_20 = arith.constant dense<0.000000e+00> : vector<8x9xf32>
    %71 = tpu.matmul %70, %69, %cst_20 {dimension_numbers = #tpu.dot_dimension_numbers<[1], [0], [0], [1], [0, 0, 1, 1], [], []>} : vector<8x8xbf16>, vector<8x9xbf16>, vector<8x9xf32> -> vector<8x9xf32>
    %72 = vector.extract_strided_slice %71 {offsets = [0, 0], sizes = [8, 8], strides = [1, 1]} : vector<8x9xf32> to vector<8x8xf32>
    %73 = vector.extract_strided_slice %71 {offsets = [0, 8], sizes = [8, 1], strides = [1, 1]} : vector<8x9xf32> to vector<8x1xf32>
    %74 = tpu.reciprocal %73 : vector<8x1xf32> -> vector<8x1xf32>
    %75 = vector.broadcast %74 : vector<8x1xf32> to vector<8x8xf32>
    %76 = arith.mulf %72, %75 : vector<8x8xf32>
    %77 = vector.extract_strided_slice %18 {offsets = [0, 2], sizes = [8, 1], strides = [1, 1]} : vector<8x4xf32> to vector<8x1xf32>
    %78 = vector.extract_strided_slice %19 {offsets = [2, 0], sizes = [1, 8], strides = [1, 1]} : vector<4x8xf32> to vector<1x8xf32>
    %79 = vector.broadcast %77 : vector<8x1xf32> to vector<8x8xf32>
    %80 = vector.broadcast %78 : vector<1x8xf32> to vector<8x8xf32>
    %81 = arith.addf %79, %80 : vector<8x8xf32>
    %cst_21 = arith.constant 2.000000e-01 : f32
    %82 = vector.broadcast %cst_21 : f32 to vector<8x8xf32>
    %83 = arith.mulf %82, %81 : vector<8x8xf32>
    %84 = arith.maximumf %81, %83 : vector<8x8xf32>
    %85 = vector.extract_strided_slice %21 {offsets = [2, 0], sizes = [1, 1], strides = [1, 1]} : vector<4x1xf32> to vector<1x1xf32>
    %86 = vector.broadcast %85 : vector<1x1xf32> to vector<8x1xf32>
    %87 = arith.addf %77, %86 : vector<8x1xf32>
    %cst_22 = arith.constant 2.000000e-01 : f32
    %88 = vector.broadcast %cst_22 : f32 to vector<8x1xf32>
    %89 = arith.mulf %88, %87 : vector<8x1xf32>
    %90 = arith.maximumf %87, %89 : vector<8x1xf32>
    %91 = vector.broadcast %90 : vector<8x1xf32> to vector<8x8xf32>
    %92 = arith.subf %84, %91 : vector<8x8xf32>
    %93 = arith.addf %92, %7 : vector<8x8xf32>
    %94 = math.exp %93 : vector<8x8xf32>
    %95 = vector.extract_strided_slice %15 {offsets = [0, 16], sizes = [8, 8], strides = [1, 1]} : vector<8x32xbf16> to vector<8x8xbf16>
    %96 = tpu.concatenate %95, %22 in 1 : vector<8x8xbf16>, vector<8x1xbf16> -> vector<8x9xbf16>
    %97 = arith.truncf %94 : vector<8x8xf32> to vector<8x8xbf16>
    %cst_23 = arith.constant dense<0.000000e+00> : vector<8x9xf32>
    %98 = tpu.matmul %97, %96, %cst_23 {dimension_numbers = #tpu.dot_dimension_numbers<[1], [0], [0], [1], [0, 0, 1, 1], [], []>} : vector<8x8xbf16>, vector<8x9xbf16>, vector<8x9xf32> -> vector<8x9xf32>
    %99 = vector.extract_strided_slice %98 {offsets = [0, 0], sizes = [8, 8], strides = [1, 1]} : vector<8x9xf32> to vector<8x8xf32>
    %100 = vector.extract_strided_slice %98 {offsets = [0, 8], sizes = [8, 1], strides = [1, 1]} : vector<8x9xf32> to vector<8x1xf32>
    %101 = tpu.reciprocal %100 : vector<8x1xf32> -> vector<8x1xf32>
    %102 = vector.broadcast %101 : vector<8x1xf32> to vector<8x8xf32>
    %103 = arith.mulf %99, %102 : vector<8x8xf32>
    %104 = vector.extract_strided_slice %18 {offsets = [0, 3], sizes = [8, 1], strides = [1, 1]} : vector<8x4xf32> to vector<8x1xf32>
    %105 = vector.extract_strided_slice %19 {offsets = [3, 0], sizes = [1, 8], strides = [1, 1]} : vector<4x8xf32> to vector<1x8xf32>
    %106 = vector.broadcast %104 : vector<8x1xf32> to vector<8x8xf32>
    %107 = vector.broadcast %105 : vector<1x8xf32> to vector<8x8xf32>
    %108 = arith.addf %106, %107 : vector<8x8xf32>
    %cst_24 = arith.constant 2.000000e-01 : f32
    %109 = vector.broadcast %cst_24 : f32 to vector<8x8xf32>
    %110 = arith.mulf %109, %108 : vector<8x8xf32>
    %111 = arith.maximumf %108, %110 : vector<8x8xf32>
    %112 = vector.extract_strided_slice %21 {offsets = [3, 0], sizes = [1, 1], strides = [1, 1]} : vector<4x1xf32> to vector<1x1xf32>
    %113 = vector.broadcast %112 : vector<1x1xf32> to vector<8x1xf32>
    %114 = arith.addf %104, %113 : vector<8x1xf32>
    %cst_25 = arith.constant 2.000000e-01 : f32
    %115 = vector.broadcast %cst_25 : f32 to vector<8x1xf32>
    %116 = arith.mulf %115, %114 : vector<8x1xf32>
    %117 = arith.maximumf %114, %116 : vector<8x1xf32>
    %118 = vector.broadcast %117 : vector<8x1xf32> to vector<8x8xf32>
    %119 = arith.subf %111, %118 : vector<8x8xf32>
    %120 = arith.addf %119, %7 : vector<8x8xf32>
    %121 = math.exp %120 : vector<8x8xf32>
    %122 = vector.extract_strided_slice %15 {offsets = [0, 24], sizes = [8, 8], strides = [1, 1]} : vector<8x32xbf16> to vector<8x8xbf16>
    %123 = tpu.concatenate %122, %22 in 1 : vector<8x8xbf16>, vector<8x1xbf16> -> vector<8x9xbf16>
    %124 = arith.truncf %121 : vector<8x8xf32> to vector<8x8xbf16>
    %cst_26 = arith.constant dense<0.000000e+00> : vector<8x9xf32>
    %125 = tpu.matmul %124, %123, %cst_26 {dimension_numbers = #tpu.dot_dimension_numbers<[1], [0], [0], [1], [0, 0, 1, 1], [], []>} : vector<8x8xbf16>, vector<8x9xbf16>, vector<8x9xf32> -> vector<8x9xf32>
    %126 = vector.extract_strided_slice %125 {offsets = [0, 0], sizes = [8, 8], strides = [1, 1]} : vector<8x9xf32> to vector<8x8xf32>
    %127 = vector.extract_strided_slice %125 {offsets = [0, 8], sizes = [8, 1], strides = [1, 1]} : vector<8x9xf32> to vector<8x1xf32>
    %128 = tpu.reciprocal %127 : vector<8x1xf32> -> vector<8x1xf32>
    %129 = vector.broadcast %128 : vector<8x1xf32> to vector<8x8xf32>
    %130 = arith.mulf %126, %129 : vector<8x8xf32>
    %131 = tpu.concatenate %49, %76, %103, %130 in 1 : vector<8x8xf32>, vector<8x8xf32>, vector<8x8xf32>, vector<8x8xf32> -> vector<8x32xf32>
    %132 = vector.broadcast %11 : vector<1x32xf32> to vector<8x32xf32>
    %133 = arith.addf %131, %132 : vector<8x32xf32>
    %c64 = arith.constant 64 : index
    %c0_27 = arith.constant 0 : index
    %134 = vector.load %arg2[%c64, %c0_27] : memref<416x128xf32, #tpu.memory_space<vmem>>, vector<32x32xf32>
    %c96 = arith.constant 96 : index
    %c0_28 = arith.constant 0 : index
    %135 = vector.load %arg2[%c96, %c0_28] : memref<416x128xf32, #tpu.memory_space<vmem>>, vector<4x32xf32>
    %c104 = arith.constant 104 : index
    %c0_29 = arith.constant 0 : index
    %136 = vector.load %arg2[%c104, %c0_29] : memref<416x128xf32, #tpu.memory_space<vmem>>, vector<32x4xf32>
    %c136 = arith.constant 136 : index
    %c0_30 = arith.constant 0 : index
    %137 = vector.load %arg2[%c136, %c0_30] : memref<416x128xf32, #tpu.memory_space<vmem>>, vector<1x32xf32>
    %138 = arith.truncf %133 : vector<8x32xf32> to vector<8x32xbf16>
    %139 = arith.truncf %134 : vector<32x32xf32> to vector<32x32xbf16>
    %cst_31 = arith.constant dense<0.000000e+00> : vector<8x32xf32>
    %140 = tpu.matmul %138, %139, %cst_31 {dimension_numbers = #tpu.dot_dimension_numbers<[1], [0], [0], [1], [0, 0, 1, 1], [], []>} : vector<8x32xbf16>, vector<32x32xbf16>, vector<8x32xf32> -> vector<8x32xf32>
    %141 = arith.truncf %140 : vector<8x32xf32> to vector<8x32xbf16>
    %142 = arith.truncf %136 : vector<32x4xf32> to vector<32x4xbf16>
    %143 = arith.truncf %135 : vector<4x32xf32> to vector<4x32xbf16>
    %cst_32 = arith.constant dense<0.000000e+00> : vector<8x4xf32>
    %144 = tpu.matmul %141, %142, %cst_32 {dimension_numbers = #tpu.dot_dimension_numbers<[1], [0], [0], [1], [0, 0, 1, 1], [], []>} : vector<8x32xbf16>, vector<32x4xbf16>, vector<8x4xf32> -> vector<8x4xf32>
    %cst_33 = arith.constant dense<0.000000e+00> : vector<4x8xf32>
    %145 = tpu.matmul %143, %141, %cst_33 {dimension_numbers = #tpu.dot_dimension_numbers<[1], [1], [0], [0], [0, 0, 1, 0], [], []>} : vector<4x32xbf16>, vector<8x32xbf16>, vector<4x8xf32> -> vector<4x8xf32>
    %cst_34 = arith.constant dense<0xFF800000> : vector<4xf32>
    %146 = vector.multi_reduction <maximumf>, %145, %cst_34 [1] : vector<4x8xf32> to vector<4xf32>
    %147 = vector.shape_cast %146 : vector<4xf32> to vector<4x1xf32>
    %cst_35 = arith.constant 1.000000e+00 : bf16
    %148 = vector.broadcast %cst_35 : bf16 to vector<8x1xbf16>
    %149 = vector.extract_strided_slice %144 {offsets = [0, 0], sizes = [8, 1], strides = [1, 1]} : vector<8x4xf32> to vector<8x1xf32>
    %150 = vector.extract_strided_slice %145 {offsets = [0, 0], sizes = [1, 8], strides = [1, 1]} : vector<4x8xf32> to vector<1x8xf32>
    %151 = vector.broadcast %149 : vector<8x1xf32> to vector<8x8xf32>
    %152 = vector.broadcast %150 : vector<1x8xf32> to vector<8x8xf32>
    %153 = arith.addf %151, %152 : vector<8x8xf32>
    %cst_36 = arith.constant 2.000000e-01 : f32
    %154 = vector.broadcast %cst_36 : f32 to vector<8x8xf32>
    %155 = arith.mulf %154, %153 : vector<8x8xf32>
    %156 = arith.maximumf %153, %155 : vector<8x8xf32>
    %157 = vector.extract_strided_slice %147 {offsets = [0, 0], sizes = [1, 1], strides = [1, 1]} : vector<4x1xf32> to vector<1x1xf32>
    %158 = vector.broadcast %157 : vector<1x1xf32> to vector<8x1xf32>
    %159 = arith.addf %149, %158 : vector<8x1xf32>
    %cst_37 = arith.constant 2.000000e-01 : f32
    %160 = vector.broadcast %cst_37 : f32 to vector<8x1xf32>
    %161 = arith.mulf %160, %159 : vector<8x1xf32>
    %162 = arith.maximumf %159, %161 : vector<8x1xf32>
    %163 = vector.broadcast %162 : vector<8x1xf32> to vector<8x8xf32>
    %164 = arith.subf %156, %163 : vector<8x8xf32>
    %165 = arith.addf %164, %7 : vector<8x8xf32>
    %166 = math.exp %165 : vector<8x8xf32>
    %167 = vector.extract_strided_slice %141 {offsets = [0, 0], sizes = [8, 8], strides = [1, 1]} : vector<8x32xbf16> to vector<8x8xbf16>
    %168 = tpu.concatenate %167, %148 in 1 : vector<8x8xbf16>, vector<8x1xbf16> -> vector<8x9xbf16>
    %169 = arith.truncf %166 : vector<8x8xf32> to vector<8x8xbf16>
    %cst_38 = arith.constant dense<0.000000e+00> : vector<8x9xf32>
    %170 = tpu.matmul %169, %168, %cst_38 {dimension_numbers = #tpu.dot_dimension_numbers<[1], [0], [0], [1], [0, 0, 1, 1], [], []>} : vector<8x8xbf16>, vector<8x9xbf16>, vector<8x9xf32> -> vector<8x9xf32>
    %171 = vector.extract_strided_slice %170 {offsets = [0, 0], sizes = [8, 8], strides = [1, 1]} : vector<8x9xf32> to vector<8x8xf32>
    %172 = vector.extract_strided_slice %170 {offsets = [0, 8], sizes = [8, 1], strides = [1, 1]} : vector<8x9xf32> to vector<8x1xf32>
    %173 = tpu.reciprocal %172 : vector<8x1xf32> -> vector<8x1xf32>
    %174 = vector.broadcast %173 : vector<8x1xf32> to vector<8x8xf32>
    %175 = arith.mulf %171, %174 : vector<8x8xf32>
    %176 = vector.extract_strided_slice %144 {offsets = [0, 1], sizes = [8, 1], strides = [1, 1]} : vector<8x4xf32> to vector<8x1xf32>
    %177 = vector.extract_strided_slice %145 {offsets = [1, 0], sizes = [1, 8], strides = [1, 1]} : vector<4x8xf32> to vector<1x8xf32>
    %178 = vector.broadcast %176 : vector<8x1xf32> to vector<8x8xf32>
    %179 = vector.broadcast %177 : vector<1x8xf32> to vector<8x8xf32>
    %180 = arith.addf %178, %179 : vector<8x8xf32>
    %cst_39 = arith.constant 2.000000e-01 : f32
    %181 = vector.broadcast %cst_39 : f32 to vector<8x8xf32>
    %182 = arith.mulf %181, %180 : vector<8x8xf32>
    %183 = arith.maximumf %180, %182 : vector<8x8xf32>
    %184 = vector.extract_strided_slice %147 {offsets = [1, 0], sizes = [1, 1], strides = [1, 1]} : vector<4x1xf32> to vector<1x1xf32>
    %185 = vector.broadcast %184 : vector<1x1xf32> to vector<8x1xf32>
    %186 = arith.addf %176, %185 : vector<8x1xf32>
    %cst_40 = arith.constant 2.000000e-01 : f32
    %187 = vector.broadcast %cst_40 : f32 to vector<8x1xf32>
    %188 = arith.mulf %187, %186 : vector<8x1xf32>
    %189 = arith.maximumf %186, %188 : vector<8x1xf32>
    %190 = vector.broadcast %189 : vector<8x1xf32> to vector<8x8xf32>
    %191 = arith.subf %183, %190 : vector<8x8xf32>
    %192 = arith.addf %191, %7 : vector<8x8xf32>
    %193 = math.exp %192 : vector<8x8xf32>
    %194 = vector.extract_strided_slice %141 {offsets = [0, 8], sizes = [8, 8], strides = [1, 1]} : vector<8x32xbf16> to vector<8x8xbf16>
    %195 = tpu.concatenate %194, %148 in 1 : vector<8x8xbf16>, vector<8x1xbf16> -> vector<8x9xbf16>
    %196 = arith.truncf %193 : vector<8x8xf32> to vector<8x8xbf16>
    %cst_41 = arith.constant dense<0.000000e+00> : vector<8x9xf32>
    %197 = tpu.matmul %196, %195, %cst_41 {dimension_numbers = #tpu.dot_dimension_numbers<[1], [0], [0], [1], [0, 0, 1, 1], [], []>} : vector<8x8xbf16>, vector<8x9xbf16>, vector<8x9xf32> -> vector<8x9xf32>
    %198 = vector.extract_strided_slice %197 {offsets = [0, 0], sizes = [8, 8], strides = [1, 1]} : vector<8x9xf32> to vector<8x8xf32>
    %199 = vector.extract_strided_slice %197 {offsets = [0, 8], sizes = [8, 1], strides = [1, 1]} : vector<8x9xf32> to vector<8x1xf32>
    %200 = tpu.reciprocal %199 : vector<8x1xf32> -> vector<8x1xf32>
    %201 = vector.broadcast %200 : vector<8x1xf32> to vector<8x8xf32>
    %202 = arith.mulf %198, %201 : vector<8x8xf32>
    %203 = vector.extract_strided_slice %144 {offsets = [0, 2], sizes = [8, 1], strides = [1, 1]} : vector<8x4xf32> to vector<8x1xf32>
    %204 = vector.extract_strided_slice %145 {offsets = [2, 0], sizes = [1, 8], strides = [1, 1]} : vector<4x8xf32> to vector<1x8xf32>
    %205 = vector.broadcast %203 : vector<8x1xf32> to vector<8x8xf32>
    %206 = vector.broadcast %204 : vector<1x8xf32> to vector<8x8xf32>
    %207 = arith.addf %205, %206 : vector<8x8xf32>
    %cst_42 = arith.constant 2.000000e-01 : f32
    %208 = vector.broadcast %cst_42 : f32 to vector<8x8xf32>
    %209 = arith.mulf %208, %207 : vector<8x8xf32>
    %210 = arith.maximumf %207, %209 : vector<8x8xf32>
    %211 = vector.extract_strided_slice %147 {offsets = [2, 0], sizes = [1, 1], strides = [1, 1]} : vector<4x1xf32> to vector<1x1xf32>
    %212 = vector.broadcast %211 : vector<1x1xf32> to vector<8x1xf32>
    %213 = arith.addf %203, %212 : vector<8x1xf32>
    %cst_43 = arith.constant 2.000000e-01 : f32
    %214 = vector.broadcast %cst_43 : f32 to vector<8x1xf32>
    %215 = arith.mulf %214, %213 : vector<8x1xf32>
    %216 = arith.maximumf %213, %215 : vector<8x1xf32>
    %217 = vector.broadcast %216 : vector<8x1xf32> to vector<8x8xf32>
    %218 = arith.subf %210, %217 : vector<8x8xf32>
    %219 = arith.addf %218, %7 : vector<8x8xf32>
    %220 = math.exp %219 : vector<8x8xf32>
    %221 = vector.extract_strided_slice %141 {offsets = [0, 16], sizes = [8, 8], strides = [1, 1]} : vector<8x32xbf16> to vector<8x8xbf16>
    %222 = tpu.concatenate %221, %148 in 1 : vector<8x8xbf16>, vector<8x1xbf16> -> vector<8x9xbf16>
    %223 = arith.truncf %220 : vector<8x8xf32> to vector<8x8xbf16>
    %cst_44 = arith.constant dense<0.000000e+00> : vector<8x9xf32>
    %224 = tpu.matmul %223, %222, %cst_44 {dimension_numbers = #tpu.dot_dimension_numbers<[1], [0], [0], [1], [0, 0, 1, 1], [], []>} : vector<8x8xbf16>, vector<8x9xbf16>, vector<8x9xf32> -> vector<8x9xf32>
    %225 = vector.extract_strided_slice %224 {offsets = [0, 0], sizes = [8, 8], strides = [1, 1]} : vector<8x9xf32> to vector<8x8xf32>
    %226 = vector.extract_strided_slice %224 {offsets = [0, 8], sizes = [8, 1], strides = [1, 1]} : vector<8x9xf32> to vector<8x1xf32>
    %227 = tpu.reciprocal %226 : vector<8x1xf32> -> vector<8x1xf32>
    %228 = vector.broadcast %227 : vector<8x1xf32> to vector<8x8xf32>
    %229 = arith.mulf %225, %228 : vector<8x8xf32>
    %230 = vector.extract_strided_slice %144 {offsets = [0, 3], sizes = [8, 1], strides = [1, 1]} : vector<8x4xf32> to vector<8x1xf32>
    %231 = vector.extract_strided_slice %145 {offsets = [3, 0], sizes = [1, 8], strides = [1, 1]} : vector<4x8xf32> to vector<1x8xf32>
    %232 = vector.broadcast %230 : vector<8x1xf32> to vector<8x8xf32>
    %233 = vector.broadcast %231 : vector<1x8xf32> to vector<8x8xf32>
    %234 = arith.addf %232, %233 : vector<8x8xf32>
    %cst_45 = arith.constant 2.000000e-01 : f32
    %235 = vector.broadcast %cst_45 : f32 to vector<8x8xf32>
    %236 = arith.mulf %235, %234 : vector<8x8xf32>
    %237 = arith.maximumf %234, %236 : vector<8x8xf32>
    %238 = vector.extract_strided_slice %147 {offsets = [3, 0], sizes = [1, 1], strides = [1, 1]} : vector<4x1xf32> to vector<1x1xf32>
    %239 = vector.broadcast %238 : vector<1x1xf32> to vector<8x1xf32>
    %240 = arith.addf %230, %239 : vector<8x1xf32>
    %cst_46 = arith.constant 2.000000e-01 : f32
    %241 = vector.broadcast %cst_46 : f32 to vector<8x1xf32>
    %242 = arith.mulf %241, %240 : vector<8x1xf32>
    %243 = arith.maximumf %240, %242 : vector<8x1xf32>
    %244 = vector.broadcast %243 : vector<8x1xf32> to vector<8x8xf32>
    %245 = arith.subf %237, %244 : vector<8x8xf32>
    %246 = arith.addf %245, %7 : vector<8x8xf32>
    %247 = math.exp %246 : vector<8x8xf32>
    %248 = vector.extract_strided_slice %141 {offsets = [0, 24], sizes = [8, 8], strides = [1, 1]} : vector<8x32xbf16> to vector<8x8xbf16>
    %249 = tpu.concatenate %248, %148 in 1 : vector<8x8xbf16>, vector<8x1xbf16> -> vector<8x9xbf16>
    %250 = arith.truncf %247 : vector<8x8xf32> to vector<8x8xbf16>
    %cst_47 = arith.constant dense<0.000000e+00> : vector<8x9xf32>
    %251 = tpu.matmul %250, %249, %cst_47 {dimension_numbers = #tpu.dot_dimension_numbers<[1], [0], [0], [1], [0, 0, 1, 1], [], []>} : vector<8x8xbf16>, vector<8x9xbf16>, vector<8x9xf32> -> vector<8x9xf32>
    %252 = vector.extract_strided_slice %251 {offsets = [0, 0], sizes = [8, 8], strides = [1, 1]} : vector<8x9xf32> to vector<8x8xf32>
    %253 = vector.extract_strided_slice %251 {offsets = [0, 8], sizes = [8, 1], strides = [1, 1]} : vector<8x9xf32> to vector<8x1xf32>
    %254 = tpu.reciprocal %253 : vector<8x1xf32> -> vector<8x1xf32>
    %255 = vector.broadcast %254 : vector<8x1xf32> to vector<8x8xf32>
    %256 = arith.mulf %252, %255 : vector<8x8xf32>
    %257 = tpu.concatenate %175, %202, %229, %256 in 1 : vector<8x8xf32>, vector<8x8xf32>, vector<8x8xf32>, vector<8x8xf32> -> vector<8x32xf32>
    %258 = vector.broadcast %137 : vector<1x32xf32> to vector<8x32xf32>
    %259 = arith.addf %257, %258 : vector<8x32xf32>
    %260 = arith.truncf %259 : vector<8x32xf32> to vector<8x32xbf16>
    %c144 = arith.constant 144 : index
    %c0_48 = arith.constant 0 : index
    %261 = vector.load %arg2[%c144, %c0_48] : memref<416x128xf32, #tpu.memory_space<vmem>>, vector<32x32xf32>
    %262 = arith.truncf %261 : vector<32x32xf32> to vector<32x32xbf16>
    %cst_49 = arith.constant dense<0.000000e+00> : vector<8x32xf32>
    %263 = tpu.matmul %260, %262, %cst_49 {dimension_numbers = #tpu.dot_dimension_numbers<[1], [0], [0], [1], [0, 0, 1, 1], [], []>} : vector<8x32xbf16>, vector<32x32xbf16>, vector<8x32xf32> -> vector<8x32xf32>
    %c176 = arith.constant 176 : index
    %c0_50 = arith.constant 0 : index
    %264 = vector.load %arg2[%c176, %c0_50] : memref<416x128xf32, #tpu.memory_space<vmem>>, vector<1x32xf32>
    %265 = vector.broadcast %264 : vector<1x32xf32> to vector<8x32xf32>
    %266 = arith.addf %263, %265 : vector<8x32xf32>
    %cst_51 = arith.constant 0.000000e+00 : f32
    %267 = vector.broadcast %cst_51 : f32 to vector<8x32xf32>
    %268 = arith.maximumf %266, %267 : vector<8x32xf32>
    %269 = arith.truncf %268 : vector<8x32xf32> to vector<8x32xbf16>
    %c184 = arith.constant 184 : index
    %c0_52 = arith.constant 0 : index
    %270 = vector.load %arg2[%c184, %c0_52] : memref<416x128xf32, #tpu.memory_space<vmem>>, vector<32x32xf32>
    %271 = arith.truncf %270 : vector<32x32xf32> to vector<32x32xbf16>
    %cst_53 = arith.constant dense<0.000000e+00> : vector<8x32xf32>
    %272 = tpu.matmul %269, %271, %cst_53 {dimension_numbers = #tpu.dot_dimension_numbers<[1], [0], [0], [1], [0, 0, 1, 1], [], []>} : vector<8x32xbf16>, vector<32x32xbf16>, vector<8x32xf32> -> vector<8x32xf32>
    %c216 = arith.constant 216 : index
    %c0_54 = arith.constant 0 : index
    %273 = vector.load %arg2[%c216, %c0_54] : memref<416x128xf32, #tpu.memory_space<vmem>>, vector<1x32xf32>
    %274 = vector.broadcast %273 : vector<1x32xf32> to vector<8x32xf32>
    %275 = arith.addf %272, %274 : vector<8x32xf32>
    %cst_55 = arith.constant 0.000000e+00 : f32
    %276 = vector.broadcast %cst_55 : f32 to vector<8x32xf32>
    %277 = arith.maximumf %275, %276 : vector<8x32xf32>
    %c224 = arith.constant 224 : index
    %c0_56 = arith.constant 0 : index
    %278 = vector.load %arg2[%c224, %c0_56] : memref<416x128xf32, #tpu.memory_space<vmem>>, vector<32x32xf32>
    %c256 = arith.constant 256 : index
    %c0_57 = arith.constant 0 : index
    %279 = vector.load %arg2[%c256, %c0_57] : memref<416x128xf32, #tpu.memory_space<vmem>>, vector<4x32xf32>
    %c264 = arith.constant 264 : index
    %c0_58 = arith.constant 0 : index
    %280 = vector.load %arg2[%c264, %c0_58] : memref<416x128xf32, #tpu.memory_space<vmem>>, vector<32x4xf32>
    %c296 = arith.constant 296 : index
    %c0_59 = arith.constant 0 : index
    %281 = vector.load %arg2[%c296, %c0_59] : memref<416x128xf32, #tpu.memory_space<vmem>>, vector<1x32xf32>
    %282 = arith.truncf %277 : vector<8x32xf32> to vector<8x32xbf16>
    %283 = arith.truncf %278 : vector<32x32xf32> to vector<32x32xbf16>
    %cst_60 = arith.constant dense<0.000000e+00> : vector<8x32xf32>
    %284 = tpu.matmul %282, %283, %cst_60 {dimension_numbers = #tpu.dot_dimension_numbers<[1], [0], [0], [1], [0, 0, 1, 1], [], []>} : vector<8x32xbf16>, vector<32x32xbf16>, vector<8x32xf32> -> vector<8x32xf32>
    %285 = arith.truncf %284 : vector<8x32xf32> to vector<8x32xbf16>
    %286 = arith.truncf %280 : vector<32x4xf32> to vector<32x4xbf16>
    %287 = arith.truncf %279 : vector<4x32xf32> to vector<4x32xbf16>
    %cst_61 = arith.constant dense<0.000000e+00> : vector<8x4xf32>
    %288 = tpu.matmul %285, %286, %cst_61 {dimension_numbers = #tpu.dot_dimension_numbers<[1], [0], [0], [1], [0, 0, 1, 1], [], []>} : vector<8x32xbf16>, vector<32x4xbf16>, vector<8x4xf32> -> vector<8x4xf32>
    %cst_62 = arith.constant dense<0.000000e+00> : vector<4x8xf32>
    %289 = tpu.matmul %287, %285, %cst_62 {dimension_numbers = #tpu.dot_dimension_numbers<[1], [1], [0], [0], [0, 0, 1, 0], [], []>} : vector<4x32xbf16>, vector<8x32xbf16>, vector<4x8xf32> -> vector<4x8xf32>
    %cst_63 = arith.constant dense<0xFF800000> : vector<4xf32>
    %290 = vector.multi_reduction <maximumf>, %289, %cst_63 [1] : vector<4x8xf32> to vector<4xf32>
    %291 = vector.shape_cast %290 : vector<4xf32> to vector<4x1xf32>
    %cst_64 = arith.constant 1.000000e+00 : bf16
    %292 = vector.broadcast %cst_64 : bf16 to vector<8x1xbf16>
    %293 = vector.extract_strided_slice %288 {offsets = [0, 0], sizes = [8, 1], strides = [1, 1]} : vector<8x4xf32> to vector<8x1xf32>
    %294 = vector.extract_strided_slice %289 {offsets = [0, 0], sizes = [1, 8], strides = [1, 1]} : vector<4x8xf32> to vector<1x8xf32>
    %295 = vector.broadcast %293 : vector<8x1xf32> to vector<8x8xf32>
    %296 = vector.broadcast %294 : vector<1x8xf32> to vector<8x8xf32>
    %297 = arith.addf %295, %296 : vector<8x8xf32>
    %cst_65 = arith.constant 2.000000e-01 : f32
    %298 = vector.broadcast %cst_65 : f32 to vector<8x8xf32>
    %299 = arith.mulf %298, %297 : vector<8x8xf32>
    %300 = arith.maximumf %297, %299 : vector<8x8xf32>
    %301 = vector.extract_strided_slice %291 {offsets = [0, 0], sizes = [1, 1], strides = [1, 1]} : vector<4x1xf32> to vector<1x1xf32>
    %302 = vector.broadcast %301 : vector<1x1xf32> to vector<8x1xf32>
    %303 = arith.addf %293, %302 : vector<8x1xf32>
    %cst_66 = arith.constant 2.000000e-01 : f32
    %304 = vector.broadcast %cst_66 : f32 to vector<8x1xf32>
    %305 = arith.mulf %304, %303 : vector<8x1xf32>
    %306 = arith.maximumf %303, %305 : vector<8x1xf32>
    %307 = vector.broadcast %306 : vector<8x1xf32> to vector<8x8xf32>
    %308 = arith.subf %300, %307 : vector<8x8xf32>
    %309 = arith.addf %308, %7 : vector<8x8xf32>
    %310 = math.exp %309 : vector<8x8xf32>
    %311 = vector.extract_strided_slice %285 {offsets = [0, 0], sizes = [8, 8], strides = [1, 1]} : vector<8x32xbf16> to vector<8x8xbf16>
    %312 = tpu.concatenate %311, %292 in 1 : vector<8x8xbf16>, vector<8x1xbf16> -> vector<8x9xbf16>
    %313 = arith.truncf %310 : vector<8x8xf32> to vector<8x8xbf16>
    %cst_67 = arith.constant dense<0.000000e+00> : vector<8x9xf32>
    %314 = tpu.matmul %313, %312, %cst_67 {dimension_numbers = #tpu.dot_dimension_numbers<[1], [0], [0], [1], [0, 0, 1, 1], [], []>} : vector<8x8xbf16>, vector<8x9xbf16>, vector<8x9xf32> -> vector<8x9xf32>
    %315 = vector.extract_strided_slice %314 {offsets = [0, 0], sizes = [8, 8], strides = [1, 1]} : vector<8x9xf32> to vector<8x8xf32>
    %316 = vector.extract_strided_slice %314 {offsets = [0, 8], sizes = [8, 1], strides = [1, 1]} : vector<8x9xf32> to vector<8x1xf32>
    %317 = tpu.reciprocal %316 : vector<8x1xf32> -> vector<8x1xf32>
    %318 = vector.broadcast %317 : vector<8x1xf32> to vector<8x8xf32>
    %319 = arith.mulf %315, %318 : vector<8x8xf32>
    %320 = vector.extract_strided_slice %288 {offsets = [0, 1], sizes = [8, 1], strides = [1, 1]} : vector<8x4xf32> to vector<8x1xf32>
    %321 = vector.extract_strided_slice %289 {offsets = [1, 0], sizes = [1, 8], strides = [1, 1]} : vector<4x8xf32> to vector<1x8xf32>
    %322 = vector.broadcast %320 : vector<8x1xf32> to vector<8x8xf32>
    %323 = vector.broadcast %321 : vector<1x8xf32> to vector<8x8xf32>
    %324 = arith.addf %322, %323 : vector<8x8xf32>
    %cst_68 = arith.constant 2.000000e-01 : f32
    %325 = vector.broadcast %cst_68 : f32 to vector<8x8xf32>
    %326 = arith.mulf %325, %324 : vector<8x8xf32>
    %327 = arith.maximumf %324, %326 : vector<8x8xf32>
    %328 = vector.extract_strided_slice %291 {offsets = [1, 0], sizes = [1, 1], strides = [1, 1]} : vector<4x1xf32> to vector<1x1xf32>
    %329 = vector.broadcast %328 : vector<1x1xf32> to vector<8x1xf32>
    %330 = arith.addf %320, %329 : vector<8x1xf32>
    %cst_69 = arith.constant 2.000000e-01 : f32
    %331 = vector.broadcast %cst_69 : f32 to vector<8x1xf32>
    %332 = arith.mulf %331, %330 : vector<8x1xf32>
    %333 = arith.maximumf %330, %332 : vector<8x1xf32>
    %334 = vector.broadcast %333 : vector<8x1xf32> to vector<8x8xf32>
    %335 = arith.subf %327, %334 : vector<8x8xf32>
    %336 = arith.addf %335, %7 : vector<8x8xf32>
    %337 = math.exp %336 : vector<8x8xf32>
    %338 = vector.extract_strided_slice %285 {offsets = [0, 8], sizes = [8, 8], strides = [1, 1]} : vector<8x32xbf16> to vector<8x8xbf16>
    %339 = tpu.concatenate %338, %292 in 1 : vector<8x8xbf16>, vector<8x1xbf16> -> vector<8x9xbf16>
    %340 = arith.truncf %337 : vector<8x8xf32> to vector<8x8xbf16>
    %cst_70 = arith.constant dense<0.000000e+00> : vector<8x9xf32>
    %341 = tpu.matmul %340, %339, %cst_70 {dimension_numbers = #tpu.dot_dimension_numbers<[1], [0], [0], [1], [0, 0, 1, 1], [], []>} : vector<8x8xbf16>, vector<8x9xbf16>, vector<8x9xf32> -> vector<8x9xf32>
    %342 = vector.extract_strided_slice %341 {offsets = [0, 0], sizes = [8, 8], strides = [1, 1]} : vector<8x9xf32> to vector<8x8xf32>
    %343 = vector.extract_strided_slice %341 {offsets = [0, 8], sizes = [8, 1], strides = [1, 1]} : vector<8x9xf32> to vector<8x1xf32>
    %344 = tpu.reciprocal %343 : vector<8x1xf32> -> vector<8x1xf32>
    %345 = vector.broadcast %344 : vector<8x1xf32> to vector<8x8xf32>
    %346 = arith.mulf %342, %345 : vector<8x8xf32>
    %347 = vector.extract_strided_slice %288 {offsets = [0, 2], sizes = [8, 1], strides = [1, 1]} : vector<8x4xf32> to vector<8x1xf32>
    %348 = vector.extract_strided_slice %289 {offsets = [2, 0], sizes = [1, 8], strides = [1, 1]} : vector<4x8xf32> to vector<1x8xf32>
    %349 = vector.broadcast %347 : vector<8x1xf32> to vector<8x8xf32>
    %350 = vector.broadcast %348 : vector<1x8xf32> to vector<8x8xf32>
    %351 = arith.addf %349, %350 : vector<8x8xf32>
    %cst_71 = arith.constant 2.000000e-01 : f32
    %352 = vector.broadcast %cst_71 : f32 to vector<8x8xf32>
    %353 = arith.mulf %352, %351 : vector<8x8xf32>
    %354 = arith.maximumf %351, %353 : vector<8x8xf32>
    %355 = vector.extract_strided_slice %291 {offsets = [2, 0], sizes = [1, 1], strides = [1, 1]} : vector<4x1xf32> to vector<1x1xf32>
    %356 = vector.broadcast %355 : vector<1x1xf32> to vector<8x1xf32>
    %357 = arith.addf %347, %356 : vector<8x1xf32>
    %cst_72 = arith.constant 2.000000e-01 : f32
    %358 = vector.broadcast %cst_72 : f32 to vector<8x1xf32>
    %359 = arith.mulf %358, %357 : vector<8x1xf32>
    %360 = arith.maximumf %357, %359 : vector<8x1xf32>
    %361 = vector.broadcast %360 : vector<8x1xf32> to vector<8x8xf32>
    %362 = arith.subf %354, %361 : vector<8x8xf32>
    %363 = arith.addf %362, %7 : vector<8x8xf32>
    %364 = math.exp %363 : vector<8x8xf32>
    %365 = vector.extract_strided_slice %285 {offsets = [0, 16], sizes = [8, 8], strides = [1, 1]} : vector<8x32xbf16> to vector<8x8xbf16>
    %366 = tpu.concatenate %365, %292 in 1 : vector<8x8xbf16>, vector<8x1xbf16> -> vector<8x9xbf16>
    %367 = arith.truncf %364 : vector<8x8xf32> to vector<8x8xbf16>
    %cst_73 = arith.constant dense<0.000000e+00> : vector<8x9xf32>
    %368 = tpu.matmul %367, %366, %cst_73 {dimension_numbers = #tpu.dot_dimension_numbers<[1], [0], [0], [1], [0, 0, 1, 1], [], []>} : vector<8x8xbf16>, vector<8x9xbf16>, vector<8x9xf32> -> vector<8x9xf32>
    %369 = vector.extract_strided_slice %368 {offsets = [0, 0], sizes = [8, 8], strides = [1, 1]} : vector<8x9xf32> to vector<8x8xf32>
    %370 = vector.extract_strided_slice %368 {offsets = [0, 8], sizes = [8, 1], strides = [1, 1]} : vector<8x9xf32> to vector<8x1xf32>
    %371 = tpu.reciprocal %370 : vector<8x1xf32> -> vector<8x1xf32>
    %372 = vector.broadcast %371 : vector<8x1xf32> to vector<8x8xf32>
    %373 = arith.mulf %369, %372 : vector<8x8xf32>
    %374 = vector.extract_strided_slice %288 {offsets = [0, 3], sizes = [8, 1], strides = [1, 1]} : vector<8x4xf32> to vector<8x1xf32>
    %375 = vector.extract_strided_slice %289 {offsets = [3, 0], sizes = [1, 8], strides = [1, 1]} : vector<4x8xf32> to vector<1x8xf32>
    %376 = vector.broadcast %374 : vector<8x1xf32> to vector<8x8xf32>
    %377 = vector.broadcast %375 : vector<1x8xf32> to vector<8x8xf32>
    %378 = arith.addf %376, %377 : vector<8x8xf32>
    %cst_74 = arith.constant 2.000000e-01 : f32
    %379 = vector.broadcast %cst_74 : f32 to vector<8x8xf32>
    %380 = arith.mulf %379, %378 : vector<8x8xf32>
    %381 = arith.maximumf %378, %380 : vector<8x8xf32>
    %382 = vector.extract_strided_slice %291 {offsets = [3, 0], sizes = [1, 1], strides = [1, 1]} : vector<4x1xf32> to vector<1x1xf32>
    %383 = vector.broadcast %382 : vector<1x1xf32> to vector<8x1xf32>
    %384 = arith.addf %374, %383 : vector<8x1xf32>
    %cst_75 = arith.constant 2.000000e-01 : f32
    %385 = vector.broadcast %cst_75 : f32 to vector<8x1xf32>
    %386 = arith.mulf %385, %384 : vector<8x1xf32>
    %387 = arith.maximumf %384, %386 : vector<8x1xf32>
    %388 = vector.broadcast %387 : vector<8x1xf32> to vector<8x8xf32>
    %389 = arith.subf %381, %388 : vector<8x8xf32>
    %390 = arith.addf %389, %7 : vector<8x8xf32>
    %391 = math.exp %390 : vector<8x8xf32>
    %392 = vector.extract_strided_slice %285 {offsets = [0, 24], sizes = [8, 8], strides = [1, 1]} : vector<8x32xbf16> to vector<8x8xbf16>
    %393 = tpu.concatenate %392, %292 in 1 : vector<8x8xbf16>, vector<8x1xbf16> -> vector<8x9xbf16>
    %394 = arith.truncf %391 : vector<8x8xf32> to vector<8x8xbf16>
    %cst_76 = arith.constant dense<0.000000e+00> : vector<8x9xf32>
    %395 = tpu.matmul %394, %393, %cst_76 {dimension_numbers = #tpu.dot_dimension_numbers<[1], [0], [0], [1], [0, 0, 1, 1], [], []>} : vector<8x8xbf16>, vector<8x9xbf16>, vector<8x9xf32> -> vector<8x9xf32>
    %396 = vector.extract_strided_slice %395 {offsets = [0, 0], sizes = [8, 8], strides = [1, 1]} : vector<8x9xf32> to vector<8x8xf32>
    %397 = vector.extract_strided_slice %395 {offsets = [0, 8], sizes = [8, 1], strides = [1, 1]} : vector<8x9xf32> to vector<8x1xf32>
    %398 = tpu.reciprocal %397 : vector<8x1xf32> -> vector<8x1xf32>
    %399 = vector.broadcast %398 : vector<8x1xf32> to vector<8x8xf32>
    %400 = arith.mulf %396, %399 : vector<8x8xf32>
    %401 = tpu.concatenate %319, %346, %373, %400 in 1 : vector<8x8xf32>, vector<8x8xf32>, vector<8x8xf32>, vector<8x8xf32> -> vector<8x32xf32>
    %402 = vector.broadcast %281 : vector<1x32xf32> to vector<8x32xf32>
    %403 = arith.addf %401, %402 : vector<8x32xf32>
    %c304 = arith.constant 304 : index
    %c0_77 = arith.constant 0 : index
    %404 = vector.load %arg2[%c304, %c0_77] : memref<416x128xf32, #tpu.memory_space<vmem>>, vector<32x64xf32>
    %c336 = arith.constant 336 : index
    %c0_78 = arith.constant 0 : index
    %405 = vector.load %arg2[%c336, %c0_78] : memref<416x128xf32, #tpu.memory_space<vmem>>, vector<4x64xf32>
    %c344 = arith.constant 344 : index
    %c0_79 = arith.constant 0 : index
    %406 = vector.load %arg2[%c344, %c0_79] : memref<416x128xf32, #tpu.memory_space<vmem>>, vector<64x4xf32>
    %c408 = arith.constant 408 : index
    %c0_80 = arith.constant 0 : index
    %407 = vector.load %arg2[%c408, %c0_80] : memref<416x128xf32, #tpu.memory_space<vmem>>, vector<1x16xf32>
    %408 = arith.truncf %403 : vector<8x32xf32> to vector<8x32xbf16>
    %409 = arith.truncf %404 : vector<32x64xf32> to vector<32x64xbf16>
    %cst_81 = arith.constant dense<0.000000e+00> : vector<8x64xf32>
    %410 = tpu.matmul %408, %409, %cst_81 {dimension_numbers = #tpu.dot_dimension_numbers<[1], [0], [0], [1], [0, 0, 1, 1], [], []>} : vector<8x32xbf16>, vector<32x64xbf16>, vector<8x64xf32> -> vector<8x64xf32>
    %411 = arith.truncf %410 : vector<8x64xf32> to vector<8x64xbf16>
    %412 = arith.truncf %406 : vector<64x4xf32> to vector<64x4xbf16>
    %413 = arith.truncf %405 : vector<4x64xf32> to vector<4x64xbf16>
    %cst_82 = arith.constant dense<0.000000e+00> : vector<8x4xf32>
    %414 = tpu.matmul %411, %412, %cst_82 {dimension_numbers = #tpu.dot_dimension_numbers<[1], [0], [0], [1], [0, 0, 1, 1], [], []>} : vector<8x64xbf16>, vector<64x4xbf16>, vector<8x4xf32> -> vector<8x4xf32>
    %cst_83 = arith.constant dense<0.000000e+00> : vector<4x8xf32>
    %415 = tpu.matmul %413, %411, %cst_83 {dimension_numbers = #tpu.dot_dimension_numbers<[1], [1], [0], [0], [0, 0, 1, 0], [], []>} : vector<4x64xbf16>, vector<8x64xbf16>, vector<4x8xf32> -> vector<4x8xf32>
    %cst_84 = arith.constant dense<0xFF800000> : vector<4xf32>
    %416 = vector.multi_reduction <maximumf>, %415, %cst_84 [1] : vector<4x8xf32> to vector<4xf32>
    %417 = vector.shape_cast %416 : vector<4xf32> to vector<4x1xf32>
    %cst_85 = arith.constant 1.000000e+00 : bf16
    %418 = vector.broadcast %cst_85 : bf16 to vector<8x1xbf16>
    %419 = vector.extract_strided_slice %414 {offsets = [0, 0], sizes = [8, 1], strides = [1, 1]} : vector<8x4xf32> to vector<8x1xf32>
    %420 = vector.extract_strided_slice %415 {offsets = [0, 0], sizes = [1, 8], strides = [1, 1]} : vector<4x8xf32> to vector<1x8xf32>
    %421 = vector.broadcast %419 : vector<8x1xf32> to vector<8x8xf32>
    %422 = vector.broadcast %420 : vector<1x8xf32> to vector<8x8xf32>
    %423 = arith.addf %421, %422 : vector<8x8xf32>
    %cst_86 = arith.constant 2.000000e-01 : f32
    %424 = vector.broadcast %cst_86 : f32 to vector<8x8xf32>
    %425 = arith.mulf %424, %423 : vector<8x8xf32>
    %426 = arith.maximumf %423, %425 : vector<8x8xf32>
    %427 = vector.extract_strided_slice %417 {offsets = [0, 0], sizes = [1, 1], strides = [1, 1]} : vector<4x1xf32> to vector<1x1xf32>
    %428 = vector.broadcast %427 : vector<1x1xf32> to vector<8x1xf32>
    %429 = arith.addf %419, %428 : vector<8x1xf32>
    %cst_87 = arith.constant 2.000000e-01 : f32
    %430 = vector.broadcast %cst_87 : f32 to vector<8x1xf32>
    %431 = arith.mulf %430, %429 : vector<8x1xf32>
    %432 = arith.maximumf %429, %431 : vector<8x1xf32>
    %433 = vector.broadcast %432 : vector<8x1xf32> to vector<8x8xf32>
    %434 = arith.subf %426, %433 : vector<8x8xf32>
    %435 = arith.addf %434, %7 : vector<8x8xf32>
    %436 = math.exp %435 : vector<8x8xf32>
    %437 = vector.extract_strided_slice %411 {offsets = [0, 0], sizes = [8, 16], strides = [1, 1]} : vector<8x64xbf16> to vector<8x16xbf16>
    %438 = tpu.concatenate %437, %418 in 1 : vector<8x16xbf16>, vector<8x1xbf16> -> vector<8x17xbf16>
    %439 = arith.truncf %436 : vector<8x8xf32> to vector<8x8xbf16>
    %cst_88 = arith.constant dense<0.000000e+00> : vector<8x17xf32>
    %440 = tpu.matmul %439, %438, %cst_88 {dimension_numbers = #tpu.dot_dimension_numbers<[1], [0], [0], [1], [0, 0, 1, 1], [], []>} : vector<8x8xbf16>, vector<8x17xbf16>, vector<8x17xf32> -> vector<8x17xf32>
    %441 = vector.extract_strided_slice %440 {offsets = [0, 0], sizes = [8, 16], strides = [1, 1]} : vector<8x17xf32> to vector<8x16xf32>
    %442 = vector.extract_strided_slice %440 {offsets = [0, 16], sizes = [8, 1], strides = [1, 1]} : vector<8x17xf32> to vector<8x1xf32>
    %443 = tpu.reciprocal %442 : vector<8x1xf32> -> vector<8x1xf32>
    %444 = vector.broadcast %443 : vector<8x1xf32> to vector<8x16xf32>
    %445 = arith.mulf %441, %444 : vector<8x16xf32>
    %446 = vector.extract_strided_slice %414 {offsets = [0, 1], sizes = [8, 1], strides = [1, 1]} : vector<8x4xf32> to vector<8x1xf32>
    %447 = vector.extract_strided_slice %415 {offsets = [1, 0], sizes = [1, 8], strides = [1, 1]} : vector<4x8xf32> to vector<1x8xf32>
    %448 = vector.broadcast %446 : vector<8x1xf32> to vector<8x8xf32>
    %449 = vector.broadcast %447 : vector<1x8xf32> to vector<8x8xf32>
    %450 = arith.addf %448, %449 : vector<8x8xf32>
    %cst_89 = arith.constant 2.000000e-01 : f32
    %451 = vector.broadcast %cst_89 : f32 to vector<8x8xf32>
    %452 = arith.mulf %451, %450 : vector<8x8xf32>
    %453 = arith.maximumf %450, %452 : vector<8x8xf32>
    %454 = vector.extract_strided_slice %417 {offsets = [1, 0], sizes = [1, 1], strides = [1, 1]} : vector<4x1xf32> to vector<1x1xf32>
    %455 = vector.broadcast %454 : vector<1x1xf32> to vector<8x1xf32>
    %456 = arith.addf %446, %455 : vector<8x1xf32>
    %cst_90 = arith.constant 2.000000e-01 : f32
    %457 = vector.broadcast %cst_90 : f32 to vector<8x1xf32>
    %458 = arith.mulf %457, %456 : vector<8x1xf32>
    %459 = arith.maximumf %456, %458 : vector<8x1xf32>
    %460 = vector.broadcast %459 : vector<8x1xf32> to vector<8x8xf32>
    %461 = arith.subf %453, %460 : vector<8x8xf32>
    %462 = arith.addf %461, %7 : vector<8x8xf32>
    %463 = math.exp %462 : vector<8x8xf32>
    %464 = vector.extract_strided_slice %411 {offsets = [0, 16], sizes = [8, 16], strides = [1, 1]} : vector<8x64xbf16> to vector<8x16xbf16>
    %465 = tpu.concatenate %464, %418 in 1 : vector<8x16xbf16>, vector<8x1xbf16> -> vector<8x17xbf16>
    %466 = arith.truncf %463 : vector<8x8xf32> to vector<8x8xbf16>
    %cst_91 = arith.constant dense<0.000000e+00> : vector<8x17xf32>
    %467 = tpu.matmul %466, %465, %cst_91 {dimension_numbers = #tpu.dot_dimension_numbers<[1], [0], [0], [1], [0, 0, 1, 1], [], []>} : vector<8x8xbf16>, vector<8x17xbf16>, vector<8x17xf32> -> vector<8x17xf32>
    %468 = vector.extract_strided_slice %467 {offsets = [0, 0], sizes = [8, 16], strides = [1, 1]} : vector<8x17xf32> to vector<8x16xf32>
    %469 = vector.extract_strided_slice %467 {offsets = [0, 16], sizes = [8, 1], strides = [1, 1]} : vector<8x17xf32> to vector<8x1xf32>
    %470 = tpu.reciprocal %469 : vector<8x1xf32> -> vector<8x1xf32>
    %471 = vector.broadcast %470 : vector<8x1xf32> to vector<8x16xf32>
    %472 = arith.mulf %468, %471 : vector<8x16xf32>
    %473 = vector.extract_strided_slice %414 {offsets = [0, 2], sizes = [8, 1], strides = [1, 1]} : vector<8x4xf32> to vector<8x1xf32>
    %474 = vector.extract_strided_slice %415 {offsets = [2, 0], sizes = [1, 8], strides = [1, 1]} : vector<4x8xf32> to vector<1x8xf32>
    %475 = vector.broadcast %473 : vector<8x1xf32> to vector<8x8xf32>
    %476 = vector.broadcast %474 : vector<1x8xf32> to vector<8x8xf32>
    %477 = arith.addf %475, %476 : vector<8x8xf32>
    %cst_92 = arith.constant 2.000000e-01 : f32
    %478 = vector.broadcast %cst_92 : f32 to vector<8x8xf32>
    %479 = arith.mulf %478, %477 : vector<8x8xf32>
    %480 = arith.maximumf %477, %479 : vector<8x8xf32>
    %481 = vector.extract_strided_slice %417 {offsets = [2, 0], sizes = [1, 1], strides = [1, 1]} : vector<4x1xf32> to vector<1x1xf32>
    %482 = vector.broadcast %481 : vector<1x1xf32> to vector<8x1xf32>
    %483 = arith.addf %473, %482 : vector<8x1xf32>
    %cst_93 = arith.constant 2.000000e-01 : f32
    %484 = vector.broadcast %cst_93 : f32 to vector<8x1xf32>
    %485 = arith.mulf %484, %483 : vector<8x1xf32>
    %486 = arith.maximumf %483, %485 : vector<8x1xf32>
    %487 = vector.broadcast %486 : vector<8x1xf32> to vector<8x8xf32>
    %488 = arith.subf %480, %487 : vector<8x8xf32>
    %489 = arith.addf %488, %7 : vector<8x8xf32>
    %490 = math.exp %489 : vector<8x8xf32>
    %491 = vector.extract_strided_slice %411 {offsets = [0, 32], sizes = [8, 16], strides = [1, 1]} : vector<8x64xbf16> to vector<8x16xbf16>
    %492 = tpu.concatenate %491, %418 in 1 : vector<8x16xbf16>, vector<8x1xbf16> -> vector<8x17xbf16>
    %493 = arith.truncf %490 : vector<8x8xf32> to vector<8x8xbf16>
    %cst_94 = arith.constant dense<0.000000e+00> : vector<8x17xf32>
    %494 = tpu.matmul %493, %492, %cst_94 {dimension_numbers = #tpu.dot_dimension_numbers<[1], [0], [0], [1], [0, 0, 1, 1], [], []>} : vector<8x8xbf16>, vector<8x17xbf16>, vector<8x17xf32> -> vector<8x17xf32>
    %495 = vector.extract_strided_slice %494 {offsets = [0, 0], sizes = [8, 16], strides = [1, 1]} : vector<8x17xf32> to vector<8x16xf32>
    %496 = vector.extract_strided_slice %494 {offsets = [0, 16], sizes = [8, 1], strides = [1, 1]} : vector<8x17xf32> to vector<8x1xf32>
    %497 = tpu.reciprocal %496 : vector<8x1xf32> -> vector<8x1xf32>
    %498 = vector.broadcast %497 : vector<8x1xf32> to vector<8x16xf32>
    %499 = arith.mulf %495, %498 : vector<8x16xf32>
    %500 = vector.extract_strided_slice %414 {offsets = [0, 3], sizes = [8, 1], strides = [1, 1]} : vector<8x4xf32> to vector<8x1xf32>
    %501 = vector.extract_strided_slice %415 {offsets = [3, 0], sizes = [1, 8], strides = [1, 1]} : vector<4x8xf32> to vector<1x8xf32>
    %502 = vector.broadcast %500 : vector<8x1xf32> to vector<8x8xf32>
    %503 = vector.broadcast %501 : vector<1x8xf32> to vector<8x8xf32>
    %504 = arith.addf %502, %503 : vector<8x8xf32>
    %cst_95 = arith.constant 2.000000e-01 : f32
    %505 = vector.broadcast %cst_95 : f32 to vector<8x8xf32>
    %506 = arith.mulf %505, %504 : vector<8x8xf32>
    %507 = arith.maximumf %504, %506 : vector<8x8xf32>
    %508 = vector.extract_strided_slice %417 {offsets = [3, 0], sizes = [1, 1], strides = [1, 1]} : vector<4x1xf32> to vector<1x1xf32>
    %509 = vector.broadcast %508 : vector<1x1xf32> to vector<8x1xf32>
    %510 = arith.addf %500, %509 : vector<8x1xf32>
    %cst_96 = arith.constant 2.000000e-01 : f32
    %511 = vector.broadcast %cst_96 : f32 to vector<8x1xf32>
    %512 = arith.mulf %511, %510 : vector<8x1xf32>
    %513 = arith.maximumf %510, %512 : vector<8x1xf32>
    %514 = vector.broadcast %513 : vector<8x1xf32> to vector<8x8xf32>
    %515 = arith.subf %507, %514 : vector<8x8xf32>
    %516 = arith.addf %515, %7 : vector<8x8xf32>
    %517 = math.exp %516 : vector<8x8xf32>
    %518 = vector.extract_strided_slice %411 {offsets = [0, 48], sizes = [8, 16], strides = [1, 1]} : vector<8x64xbf16> to vector<8x16xbf16>
    %519 = tpu.concatenate %518, %418 in 1 : vector<8x16xbf16>, vector<8x1xbf16> -> vector<8x17xbf16>
    %520 = arith.truncf %517 : vector<8x8xf32> to vector<8x8xbf16>
    %cst_97 = arith.constant dense<0.000000e+00> : vector<8x17xf32>
    %521 = tpu.matmul %520, %519, %cst_97 {dimension_numbers = #tpu.dot_dimension_numbers<[1], [0], [0], [1], [0, 0, 1, 1], [], []>} : vector<8x8xbf16>, vector<8x17xbf16>, vector<8x17xf32> -> vector<8x17xf32>
    %522 = vector.extract_strided_slice %521 {offsets = [0, 0], sizes = [8, 16], strides = [1, 1]} : vector<8x17xf32> to vector<8x16xf32>
    %523 = vector.extract_strided_slice %521 {offsets = [0, 16], sizes = [8, 1], strides = [1, 1]} : vector<8x17xf32> to vector<8x1xf32>
    %524 = tpu.reciprocal %523 : vector<8x1xf32> -> vector<8x1xf32>
    %525 = vector.broadcast %524 : vector<8x1xf32> to vector<8x16xf32>
    %526 = arith.mulf %522, %525 : vector<8x16xf32>
    %527 = arith.addf %445, %472 : vector<8x16xf32>
    %528 = arith.addf %527, %499 : vector<8x16xf32>
    %529 = arith.addf %528, %526 : vector<8x16xf32>
    %cst_98 = arith.constant 2.500000e-01 : f32
    %530 = vector.broadcast %cst_98 : f32 to vector<8x16xf32>
    %531 = arith.mulf %529, %530 : vector<8x16xf32>
    %532 = vector.broadcast %407 : vector<1x16xf32> to vector<8x16xf32>
    %533 = arith.addf %531, %532 : vector<8x16xf32>
    %cst_99 = arith.constant 0.000000e+00 : f32
    %534 = vector.broadcast %cst_99 : f32 to vector<8x112xf32>
    %535 = tpu.concatenate %533, %534 in 1 : vector<8x16xf32>, vector<8x112xf32> -> vector<8x128xf32>
    %c0_100 = arith.constant 0 : index
    %c0_101 = arith.constant 0 : index
    %536 = vector.load %arg3[%c0_100, %c0_101] : memref<8x128xf32, #tpu.memory_space<vmem>>, vector<8x128xf32>
    tpu.vector_store %arg3[%c0_100, %c0_101], %535 {strides = array<i32>} : memref<8x128xf32, #tpu.memory_space<vmem>>, vector<8x128xf32>,
    return
  }
}

</mosaic_0001>

<llo_original>
// kernel: tpu_custom_call.1
$region0: #{tpu_custom_call.1}
  #allocation0 [shape = 'u32[]', space=smem, size = 0x4, offset = 0x4, fixed_abs, tag = 'smem constant byte address 0x4 - core index']
  #allocation1 [shape = 'u32[144,128]{1,0:T(1,128)}', space=vmem, size = 0x12000, scoped, tag = 'internal scratch']
  %s0 = inlined_call_operand.hbm [shape: f32[8,16], index: 0, kind: input, shape index: {}]
  %s1 = inlined_call_operand.vmem [shape: s8[8,8], index: 1, kind: input, shape index: {}]
  %s2 = inlined_call_operand.hbm [shape: f32[416,128], index: 2, kind: input, shape index: {}]
  %s3 = inlined_call_operand.hbm [shape: f32[8,128], index: 3, kind: output, shape index: {}]
  %s4 = sld [smem:[#allocation0]]
  $region30: #{tpu_custom_call.1} parent=0
    _
  %s6 = ssub.s32 1, %s4
  %s7 = scalar_select 0, %s6, %s4
  $region1: #{tpu_custom_call.1} parent=0
    #allocation2 [shape = 'u8[4096]{0}', space=vmem, size = 0x1000, scoped, tag = 'input window, operand 0, single buffered']
    #allocation3 [shape = 's32[1]{0}', space=sflag, size = 0x4, scoped, tag = 'scoped memory for tpu_custom_call.1']
    #allocation4 [shape = 's32[1]{0}', space=sflag, size = 0x4, scoped, tag = 'scoped memory for tpu_custom_call.1']
    #allocation5 [shape = 'u8[212992]{0}', space=vmem, size = 0x34000, scoped, tag = 'input window, operand 2, single buffered']
    #allocation6 [shape = 's32[1]{0}', space=sflag, size = 0x4, scoped, tag = 'scoped memory for tpu_custom_call.1']
    #allocation7 [shape = 'u8[4096]{0}', space=vmem, size = 0x1000, scoped, tag = 'output window, operand 0, single buffered']
    %8 = vsyncpa [#allocation3], 0
    %9 = vsyncpa [#allocation6], 0
    %10 = vsyncpa [#allocation4], 0
    // Predicated region
    $region2: #{tpu_custom_call.1} parent=1 // pred_check
      _
    $region3: #{tpu_custom_call.1} parent=1 // pred_check_branch
      %12 = sbr.rel (0) target = $region5
    $region4: #{tpu_custom_call.1} parent=1 // pred_region
      %s14 = ssub.s32 128, 128
      %15 = vsyncadd [#allocation3], %s14
      %s17 = sshll.u32 [#allocation2], 4
      %s18 = int_to_ptr.vmem [resolvable:$true] %s17
      %20 = dma.hbm_to_vmem [thread:$0]  %s0, 128, %s18, [#allocation3]
    $region5: #{tpu_custom_call.1} parent=1 // pred_fallthru
      _
    // Predicated region
    $region6: #{tpu_custom_call.1} parent=1 // pred_check
      _
    $region7: #{tpu_custom_call.1} parent=1 // pred_check_branch
      %22 = sbr.rel (0) target = $region9
    $region8: #{tpu_custom_call.1} parent=1 // pred_region
      _
    $region9: #{tpu_custom_call.1} parent=1 // pred_fallthru
      _
    // Predicated region
    $region10: #{tpu_custom_call.1} parent=1 // pred_check
      _
    $region11: #{tpu_custom_call.1} parent=1 // pred_check_branch
      %24 = sbr.rel (0) target = $region13
    $region12: #{tpu_custom_call.1} parent=1 // pred_region
      %s26 = ssub.s32 6656, 6656
      %27 = vsyncadd [#allocation6], %s26
      %s28 = sshll.u32 [#allocation5], 4
      %s29 = int_to_ptr.vmem [resolvable:$true] %s28
      %34 = dma.hbm_to_vmem [thread:$0]  %s2, 6656, %s29, [#allocation6], 128, 128, 8
    $region13: #{tpu_custom_call.1} parent=1 // pred_fallthru
      _
    // Predicated region
    $region14: #{tpu_custom_call.1} parent=1 // pred_check
      _
    $region15: #{tpu_custom_call.1} parent=1 // pred_check_branch
      %36 = sbr.rel (0) target = $region17
    $region16: #{tpu_custom_call.1} parent=1 // pred_region
      %37 = dma.done [#allocation3], 128
    $region17: #{tpu_custom_call.1} parent=1 // pred_fallthru
      _
    // Predicated region
    $region18: #{tpu_custom_call.1} parent=1 // pred_check
      _
    $region19: #{tpu_custom_call.1} parent=1 // pred_check_branch
      %39 = sbr.rel (0) target = $region21
    $region20: #{tpu_custom_call.1} parent=1 // pred_region
      %40 = dma.done [#allocation6], 6656
    $region21: #{tpu_custom_call.1} parent=1 // pred_fallthru
      _
    %v43 = vld [vmem:[#allocation2] sm:$0xff]
    %v44 = vld [vmem:[%s1] sm:$0x3]
    %v45 = vunpack.c.0.s8 %v44
    %v46 = vcvt.s32.f32 %v45
    %vm47 = vcmp.gt.f32.partialorder %v46, 0.0
    %v48 = vsel %vm47, 0.0, -1e+30
    %v49 = vld [vmem:[#allocation5] sm:$0xff]
    %v50 = vld [vmem:[#allocation5 + $0x8] sm:$0xff]
    %v51 = vld [vmem:[#allocation5 + $0x10] sm:$0xf]
    %v52 = vld [vmem:[#allocation5 + $0x18] sm:$0xff]
    %v53 = vld [vmem:[#allocation5 + $0x20] sm:$0xff]
    %v54 = vld [vmem:[#allocation5 + $0x28] sm:$0xff]
    %v55 = vld [vmem:[#allocation5 + $0x30] sm:$0xff]
    %v56 = vld [vmem:[#allocation5 + $0x38] sm:$0x1]
    %v57 = vpack.c.bf16 %v43, %v43
    %v58 = vpack.c.bf16 %v50, %v49
    %vm59 = vcmask 130048
    %v61 = vsel %vm59, %v57, 0
    %63 = vmatprep.subr.bf16.mxu0 0
    %64 = vmatpush1.bf16.msra.mxu0 %v58
    %65 = vmatprep.subr.bf16.mxu0 0
    %66 = vmatpush1.bf16.msra.mxu0 0
    %67 = vmatprep.subr.bf16.mxu0 0
    %68 = vmatpush1.bf16.msra.mxu0 0
    %69 = vmatprep.subr.bf16.mxu0 0
    %70 = vmatpush1.bf16.msra.mxu0 0
    %71 = vmatprep.subr.bf16.mxu0 0
    %72 = vmatpush1.bf16.msra.mxu0 0
    %73 = vmatprep.subr.bf16.mxu0 0
    %74 = vmatpush1.bf16.msra.mxu0 0
    %75 = vmatprep.subr.bf16.mxu0 0
    %76 = vmatpush1.bf16.msra.mxu0 0
    %77 = vmatprep.subr.bf16.mxu0 0
    %78 = vmatpush1.bf16.msra.mxu0 0
    %79 = vmatprep.subr.bf16.mxu0 0
    %80 = vmatpush1.bf16.msra.mxu0 0
    %81 = vmatprep.subr.bf16.mxu0 0
    %82 = vmatpush1.bf16.msra.mxu0 0
    %83 = vmatprep.subr.bf16.mxu0 0
    %84 = vmatpush1.bf16.msra.mxu0 0
    %85 = vmatprep.subr.bf16.mxu0 0
    %86 = vmatpush1.bf16.msra.mxu0 0
    %87 = vmatprep.subr.bf16.mxu0 0
    %88 = vmatpush1.bf16.msra.mxu0 0
    %89 = vmatprep.subr.bf16.mxu0 0
    %90 = vmatpush1.bf16.msra.mxu0 0
    %91 = vmatprep.subr.bf16.mxu0 0
    %92 = vmatpush1.bf16.msra.mxu0 0
    %93 = vmatprep.subr.bf16.mxu0 0
    %94 = vmatpush1.bf16.msra.mxu0 0
    %95 = vmatprep.mubr.bf16.mxu0 0
    %96 = vmatmul.mubr.bf16.gmra.mrb[0].mxu0 %v61
    %v97 = vpop.f32.mrb[0].mxu0
    %v98 = vadd.f32 0.0, %v97
    %v99 = vpop.f32.mrb[0].mxu0
    %v100 = vpop.f32.mrb[0].mxu0
    %v101 = vpop.f32.mrb[0].mxu0
    %102 = vdwg.mxu0
    %v103 = vpack.c.bf16 %v98, %v98
    %v104 = vpack.c.bf16 %v53, %v52
    %v105 = vpack.c.bf16 %v55, %v54
    %v106 = vpack.c.bf16 %v51, %v51
    %vm107 = vcmask 261120
    %v109 = vsel %vm107, %v103, 0
    %111 = vmatprep.subr.bf16.mxu0 0
    %112 = vmatpush1.bf16.msra.mxu0 %v104
    %113 = vmatprep.subr.bf16.mxu0 0
    %114 = vmatpush1.bf16.msra.mxu0 %v105
    %115 = vmatprep.subr.bf16.mxu0 0
    %116 = vmatpush1.bf16.msra.mxu0 0
    %117 = vmatprep.subr.bf16.mxu0 0
    %118 = vmatpush1.bf16.msra.mxu0 0
    %119 = vmatprep.subr.bf16.mxu0 0
    %120 = vmatpush1.bf16.msra.mxu0 0
    %121 = vmatprep.subr.bf16.mxu0 0
    %122 = vmatpush1.bf16.msra.mxu0 0
    %123 = vmatprep.subr.bf16.mxu0 0
    %124 = vmatpush1.bf16.msra.mxu0 0
    %125 = vmatprep.subr.bf16.mxu0 0
    %126 = vmatpush1.bf16.msra.mxu0 0
    %127 = vmatprep.subr.bf16.mxu0 0
    %128 = vmatpush1.bf16.msra.mxu0 0
    %129 = vmatprep.subr.bf16.mxu0 0
    %130 = vmatpush1.bf16.msra.mxu0 0
    %131 = vmatprep.subr.bf16.mxu0 0
    %132 = vmatpush1.bf16.msra.mxu0 0
    %133 = vmatprep.subr.bf16.mxu0 0
    %134 = vmatpush1.bf16.msra.mxu0 0
    %135 = vmatprep.subr.bf16.mxu0 0
    %136 = vmatpush1.bf16.msra.mxu0 0
    %137 = vmatprep.subr.bf16.mxu0 0
    %138 = vmatpush1.bf16.msra.mxu0 0
    %139 = vmatprep.subr.bf16.mxu0 0
    %140 = vmatpush1.bf16.msra.mxu0 0
    %141 = vmatprep.subr.bf16.mxu0 0
    %142 = vmatpush1.bf16.msra.mxu0 0
    %143 = vmatprep.mubr.bf16.mxu0 0
    %144 = vmatmul.mubr.bf16.gmra.mrb[0].mxu0 %v109
    %v145 = vpop.f32.mrb[0].mxu0
    %v146 = vadd.f32 0.0, %v145
    %v147 = vpop.f32.mrb[0].mxu0
    %v148 = vpop.f32.mrb[0].mxu0
    %v149 = vpop.f32.mrb[0].mxu0
    %150 = vdwg.mxu0
    %v152 = vsel %vm107, %v106, 0
    %154 = vmatprep.subr.bf16.mxu0 0
    %155 = vmatpush1.bf16.xpose.msra.mxu0 %v109
    %156 = vmatprep.subr.bf16.mxu0 0
    %157 = vmatpush1.bf16.xpose.msra.mxu0 0
    %158 = vmatprep.subr.bf16.mxu0 0
    %159 = vmatpush1.bf16.xpose.msra.mxu0 0
    %160 = vmatprep.subr.bf16.mxu0 0
    %161 = vmatpush1.bf16.xpose.msra.mxu0 0
    %162 = vmatprep.subr.bf16.mxu0 0
    %163 = vmatpush1.bf16.xpose.msra.mxu0 0
    %164 = vmatprep.subr.bf16.mxu0 0
    %165 = vmatpush1.bf16.xpose.msra.mxu0 0
    %166 = vmatprep.subr.bf16.mxu0 0
    %167 = vmatpush1.bf16.xpose.msra.mxu0 0
    %168 = vmatprep.subr.bf16.mxu0 0
    %169 = vmatpush1.bf16.xpose.msra.mxu0 0
    %170 = vmatprep.subr.bf16.mxu0 0
    %171 = vmatpush1.bf16.xpose.msra.mxu0 0
    %172 = vmatprep.subr.bf16.mxu0 0
    %173 = vmatpush1.bf16.xpose.msra.mxu0 0
    %174 = vmatprep.subr.bf16.mxu0 0
    %175 = vmatpush1.bf16.xpose.msra.mxu0 0
    %176 = vmatprep.subr.bf16.mxu0 0
    %177 = vmatpush1.bf16.xpose.msra.mxu0 0
    %178 = vmatprep.subr.bf16.mxu0 0
    %179 = vmatpush1.bf16.xpose.msra.mxu0 0
    %180 = vmatprep.subr.bf16.mxu0 0
    %181 = vmatpush1.bf16.xpose.msra.mxu0 0
    %182 = vmatprep.subr.bf16.mxu0 0
    %183 = vmatpush1.bf16.xpose.msra.mxu0 0
    %184 = vmatprep.subr.bf16.mxu0 0
    %185 = vmatpush1.bf16.xpose.msra.mxu0 0
    %186 = vmatprep.mubr.bf16.mxu0 0
    %187 = vmatmul.mubr.bf16.gmra.mrb[0].mxu0 %v152
    %v188 = vpop.f32.mrb[0].mxu0
    %v189 = vadd.f32 0.0, %v188
    %v190 = vpop.f32.mrb[0].mxu0
    %v191 = vpop.f32.mrb[0].mxu0
    %v192 = vpop.f32.mrb[0].mxu0
    %193 = vdwg.mxu0
    %vm194 = vcmask 60416
    %v195 = vsel %vm194, %v189, -inf
    %196 = vmax.xlane.f32.xlu0 %v195
    %v197 = vpop.xlane.xlu0 %196
    %199 = vset.pattern.permute.xlu0 0
    %200 = vperm.xlu0 %199, %v146
    %v201 = vpop.permute.xlu0 %200
    %v203 = vlaneseq
    %v204 = vshrl.u32 %v203, 7
    %v205 = vsub.s32 0, %v204
    %v206 = vrot.slane %v189, %v205
    %v207 = vadd.f32 %v201, %v206
    %v208 = vmul.f32 %v207, 0.2
    %v209 = vmax.f32 %v207, %v208
    %v210 = vlaneseq
    %v211 = vshrl.u32 %v210, 7
    %v212 = vsub.s32 0, %v211
    %v213 = vrot.slane %v197, %v212
    %v214 = vadd.f32 %v146, %v213
    %v215 = vmul.f32 %v214, 0.2
    %v216 = vmax.f32 %v214, %v215
    %218 = vset.pattern.permute.xlu0 0
    %219 = vperm.xlu0 %218, %v216
    %v220 = vpop.permute.xlu0 %219
    %v222 = vsub.f32 %v209, %v220
    %v223 = vadd.f32 %v222, %v48
    %v224 = vmul.f32 %v223, 1.442695
    %v225 = vpow.pop %v224
    %vm226 = vcmask 64512
    %v228 = vsel %vm226, %v103, 1065369472
    %v229 = vpack.c.bf16 %v225, %v225
    %v231 = vsel %vm226, %v229, 0
    %vm233 = vcmask 1043456
    %v234 = vsel %vm233, %v228, 0
    %236 = vmatprep.subr.bf16.mxu0 0
    %237 = vmatpush1.bf16.msra.mxu0 %v234
    %238 = vmatprep.subr.bf16.mxu0 0
    %239 = vmatpush1.bf16.msra.mxu0 0
    %240 = vmatprep.subr.bf16.mxu0 0
    %241 = vmatpush1.bf16.msra.mxu0 0
    %242 = vmatprep.subr.bf16.mxu0 0
    %243 = vmatpush1.bf16.msra.mxu0 0
    %244 = vmatprep.subr.bf16.mxu0 0
    %245 = vmatpush1.bf16.msra.mxu0 0
    %246 = vmatprep.subr.bf16.mxu0 0
    %247 = vmatpush1.bf16.msra.mxu0 0
    %248 = vmatprep.subr.bf16.mxu0 0
    %249 = vmatpush1.bf16.msra.mxu0 0
    %250 = vmatprep.subr.bf16.mxu0 0
    %251 = vmatpush1.bf16.msra.mxu0 0
    %252 = vmatprep.subr.bf16.mxu0 0
    %253 = vmatpush1.bf16.msra.mxu0 0
    %254 = vmatprep.subr.bf16.mxu0 0
    %255 = vmatpush1.bf16.msra.mxu0 0
    %256 = vmatprep.subr.bf16.mxu0 0
    %257 = vmatpush1.bf16.msra.mxu0 0
    %258 = vmatprep.subr.bf16.mxu0 0
    %259 = vmatpush1.bf16.msra.mxu0 0
    %260 = vmatprep.subr.bf16.mxu0 0
    %261 = vmatpush1.bf16.msra.mxu0 0
    %262 = vmatprep.subr.bf16.mxu0 0
    %263 = vmatpush1.bf16.msra.mxu0 0
    %264 = vmatprep.subr.bf16.mxu0 0
    %265 = vmatpush1.bf16.msra.mxu0 0
    %266 = vmatprep.subr.bf16.mxu0 0
    %267 = vmatpush1.bf16.msra.mxu0 0
    %268 = vmatprep.mubr.bf16.mxu0 0
    %269 = vmatmul.mubr.bf16.gmra.mrb[0].mxu0 %v231
    %v270 = vpop.f32.mrb[0].mxu0
    %v271 = vadd.f32 0.0, %v270
    %v272 = vpop.f32.mrb[0].mxu0
    %v273 = vpop.f32.mrb[0].mxu0
    %v274 = vpop.f32.mrb[0].mxu0
    %275 = vdwg.mxu0
    %v276 = vrcp.pop %v271
    %278 = vset.pattern.permute.xlu0 8
    %279 = vperm.xlu0 %278, %v276
    %v280 = vpop.permute.xlu0 %279
    %v282 = vmul.f32 %v271, %v280
    %283 = vset.pattern.permute.xlu0 1
    %284 = vperm.xlu0 %283, %v146
    %v285 = vpop.permute.xlu0 %284
    %v287 = vlaneseq
    %v288 = vshrl.u32 %v287, 7
    %v289 = vsub.s32 1, %v288
    %v290 = vrot.slane %v189, %v289
    %v291 = vadd.f32 %v285, %v290
    %v292 = vmul.f32 %v291, 0.2
    %v293 = vmax.f32 %v291, %v292
    %v294 = vlaneseq
    %v295 = vshrl.u32 %v294, 7
    %v296 = vsub.s32 1, %v295
    %v297 = vrot.slane %v197, %v296
    %v298 = vadd.f32 %v146, %v297
    %v299 = vmul.f32 %v298, 0.2
    %v300 = vmax.f32 %v298, %v299
    %302 = vset.pattern.permute.xlu0 1
    %303 = vperm.xlu0 %302, %v300
    %v304 = vpop.permute.xlu0 %303
    %v306 = vsub.f32 %v293, %v304
    %v307 = vadd.f32 %v306, %v48
    %v308 = vmul.f32 %v307, 1.442695
    %v309 = vpow.pop %v308
    %311 = vrot.lane.b32.xlu0 %v103, 120
    %v312 = vpop.permute.xlu0 %311
    %v314 = vsel %vm226, %v312, 1065369472
    %v315 = vpack.c.bf16 %v309, %v309
    %v317 = vsel %vm226, %v315, 0
    %v319 = vsel %vm233, %v314, 0
    %321 = vmatprep.subr.bf16.mxu0 0
    %322 = vmatpush1.bf16.msra.mxu0 %v319
    %323 = vmatprep.subr.bf16.mxu0 0
    %324 = vmatpush1.bf16.msra.mxu0 0
    %325 = vmatprep.subr.bf16.mxu0 0
    %326 = vmatpush1.bf16.msra.mxu0 0
    %327 = vmatprep.subr.bf16.mxu0 0
    %328 = vmatpush1.bf16.msra.mxu0 0
    %329 = vmatprep.subr.bf16.mxu0 0
    %330 = vmatpush1.bf16.msra.mxu0 0
    %331 = vmatprep.subr.bf16.mxu0 0
    %332 = vmatpush1.bf16.msra.mxu0 0
    %333 = vmatprep.subr.bf16.mxu0 0
    %334 = vmatpush1.bf16.msra.mxu0 0
    %335 = vmatprep.subr.bf16.mxu0 0
    %336 = vmatpush1.bf16.msra.mxu0 0
    %337 = vmatprep.subr.bf16.mxu0 0
    %338 = vmatpush1.bf16.msra.mxu0 0
    %339 = vmatprep.subr.bf16.mxu0 0
    %340 = vmatpush1.bf16.msra.mxu0 0
    %341 = vmatprep.subr.bf16.mxu0 0
    %342 = vmatpush1.bf16.msra.mxu0 0
    %343 = vmatprep.subr.bf16.mxu0 0
    %344 = vmatpush1.bf16.msra.mxu0 0
    %345 = vmatprep.subr.bf16.mxu0 0
    %346 = vmatpush1.bf16.msra.mxu0 0
    %347 = vmatprep.subr.bf16.mxu0 0
    %348 = vmatpush1.bf16.msra.mxu0 0
    %349 = vmatprep.subr.bf16.mxu0 0
    %350 = vmatpush1.bf16.msra.mxu0 0
    %351 = vmatprep.subr.bf16.mxu0 0
    %352 = vmatpush1.bf16.msra.mxu0 0
    %353 = vmatprep.mubr.bf16.mxu0 0
    %354 = vmatmul.mubr.bf16.gmra.mrb[0].mxu0 %v317
    %v355 = vpop.f32.mrb[0].mxu0
    %v356 = vadd.f32 0.0, %v355
    %v357 = vpop.f32.mrb[0].mxu0
    %v358 = vpop.f32.mrb[0].mxu0
    %v359 = vpop.f32.mrb[0].mxu0
    %360 = vdwg.mxu0
    %v361 = vrcp.pop %v356
    %363 = vset.pattern.permute.xlu0 8
    %364 = vperm.xlu0 %363, %v361
    %v365 = vpop.permute.xlu0 %364
    %v367 = vmul.f32 %v356, %v365
    %368 = vset.pattern.permute.xlu0 2
    %369 = vperm.xlu0 %368, %v146
    %v370 = vpop.permute.xlu0 %369
    %v372 = vlaneseq
    %v373 = vshrl.u32 %v372, 7
    %v374 = vsub.s32 2, %v373
    %v375 = vrot.slane %v189, %v374
    %v376 = vadd.f32 %v370, %v375
    %v377 = vmul.f32 %v376, 0.2
    %v378 = vmax.f32 %v376, %v377
    %v379 = vlaneseq
    %v380 = vshrl.u32 %v379, 7
    %v381 = vsub.s32 2, %v380
    %v382 = vrot.slane %v197, %v381
    %v383 = vadd.f32 %v146, %v382
    %v384 = vmul.f32 %v383, 0.2
    %v385 = vmax.f32 %v383, %v384
    %387 = vset.pattern.permute.xlu0 2
    %388 = vperm.xlu0 %387, %v385
    %v389 = vpop.permute.xlu0 %388
    %v391 = vsub.f32 %v378, %v389
    %v392 = vadd.f32 %v391, %v48
    %v393 = vmul.f32 %v392, 1.442695
    %v394 = vpow.pop %v393
    %395 = vrot.lane.b32.xlu0 %v103, 112
    %v396 = vpop.permute.xlu0 %395
    %v398 = vsel %vm226, %v396, 1065369472
    %v399 = vpack.c.bf16 %v394, %v394
    %v401 = vsel %vm226, %v399, 0
    %v403 = vsel %vm233, %v398, 0
    %405 = vmatprep.subr.bf16.mxu0 0
    %406 = vmatpush1.bf16.msra.mxu0 %v403
    %407 = vmatprep.subr.bf16.mxu0 0
    %408 = vmatpush1.bf16.msra.mxu0 0
    %409 = vmatprep.subr.bf16.mxu0 0
    %410 = vmatpush1.bf16.msra.mxu0 0
    %411 = vmatprep.subr.bf16.mxu0 0
    %412 = vmatpush1.bf16.msra.mxu0 0
    %413 = vmatprep.subr.bf16.mxu0 0
    %414 = vmatpush1.bf16.msra.mxu0 0
    %415 = vmatprep.subr.bf16.mxu0 0
    %416 = vmatpush1.bf16.msra.mxu0 0
    %417 = vmatprep.subr.bf16.mxu0 0
    %418 = vmatpush1.bf16.msra.mxu0 0
    %419 = vmatprep.subr.bf16.mxu0 0
    %420 = vmatpush1.bf16.msra.mxu0 0
    %421 = vmatprep.subr.bf16.mxu0 0
    %422 = vmatpush1.bf16.msra.mxu0 0
    %423 = vmatprep.subr.bf16.mxu0 0
    %424 = vmatpush1.bf16.msra.mxu0 0
    %425 = vmatprep.subr.bf16.mxu0 0
    %426 = vmatpush1.bf16.msra.mxu0 0
    %427 = vmatprep.subr.bf16.mxu0 0
    %428 = vmatpush1.bf16.msra.mxu0 0
    %429 = vmatprep.subr.bf16.mxu0 0
    %430 = vmatpush1.bf16.msra.mxu0 0
    %431 = vmatprep.subr.bf16.mxu0 0
    %432 = vmatpush1.bf16.msra.mxu0 0
    %433 = vmatprep.subr.bf16.mxu0 0
    %434 = vmatpush1.bf16.msra.mxu0 0
    %435 = vmatprep.subr.bf16.mxu0 0
    %436 = vmatpush1.bf16.msra.mxu0 0
    %437 = vmatprep.mubr.bf16.mxu0 0
    %438 = vmatmul.mubr.bf16.gmra.mrb[0].mxu0 %v401
    %v439 = vpop.f32.mrb[0].mxu0
    %v440 = vadd.f32 0.0, %v439
    %v441 = vpop.f32.mrb[0].mxu0
    %v442 = vpop.f32.mrb[0].mxu0
    %v443 = vpop.f32.mrb[0].mxu0
    %444 = vdwg.mxu0
    %v445 = vrcp.pop %v440
    %447 = vset.pattern.permute.xlu0 8
    %448 = vperm.xlu0 %447, %v445
    %v449 = vpop.permute.xlu0 %448
    %v451 = vmul.f32 %v440, %v449
    %452 = vset.pattern.permute.xlu0 3
    %453 = vperm.xlu0 %452, %v146
    %v454 = vpop.permute.xlu0 %453
    %v456 = vlaneseq
    %v457 = vshrl.u32 %v456, 7
    %v458 = vsub.s32 3, %v457
    %v459 = vrot.slane %v189, %v458
    %v460 = vadd.f32 %v454, %v459
    %v461 = vmul.f32 %v460, 0.2
    %v462 = vmax.f32 %v460, %v461
    %v463 = vlaneseq
    %v464 = vshrl.u32 %v463, 7
    %v465 = vsub.s32 3, %v464
    %v466 = vrot.slane %v197, %v465
    %v467 = vadd.f32 %v146, %v466
    %v468 = vmul.f32 %v467, 0.2
    %v469 = vmax.f32 %v467, %v468
    %471 = vset.pattern.permute.xlu0 3
    %472 = vperm.xlu0 %471, %v469
    %v473 = vpop.permute.xlu0 %472
    %v475 = vsub.f32 %v462, %v473
    %v476 = vadd.f32 %v475, %v48
    %v477 = vmul.f32 %v476, 1.442695
    %v478 = vpow.pop %v477
    %479 = vrot.lane.b32.xlu0 %v103, 104
    %v480 = vpop.permute.xlu0 %479
    %v482 = vsel %vm226, %v480, 1065369472
    %v483 = vpack.c.bf16 %v478, %v478
    %v485 = vsel %vm226, %v483, 0
    %v487 = vsel %vm233, %v482, 0
    %489 = vmatprep.subr.bf16.mxu0 0
    %490 = vmatpush1.bf16.msra.mxu0 %v487
    %491 = vmatprep.subr.bf16.mxu0 0
    %492 = vmatpush1.bf16.msra.mxu0 0
    %493 = vmatprep.subr.bf16.mxu0 0
    %494 = vmatpush1.bf16.msra.mxu0 0
    %495 = vmatprep.subr.bf16.mxu0 0
    %496 = vmatpush1.bf16.msra.mxu0 0
    %497 = vmatprep.subr.bf16.mxu0 0
    %498 = vmatpush1.bf16.msra.mxu0 0
    %499 = vmatprep.subr.bf16.mxu0 0
    %500 = vmatpush1.bf16.msra.mxu0 0
    %501 = vmatprep.subr.bf16.mxu0 0
    %502 = vmatpush1.bf16.msra.mxu0 0
    %503 = vmatprep.subr.bf16.mxu0 0
    %504 = vmatpush1.bf16.msra.mxu0 0
    %505 = vmatprep.subr.bf16.mxu0 0
    %506 = vmatpush1.bf16.msra.mxu0 0
    %507 = vmatprep.subr.bf16.mxu0 0
    %508 = vmatpush1.bf16.msra.mxu0 0
    %509 = vmatprep.subr.bf16.mxu0 0
    %510 = vmatpush1.bf16.msra.mxu0 0
    %511 = vmatprep.subr.bf16.mxu0 0
    %512 = vmatpush1.bf16.msra.mxu0 0
    %513 = vmatprep.subr.bf16.mxu0 0
    %514 = vmatpush1.bf16.msra.mxu0 0
    %515 = vmatprep.subr.bf16.mxu0 0
    %516 = vmatpush1.bf16.msra.mxu0 0
    %517 = vmatprep.subr.bf16.mxu0 0
    %518 = vmatpush1.bf16.msra.mxu0 0
    %519 = vmatprep.subr.bf16.mxu0 0
    %520 = vmatpush1.bf16.msra.mxu0 0
    %521 = vmatprep.mubr.bf16.mxu0 0
    %522 = vmatmul.mubr.bf16.gmra.mrb[0].mxu0 %v485
    %v523 = vpop.f32.mrb[0].mxu0
    %v524 = vadd.f32 0.0, %v523
    %v525 = vpop.f32.mrb[0].mxu0
    %v526 = vpop.f32.mrb[0].mxu0
    %v527 = vpop.f32.mrb[0].mxu0
    %528 = vdwg.mxu0
    %v529 = vrcp.pop %v524
    %531 = vset.pattern.permute.xlu0 8
    %532 = vperm.xlu0 %531, %v529
    %v533 = vpop.permute.xlu0 %532
    %v535 = vmul.f32 %v524, %v533
    %537 = vrot.lane.b32.xlu0 %v367, 8
    %v538 = vpop.permute.xlu0 %537
    %541 = vrot.lane.b32.xlu0 %v451, 16
    %v542 = vpop.permute.xlu0 %541
    %545 = vrot.lane.b32.xlu0 %v535, 24
    %v546 = vpop.permute.xlu0 %545
    %v548 = vsel %vm226, %v282, %v538
    %v549 = vsel %vm59, %v548, %v542
    %vm550 = vcmask 195584
    %v551 = vsel %vm550, %v549, %v546
    %v552 = vlaneseq
    %v553 = vshrl.u32 %v552, 7
    %v554 = vsub.s32 0, %v553
    %v555 = vrot.slane %v56, %v554
    %v556 = vadd.f32 %v551, %v555
    %v557 = vld [vmem:[#allocation5 + $0x40] sm:$0xff]
    %v558 = vld [vmem:[#allocation5 + $0x48] sm:$0xff]
    %v559 = vld [vmem:[#allocation5 + $0x50] sm:$0xff]
    %v560 = vld [vmem:[#allocation5 + $0x58] sm:$0xff]
    %v561 = vld [vmem:[#allocation5 + $0x60] sm:$0xf]
    %v562 = vld [vmem:[#allocation5 + $0x68] sm:$0xff]
    %v563 = vld [vmem:[#allocation5 + $0x70] sm:$0xff]
    %v564 = vld [vmem:[#allocation5 + $0x78] sm:$0xff]
    %v565 = vld [vmem:[#allocation5 + $0x80] sm:$0xff]
    %v566 = vld [vmem:[#allocation5 + $0x88] sm:$0x1]
    %v567 = vpack.c.bf16 %v556, %v556
    %v568 = vpack.c.bf16 %v558, %v557
    %v569 = vpack.c.bf16 %v560, %v559
    %v571 = vsel %vm107, %v567, 0
    %573 = vmatprep.subr.bf16.mxu0 0
    %574 = vmatpush1.bf16.msra.mxu0 %v568
    %575 = vmatprep.subr.bf16.mxu0 0
    %576 = vmatpush1.bf16.msra.mxu0 %v569
    %577 = vmatprep.subr.bf16.mxu0 0
    %578 = vmatpush1.bf16.msra.mxu0 0
    %579 = vmatprep.subr.bf16.mxu0 0
    %580 = vmatpush1.bf16.msra.mxu0 0
    %581 = vmatprep.subr.bf16.mxu0 0
    %582 = vmatpush1.bf16.msra.mxu0 0
    %583 = vmatprep.subr.bf16.mxu0 0
    %584 = vmatpush1.bf16.msra.mxu0 0
    %585 = vmatprep.subr.bf16.mxu0 0
    %586 = vmatpush1.bf16.msra.mxu0 0
    %587 = vmatprep.subr.bf16.mxu0 0
    %588 = vmatpush1.bf16.msra.mxu0 0
    %589 = vmatprep.subr.bf16.mxu0 0
    %590 = vmatpush1.bf16.msra.mxu0 0
    %591 = vmatprep.subr.bf16.mxu0 0
    %592 = vmatpush1.bf16.msra.mxu0 0
    %593 = vmatprep.subr.bf16.mxu0 0
    %594 = vmatpush1.bf16.msra.mxu0 0
    %595 = vmatprep.subr.bf16.mxu0 0
    %596 = vmatpush1.bf16.msra.mxu0 0
    %597 = vmatprep.subr.bf16.mxu0 0
    %598 = vmatpush1.bf16.msra.mxu0 0
    %599 = vmatprep.subr.bf16.mxu0 0
    %600 = vmatpush1.bf16.msra.mxu0 0
    %601 = vmatprep.subr.bf16.mxu0 0
    %602 = vmatpush1.bf16.msra.mxu0 0
    %603 = vmatprep.subr.bf16.mxu0 0
    %604 = vmatpush1.bf16.msra.mxu0 0
    %605 = vmatprep.mubr.bf16.mxu0 0
    %606 = vmatmul.mubr.bf16.gmra.mrb[0].mxu0 %v571
    %v607 = vpop.f32.mrb[0].mxu0
    %v608 = vadd.f32 0.0, %v607
    %v609 = vpop.f32.mrb[0].mxu0
    %v610 = vpop.f32.mrb[0].mxu0
    %v611 = vpop.f32.mrb[0].mxu0
    %612 = vdwg.mxu0
    %v613 = vpack.c.bf16 %v608, %v608
    %v614 = vpack.c.bf16 %v563, %v562
    %v615 = vpack.c.bf16 %v565, %v564
    %v616 = vpack.c.bf16 %v561, %v561
    %v618 = vsel %vm107, %v613, 0
    %620 = vmatprep.subr.bf16.mxu0 0
    %621 = vmatpush1.bf16.msra.mxu0 %v614
    %622 = vmatprep.subr.bf16.mxu0 0
    %623 = vmatpush1.bf16.msra.mxu0 %v615
    %624 = vmatprep.subr.bf16.mxu0 0
    %625 = vmatpush1.bf16.msra.mxu0 0
    %626 = vmatprep.subr.bf16.mxu0 0
    %627 = vmatpush1.bf16.msra.mxu0 0
    %628 = vmatprep.subr.bf16.mxu0 0
    %629 = vmatpush1.bf16.msra.mxu0 0
    %630 = vmatprep.subr.bf16.mxu0 0
    %631 = vmatpush1.bf16.msra.mxu0 0
    %632 = vmatprep.subr.bf16.mxu0 0
    %633 = vmatpush1.bf16.msra.mxu0 0
    %634 = vmatprep.subr.bf16.mxu0 0
    %635 = vmatpush1.bf16.msra.mxu0 0
    %636 = vmatprep.subr.bf16.mxu0 0
    %637 = vmatpush1.bf16.msra.mxu0 0
    %638 = vmatprep.subr.bf16.mxu0 0
    %639 = vmatpush1.bf16.msra.mxu0 0
    %640 = vmatprep.subr.bf16.mxu0 0
    %641 = vmatpush1.bf16.msra.mxu0 0
    %642 = vmatprep.subr.bf16.mxu0 0
    %643 = vmatpush1.bf16.msra.mxu0 0
    %644 = vmatprep.subr.bf16.mxu0 0
    %645 = vmatpush1.bf16.msra.mxu0 0
    %646 = vmatprep.subr.bf16.mxu0 0
    %647 = vmatpush1.bf16.msra.mxu0 0
    %648 = vmatprep.subr.bf16.mxu0 0
    %649 = vmatpush1.bf16.msra.mxu0 0
    %650 = vmatprep.subr.bf16.mxu0 0
    %651 = vmatpush1.bf16.msra.mxu0 0
    %652 = vmatprep.mubr.bf16.mxu0 0
    %653 = vmatmul.mubr.bf16.gmra.mrb[0].mxu0 %v618
    %v654 = vpop.f32.mrb[0].mxu0
    %v655 = vadd.f32 0.0, %v654
    %v656 = vpop.f32.mrb[0].mxu0
    %v657 = vpop.f32.mrb[0].mxu0
    %v658 = vpop.f32.mrb[0].mxu0
    %659 = vdwg.mxu0
    %v661 = vsel %vm107, %v616, 0
    %663 = vmatprep.subr.bf16.mxu0 0
    %664 = vmatpush1.bf16.xpose.msra.mxu0 %v618
    %665 = vmatprep.subr.bf16.mxu0 0
    %666 = vmatpush1.bf16.xpose.msra.mxu0 0
    %667 = vmatprep.subr.bf16.mxu0 0
    %668 = vmatpush1.bf16.xpose.msra.mxu0 0
    %669 = vmatprep.subr.bf16.mxu0 0
    %670 = vmatpush1.bf16.xpose.msra.mxu0 0
    %671 = vmatprep.subr.bf16.mxu0 0
    %672 = vmatpush1.bf16.xpose.msra.mxu0 0
    %673 = vmatprep.subr.bf16.mxu0 0
    %674 = vmatpush1.bf16.xpose.msra.mxu0 0
    %675 = vmatprep.subr.bf16.mxu0 0
    %676 = vmatpush1.bf16.xpose.msra.mxu0 0
    %677 = vmatprep.subr.bf16.mxu0 0
    %678 = vmatpush1.bf16.xpose.msra.mxu0 0
    %679 = vmatprep.subr.bf16.mxu0 0
    %680 = vmatpush1.bf16.xpose.msra.mxu0 0
    %681 = vmatprep.subr.bf16.mxu0 0
    %682 = vmatpush1.bf16.xpose.msra.mxu0 0
    %683 = vmatprep.subr.bf16.mxu0 0
    %684 = vmatpush1.bf16.xpose.msra.mxu0 0
    %685 = vmatprep.subr.bf16.mxu0 0
    %686 = vmatpush1.bf16.xpose.msra.mxu0 0
    %687 = vmatprep.subr.bf16.mxu0 0
    %688 = vmatpush1.bf16.xpose.msra.mxu0 0
    %689 = vmatprep.subr.bf16.mxu0 0
    %690 = vmatpush1.bf16.xpose.msra.mxu0 0
    %691 = vmatprep.subr.bf16.mxu0 0
    %692 = vmatpush1.bf16.xpose.msra.mxu0 0
    %693 = vmatprep.subr.bf16.mxu0 0
    %694 = vmatpush1.bf16.xpose.msra.mxu0 0
    %695 = vmatprep.mubr.bf16.mxu0 0
    %696 = vmatmul.mubr.bf16.gmra.mrb[0].mxu0 %v661
    %v697 = vpop.f32.mrb[0].mxu0
    %v698 = vadd.f32 0.0, %v697
    %v699 = vpop.f32.mrb[0].mxu0
    %v700 = vpop.f32.mrb[0].mxu0
    %v701 = vpop.f32.mrb[0].mxu0
    %702 = vdwg.mxu0
    %v703 = vsel %vm194, %v698, -inf
    %704 = vmax.xlane.f32.xlu0 %v703
    %v705 = vpop.xlane.xlu0 %704
    %707 = vset.pattern.permute.xlu0 0
    %708 = vperm.xlu0 %707, %v655
    %v709 = vpop.permute.xlu0 %708
    %v711 = vlaneseq
    %v712 = vshrl.u32 %v711, 7
    %v713 = vsub.s32 0, %v712
    %v714 = vrot.slane %v698, %v713
    %v715 = vadd.f32 %v709, %v714
    %v716 = vmul.f32 %v715, 0.2
    %v717 = vmax.f32 %v715, %v716
    %v718 = vlaneseq
    %v719 = vshrl.u32 %v718, 7
    %v720 = vsub.s32 0, %v719
    %v721 = vrot.slane %v705, %v720
    %v722 = vadd.f32 %v655, %v721
    %v723 = vmul.f32 %v722, 0.2
    %v724 = vmax.f32 %v722, %v723
    %726 = vset.pattern.permute.xlu0 0
    %727 = vperm.xlu0 %726, %v724
    %v728 = vpop.permute.xlu0 %727
    %v730 = vsub.f32 %v717, %v728
    %v731 = vadd.f32 %v730, %v48
    %v732 = vmul.f32 %v731, 1.442695
    %v733 = vpow.pop %v732
    %v734 = vsel %vm226, %v613, 1065369472
    %v735 = vpack.c.bf16 %v733, %v733
    %v737 = vsel %vm226, %v735, 0
    %v739 = vsel %vm233, %v734, 0
    %741 = vmatprep.subr.bf16.mxu0 0
    %742 = vmatpush1.bf16.msra.mxu0 %v739
    %743 = vmatprep.subr.bf16.mxu0 0
    %744 = vmatpush1.bf16.msra.mxu0 0
    %745 = vmatprep.subr.bf16.mxu0 0
    %746 = vmatpush1.bf16.msra.mxu0 0
    %747 = vmatprep.subr.bf16.mxu0 0
    %748 = vmatpush1.bf16.msra.mxu0 0
    %749 = vmatprep.subr.bf16.mxu0 0
    %750 = vmatpush1.bf16.msra.mxu0 0
    %751 = vmatprep.subr.bf16.mxu0 0
    %752 = vmatpush1.bf16.msra.mxu0 0
    %753 = vmatprep.subr.bf16.mxu0 0
    %754 = vmatpush1.bf16.msra.mxu0 0
    %755 = vmatprep.subr.bf16.mxu0 0
    %756 = vmatpush1.bf16.msra.mxu0 0
    %757 = vmatprep.subr.bf16.mxu0 0
    %758 = vmatpush1.bf16.msra.mxu0 0
    %759 = vmatprep.subr.bf16.mxu0 0
    %760 = vmatpush1.bf16.msra.mxu0 0
    %761 = vmatprep.subr.bf16.mxu0 0
    %762 = vmatpush1.bf16.msra.mxu0 0
    %763 = vmatprep.subr.bf16.mxu0 0
    %764 = vmatpush1.bf16.msra.mxu0 0
    %765 = vmatprep.subr.bf16.mxu0 0
    %766 = vmatpush1.bf16.msra.mxu0 0
    %767 = vmatprep.subr.bf16.mxu0 0
    %768 = vmatpush1.bf16.msra.mxu0 0
    %769 = vmatprep.subr.bf16.mxu0 0
    %770 = vmatpush1.bf16.msra.mxu0 0
    %771 = vmatprep.subr.bf16.mxu0 0
    %772 = vmatpush1.bf16.msra.mxu0 0
    %773 = vmatprep.mubr.bf16.mxu0 0
    %774 = vmatmul.mubr.bf16.gmra.mrb[0].mxu0 %v737
    %v775 = vpop.f32.mrb[0].mxu0
    %v776 = vadd.f32 0.0, %v775
    %v777 = vpop.f32.mrb[0].mxu0
    %v778 = vpop.f32.mrb[0].mxu0
    %v779 = vpop.f32.mrb[0].mxu0
    %780 = vdwg.mxu0
    %v781 = vrcp.pop %v776
    %783 = vset.pattern.permute.xlu0 8
    %784 = vperm.xlu0 %783, %v781
    %v785 = vpop.permute.xlu0 %784
    %v787 = vmul.f32 %v776, %v785
    %788 = vset.pattern.permute.xlu0 1
    %789 = vperm.xlu0 %788, %v655
    %v790 = vpop.permute.xlu0 %789
    %v792 = vlaneseq
    %v793 = vshrl.u32 %v792, 7
    %v794 = vsub.s32 1, %v793
    %v795 = vrot.slane %v698, %v794
    %v796 = vadd.f32 %v790, %v795
    %v797 = vmul.f32 %v796, 0.2
    %v798 = vmax.f32 %v796, %v797
    %v799 = vlaneseq
    %v800 = vshrl.u32 %v799, 7
    %v801 = vsub.s32 1, %v800
    %v802 = vrot.slane %v705, %v801
    %v803 = vadd.f32 %v655, %v802
    %v804 = vmul.f32 %v803, 0.2
    %v805 = vmax.f32 %v803, %v804
    %807 = vset.pattern.permute.xlu0 1
    %808 = vperm.xlu0 %807, %v805
    %v809 = vpop.permute.xlu0 %808
    %v811 = vsub.f32 %v798, %v809
    %v812 = vadd.f32 %v811, %v48
    %v813 = vmul.f32 %v812, 1.442695
    %v814 = vpow.pop %v813
    %816 = vrot.lane.b32.xlu0 %v613, 120
    %v817 = vpop.permute.xlu0 %816
    %v819 = vsel %vm226, %v817, 1065369472
    %v820 = vpack.c.bf16 %v814, %v814
    %v822 = vsel %vm226, %v820, 0
    %v824 = vsel %vm233, %v819, 0
    %826 = vmatprep.subr.bf16.mxu0 0
    %827 = vmatpush1.bf16.msra.mxu0 %v824
    %828 = vmatprep.subr.bf16.mxu0 0
    %829 = vmatpush1.bf16.msra.mxu0 0
    %830 = vmatprep.subr.bf16.mxu0 0
    %831 = vmatpush1.bf16.msra.mxu0 0
    %832 = vmatprep.subr.bf16.mxu0 0
    %833 = vmatpush1.bf16.msra.mxu0 0
    %834 = vmatprep.subr.bf16.mxu0 0
    %835 = vmatpush1.bf16.msra.mxu0 0
    %836 = vmatprep.subr.bf16.mxu0 0
    %837 = vmatpush1.bf16.msra.mxu0 0
    %838 = vmatprep.subr.bf16.mxu0 0
    %839 = vmatpush1.bf16.msra.mxu0 0
    %840 = vmatprep.subr.bf16.mxu0 0
    %841 = vmatpush1.bf16.msra.mxu0 0
    %842 = vmatprep.subr.bf16.mxu0 0
    %843 = vmatpush1.bf16.msra.mxu0 0
    %844 = vmatprep.subr.bf16.mxu0 0
    %845 = vmatpush1.bf16.msra.mxu0 0
    %846 = vmatprep.subr.bf16.mxu0 0
    %847 = vmatpush1.bf16.msra.mxu0 0
    %848 = vmatprep.subr.bf16.mxu0 0
    %849 = vmatpush1.bf16.msra.mxu0 0
    %850 = vmatprep.subr.bf16.mxu0 0
    %851 = vmatpush1.bf16.msra.mxu0 0
    %852 = vmatprep.subr.bf16.mxu0 0
    %853 = vmatpush1.bf16.msra.mxu0 0
    %854 = vmatprep.subr.bf16.mxu0 0
    %855 = vmatpush1.bf16.msra.mxu0 0
    %856 = vmatprep.subr.bf16.mxu0 0
    %857 = vmatpush1.bf16.msra.mxu0 0
    %858 = vmatprep.mubr.bf16.mxu0 0
    %859 = vmatmul.mubr.bf16.gmra.mrb[0].mxu0 %v822
    %v860 = vpop.f32.mrb[0].mxu0
    %v861 = vadd.f32 0.0, %v860
    %v862 = vpop.f32.mrb[0].mxu0
    %v863 = vpop.f32.mrb[0].mxu0
    %v864 = vpop.f32.mrb[0].mxu0
    %865 = vdwg.mxu0
    %v866 = vrcp.pop %v861
    %868 = vset.pattern.permute.xlu0 8
    %869 = vperm.xlu0 %868, %v866
    %v870 = vpop.permute.xlu0 %869
    %v872 = vmul.f32 %v861, %v870
    %873 = vset.pattern.permute.xlu0 2
    %874 = vperm.xlu0 %873, %v655
    %v875 = vpop.permute.xlu0 %874
    %v877 = vlaneseq
    %v878 = vshrl.u32 %v877, 7
    %v879 = vsub.s32 2, %v878
    %v880 = vrot.slane %v698, %v879
    %v881 = vadd.f32 %v875, %v880
    %v882 = vmul.f32 %v881, 0.2
    %v883 = vmax.f32 %v881, %v882
    %v884 = vlaneseq
    %v885 = vshrl.u32 %v884, 7
    %v886 = vsub.s32 2, %v885
    %v887 = vrot.slane %v705, %v886
    %v888 = vadd.f32 %v655, %v887
    %v889 = vmul.f32 %v888, 0.2
    %v890 = vmax.f32 %v888, %v889
    %892 = vset.pattern.permute.xlu0 2
    %893 = vperm.xlu0 %892, %v890
    %v894 = vpop.permute.xlu0 %893
    %v896 = vsub.f32 %v883, %v894
    %v897 = vadd.f32 %v896, %v48
    %v898 = vmul.f32 %v897, 1.442695
    %v899 = vpow.pop %v898
    %900 = vrot.lane.b32.xlu0 %v613, 112
    %v901 = vpop.permute.xlu0 %900
    %v903 = vsel %vm226, %v901, 1065369472
    %v904 = vpack.c.bf16 %v899, %v899
    %v906 = vsel %vm226, %v904, 0
    %v908 = vsel %vm233, %v903, 0
    %910 = vmatprep.subr.bf16.mxu0 0
    %911 = vmatpush1.bf16.msra.mxu0 %v908
    %912 = vmatprep.subr.bf16.mxu0 0
    %913 = vmatpush1.bf16.msra.mxu0 0
    %914 = vmatprep.subr.bf16.mxu0 0
    %915 = vmatpush1.bf16.msra.mxu0 0
    %916 = vmatprep.subr.bf16.mxu0 0
    %917 = vmatpush1.bf16.msra.mxu0 0
    %918 = vmatprep.subr.bf16.mxu0 0
    %919 = vmatpush1.bf16.msra.mxu0 0
    %920 = vmatprep.subr.bf16.mxu0 0
    %921 = vmatpush1.bf16.msra.mxu0 0
    %922 = vmatprep.subr.bf16.mxu0 0
    %923 = vmatpush1.bf16.msra.mxu0 0
    %924 = vmatprep.subr.bf16.mxu0 0
    %925 = vmatpush1.bf16.msra.mxu0 0
    %926 = vmatprep.subr.bf16.mxu0 0
    %927 = vmatpush1.bf16.msra.mxu0 0
    %928 = vmatprep.subr.bf16.mxu0 0
    %929 = vmatpush1.bf16.msra.mxu0 0
    %930 = vmatprep.subr.bf16.mxu0 0
    %931 = vmatpush1.bf16.msra.mxu0 0
    %932 = vmatprep.subr.bf16.mxu0 0
    %933 = vmatpush1.bf16.msra.mxu0 0
    %934 = vmatprep.subr.bf16.mxu0 0
    %935 = vmatpush1.bf16.msra.mxu0 0
    %936 = vmatprep.subr.bf16.mxu0 0
    %937 = vmatpush1.bf16.msra.mxu0 0
    %938 = vmatprep.subr.bf16.mxu0 0
    %939 = vmatpush1.bf16.msra.mxu0 0
    %940 = vmatprep.subr.bf16.mxu0 0
    %941 = vmatpush1.bf16.msra.mxu0 0
    %942 = vmatprep.mubr.bf16.mxu0 0
    %943 = vmatmul.mubr.bf16.gmra.mrb[0].mxu0 %v906
    %v944 = vpop.f32.mrb[0].mxu0
    %v945 = vadd.f32 0.0, %v944
    %v946 = vpop.f32.mrb[0].mxu0
    %v947 = vpop.f32.mrb[0].mxu0
    %v948 = vpop.f32.mrb[0].mxu0
    %949 = vdwg.mxu0
    %v950 = vrcp.pop %v945
    %952 = vset.pattern.permute.xlu0 8
    %953 = vperm.xlu0 %952, %v950
    %v954 = vpop.permute.xlu0 %953
    %v956 = vmul.f32 %v945, %v954
    %957 = vset.pattern.permute.xlu0 3
    %958 = vperm.xlu0 %957, %v655
    %v959 = vpop.permute.xlu0 %958
    %v961 = vlaneseq
    %v962 = vshrl.u32 %v961, 7
    %v963 = vsub.s32 3, %v962
    %v964 = vrot.slane %v698, %v963
    %v965 = vadd.f32 %v959, %v964
    %v966 = vmul.f32 %v965, 0.2
    %v967 = vmax.f32 %v965, %v966
    %v968 = vlaneseq
    %v969 = vshrl.u32 %v968, 7
    %v970 = vsub.s32 3, %v969
    %v971 = vrot.slane %v705, %v970
    %v972 = vadd.f32 %v655, %v971
    %v973 = vmul.f32 %v972, 0.2
    %v974 = vmax.f32 %v972, %v973
    %976 = vset.pattern.permute.xlu0 3
    %977 = vperm.xlu0 %976, %v974
    %v978 = vpop.permute.xlu0 %977
    %v980 = vsub.f32 %v967, %v978
    %v981 = vadd.f32 %v980, %v48
    %v982 = vmul.f32 %v981, 1.442695
    %v983 = vpow.pop %v982
    %984 = vrot.lane.b32.xlu0 %v613, 104
    %v985 = vpop.permute.xlu0 %984
    %v987 = vsel %vm226, %v985, 1065369472
    %v988 = vpack.c.bf16 %v983, %v983
    %v990 = vsel %vm226, %v988, 0
    %v992 = vsel %vm233, %v987, 0
    %994 = vmatprep.subr.bf16.mxu0 0
    %995 = vmatpush1.bf16.msra.mxu0 %v992
    %996 = vmatprep.subr.bf16.mxu0 0
    %997 = vmatpush1.bf16.msra.mxu0 0
    %998 = vmatprep.subr.bf16.mxu0 0
    %999 = vmatpush1.bf16.msra.mxu0 0
    %1000 = vmatprep.subr.bf16.mxu0 0
    %1001 = vmatpush1.bf16.msra.mxu0 0
    %1002 = vmatprep.subr.bf16.mxu0 0
    %1003 = vmatpush1.bf16.msra.mxu0 0
    %1004 = vmatprep.subr.bf16.mxu0 0
    %1005 = vmatpush1.bf16.msra.mxu0 0
    %1006 = vmatprep.subr.bf16.mxu0 0
    %1007 = vmatpush1.bf16.msra.mxu0 0
    %1008 = vmatprep.subr.bf16.mxu0 0
    %1009 = vmatpush1.bf16.msra.mxu0 0
    %1010 = vmatprep.subr.bf16.mxu0 0
    %1011 = vmatpush1.bf16.msra.mxu0 0
    %1012 = vmatprep.subr.bf16.mxu0 0
    %1013 = vmatpush1.bf16.msra.mxu0 0
    %1014 = vmatprep.subr.bf16.mxu0 0
    %1015 = vmatpush1.bf16.msra.mxu0 0
    %1016 = vmatprep.subr.bf16.mxu0 0
    %1017 = vmatpush1.bf16.msra.mxu0 0
    %1018 = vmatprep.subr.bf16.mxu0 0
    %1019 = vmatpush1.bf16.msra.mxu0 0
    %1020 = vmatprep.subr.bf16.mxu0 0
    %1021 = vmatpush1.bf16.msra.mxu0 0
    %1022 = vmatprep.subr.bf16.mxu0 0
    %1023 = vmatpush1.bf16.msra.mxu0 0
    %1024 = vmatprep.subr.bf16.mxu0 0
    %1025 = vmatpush1.bf16.msra.mxu0 0
    %1026 = vmatprep.mubr.bf16.mxu0 0
    %1027 = vmatmul.mubr.bf16.gmra.mrb[0].mxu0 %v990
    %v1028 = vpop.f32.mrb[0].mxu0
    %v1029 = vadd.f32 0.0, %v1028
    %v1030 = vpop.f32.mrb[0].mxu0
    %v1031 = vpop.f32.mrb[0].mxu0
    %v1032 = vpop.f32.mrb[0].mxu0
    %1033 = vdwg.mxu0
    %v1034 = vrcp.pop %v1029
    %1036 = vset.pattern.permute.xlu0 8
    %1037 = vperm.xlu0 %1036, %v1034
    %v1038 = vpop.permute.xlu0 %1037
    %v1040 = vmul.f32 %v1029, %v1038
    %1042 = vrot.lane.b32.xlu0 %v872, 8
    %v1043 = vpop.permute.xlu0 %1042
    %1046 = vrot.lane.b32.xlu0 %v956, 16
    %v1047 = vpop.permute.xlu0 %1046
    %1050 = vrot.lane.b32.xlu0 %v1040, 24
    %v1051 = vpop.permute.xlu0 %1050
    %v1053 = vsel %vm226, %v787, %v1043
    %v1054 = vsel %vm59, %v1053, %v1047
    %v1055 = vsel %vm550, %v1054, %v1051
    %v1056 = vlaneseq
    %v1057 = vshrl.u32 %v1056, 7
    %v1058 = vsub.s32 0, %v1057
    %v1059 = vrot.slane %v566, %v1058
    %v1060 = vadd.f32 %v1055, %v1059
    %v1061 = vpack.c.bf16 %v1060, %v1060
    %v1062 = vld [vmem:[#allocation5 + $0x90] sm:$0xff]
    %v1063 = vld [vmem:[#allocation5 + $0x98] sm:$0xff]
    %v1064 = vld [vmem:[#allocation5 + $0xa0] sm:$0xff]
    %v1065 = vld [vmem:[#allocation5 + $0xa8] sm:$0xff]
    %v1066 = vpack.c.bf16 %v1063, %v1062
    %v1067 = vpack.c.bf16 %v1065, %v1064
    %v1068 = vld [vmem:[#allocation5 + $0xb0] sm:$0x1]
    %v1069 = vlaneseq
    %v1070 = vshrl.u32 %v1069, 7
    %v1071 = vsub.s32 0, %v1070
    %v1072 = vrot.slane %v1068, %v1071
    %v1074 = vsel %vm107, %v1061, 0
    %1076 = vmatprep.subr.bf16.mxu0 0
    %1077 = vmatpush1.bf16.msra.mxu0 %v1066
    %1078 = vmatprep.subr.bf16.mxu0 0
    %1079 = vmatpush1.bf16.msra.mxu0 %v1067
    %1080 = vmatprep.subr.bf16.mxu0 0
    %1081 = vmatpush1.bf16.msra.mxu0 0
    %1082 = vmatprep.subr.bf16.mxu0 0
    %1083 = vmatpush1.bf16.msra.mxu0 0
    %1084 = vmatprep.subr.bf16.mxu0 0
    %1085 = vmatpush1.bf16.msra.mxu0 0
    %1086 = vmatprep.subr.bf16.mxu0 0
    %1087 = vmatpush1.bf16.msra.mxu0 0
    %1088 = vmatprep.subr.bf16.mxu0 0
    %1089 = vmatpush1.bf16.msra.mxu0 0
    %1090 = vmatprep.subr.bf16.mxu0 0
    %1091 = vmatpush1.bf16.msra.mxu0 0
    %1092 = vmatprep.subr.bf16.mxu0 0
    %1093 = vmatpush1.bf16.msra.mxu0 0
    %1094 = vmatprep.subr.bf16.mxu0 0
    %1095 = vmatpush1.bf16.msra.mxu0 0
    %1096 = vmatprep.subr.bf16.mxu0 0
    %1097 = vmatpush1.bf16.msra.mxu0 0
    %1098 = vmatprep.subr.bf16.mxu0 0
    %1099 = vmatpush1.bf16.msra.mxu0 0
    %1100 = vmatprep.subr.bf16.mxu0 0
    %1101 = vmatpush1.bf16.msra.mxu0 0
    %1102 = vmatprep.subr.bf16.mxu0 0
    %1103 = vmatpush1.bf16.msra.mxu0 0
    %1104 = vmatprep.subr.bf16.mxu0 0
    %1105 = vmatpush1.bf16.msra.mxu0 0
    %1106 = vmatprep.subr.bf16.mxu0 0
    %1107 = vmatpush1.bf16.msra.mxu0 0
    %1108 = vmatprep.mubr.bf16.mxu0 0
    %1109 = vmatmul.mubr.bf16.gmra.mrb[0].mxu0 %v1074
    %v1110 = vpop.f32.mrb[0].mxu0
    %v1111 = vadd.f32 %v1072, %v1110
    %v1112 = vpop.f32.mrb[0].mxu0
    %v1113 = vpop.f32.mrb[0].mxu0
    %v1114 = vpop.f32.mrb[0].mxu0
    %1115 = vdwg.mxu0
    %v1116 = vmax.f32 %v1111, 0.0
    %v1117 = vpack.c.bf16 %v1116, %v1116
    %v1118 = vld [vmem:[#allocation5 + $0xb8] sm:$0xff]
    %v1119 = vld [vmem:[#allocation5 + $0xc0] sm:$0xff]
    %v1120 = vld [vmem:[#allocation5 + $0xc8] sm:$0xff]
    %v1121 = vld [vmem:[#allocation5 + $0xd0] sm:$0xff]
    %v1122 = vpack.c.bf16 %v1119, %v1118
    %v1123 = vpack.c.bf16 %v1121, %v1120
    %v1124 = vld [vmem:[#allocation5 + $0xd8] sm:$0x1]
    %v1125 = vlaneseq
    %v1126 = vshrl.u32 %v1125, 7
    %v1127 = vsub.s32 0, %v1126
    %v1128 = vrot.slane %v1124, %v1127
    %v1130 = vsel %vm107, %v1117, 0
    %1132 = vmatprep.subr.bf16.mxu0 0
    %1133 = vmatpush1.bf16.msra.mxu0 %v1122
    %1134 = vmatprep.subr.bf16.mxu0 0
    %1135 = vmatpush1.bf16.msra.mxu0 %v1123
    %1136 = vmatprep.subr.bf16.mxu0 0
    %1137 = vmatpush1.bf16.msra.mxu0 0
    %1138 = vmatprep.subr.bf16.mxu0 0
    %1139 = vmatpush1.bf16.msra.mxu0 0
    %1140 = vmatprep.subr.bf16.mxu0 0
    %1141 = vmatpush1.bf16.msra.mxu0 0
    %1142 = vmatprep.subr.bf16.mxu0 0
    %1143 = vmatpush1.bf16.msra.mxu0 0
    %1144 = vmatprep.subr.bf16.mxu0 0
    %1145 = vmatpush1.bf16.msra.mxu0 0
    %1146 = vmatprep.subr.bf16.mxu0 0
    %1147 = vmatpush1.bf16.msra.mxu0 0
    %1148 = vmatprep.subr.bf16.mxu0 0
    %1149 = vmatpush1.bf16.msra.mxu0 0
    %1150 = vmatprep.subr.bf16.mxu0 0
    %1151 = vmatpush1.bf16.msra.mxu0 0
    %1152 = vmatprep.subr.bf16.mxu0 0
    %1153 = vmatpush1.bf16.msra.mxu0 0
    %1154 = vmatprep.subr.bf16.mxu0 0
    %1155 = vmatpush1.bf16.msra.mxu0 0
    %1156 = vmatprep.subr.bf16.mxu0 0
    %1157 = vmatpush1.bf16.msra.mxu0 0
    %1158 = vmatprep.subr.bf16.mxu0 0
    %1159 = vmatpush1.bf16.msra.mxu0 0
    %1160 = vmatprep.subr.bf16.mxu0 0
    %1161 = vmatpush1.bf16.msra.mxu0 0
    %1162 = vmatprep.subr.bf16.mxu0 0
    %1163 = vmatpush1.bf16.msra.mxu0 0
    %1164 = vmatprep.mubr.bf16.mxu0 0
    %1165 = vmatmul.mubr.bf16.gmra.mrb[0].mxu0 %v1130
    %v1166 = vpop.f32.mrb[0].mxu0
    %v1167 = vadd.f32 %v1128, %v1166
    %v1168 = vpop.f32.mrb[0].mxu0
    %v1169 = vpop.f32.mrb[0].mxu0
    %v1170 = vpop.f32.mrb[0].mxu0
    %1171 = vdwg.mxu0
    %v1172 = vmax.f32 %v1167, 0.0
    %v1173 = vld [vmem:[#allocation5 + $0xe0] sm:$0xff]
    %v1174 = vld [vmem:[#allocation5 + $0xe8] sm:$0xff]
    %v1175 = vld [vmem:[#allocation5 + $0xf0] sm:$0xff]
    %v1176 = vld [vmem:[#allocation5 + $0xf8] sm:$0xff]
    %v1177 = vld [vmem:[#allocation5 + $0x100] sm:$0xf]
    %v1178 = vld [vmem:[#allocation5 + $0x108] sm:$0xff]
    %v1179 = vld [vmem:[#allocation5 + $0x110] sm:$0xff]
    %v1180 = vld [vmem:[#allocation5 + $0x118] sm:$0xff]
    %v1181 = vld [vmem:[#allocation5 + $0x120] sm:$0xff]
    %v1182 = vld [vmem:[#allocation5 + $0x128] sm:$0x1]
    %v1183 = vpack.c.bf16 %v1172, %v1172
    %v1184 = vpack.c.bf16 %v1174, %v1173
    %v1185 = vpack.c.bf16 %v1176, %v1175
    %v1187 = vsel %vm107, %v1183, 0
    %1189 = vmatprep.subr.bf16.mxu0 0
    %1190 = vmatpush1.bf16.msra.mxu0 %v1184
    %1191 = vmatprep.subr.bf16.mxu0 0
    %1192 = vmatpush1.bf16.msra.mxu0 %v1185
    %1193 = vmatprep.subr.bf16.mxu0 0
    %1194 = vmatpush1.bf16.msra.mxu0 0
    %1195 = vmatprep.subr.bf16.mxu0 0
    %1196 = vmatpush1.bf16.msra.mxu0 0
    %1197 = vmatprep.subr.bf16.mxu0 0
    %1198 = vmatpush1.bf16.msra.mxu0 0
    %1199 = vmatprep.subr.bf16.mxu0 0
    %1200 = vmatpush1.bf16.msra.mxu0 0
    %1201 = vmatprep.subr.bf16.mxu0 0
    %1202 = vmatpush1.bf16.msra.mxu0 0
    %1203 = vmatprep.subr.bf16.mxu0 0
    %1204 = vmatpush1.bf16.msra.mxu0 0
    %1205 = vmatprep.subr.bf16.mxu0 0
    %1206 = vmatpush1.bf16.msra.mxu0 0
    %1207 = vmatprep.subr.bf16.mxu0 0
    %1208 = vmatpush1.bf16.msra.mxu0 0
    %1209 = vmatprep.subr.bf16.mxu0 0
    %1210 = vmatpush1.bf16.msra.mxu0 0
    %1211 = vmatprep.subr.bf16.mxu0 0
    %1212 = vmatpush1.bf16.msra.mxu0 0
    %1213 = vmatprep.subr.bf16.mxu0 0
    %1214 = vmatpush1.bf16.msra.mxu0 0
    %1215 = vmatprep.subr.bf16.mxu0 0
    %1216 = vmatpush1.bf16.msra.mxu0 0
    %1217 = vmatprep.subr.bf16.mxu0 0
    %1218 = vmatpush1.bf16.msra.mxu0 0
    %1219 = vmatprep.subr.bf16.mxu0 0
    %1220 = vmatpush1.bf16.msra.mxu0 0
    %1221 = vmatprep.mubr.bf16.mxu0 0
    %1222 = vmatmul.mubr.bf16.gmra.mrb[0].mxu0 %v1187
    %v1223 = vpop.f32.mrb[0].mxu0
    %v1224 = vadd.f32 0.0, %v1223
    %v1225 = vpop.f32.mrb[0].mxu0
    %v1226 = vpop.f32.mrb[0].mxu0
    %v1227 = vpop.f32.mrb[0].mxu0
    %1228 = vdwg.mxu0
    %v1229 = vpack.c.bf16 %v1224, %v1224
    %v1230 = vpack.c.bf16 %v1179, %v1178
    %v1231 = vpack.c.bf16 %v1181, %v1180
    %v1232 = vpack.c.bf16 %v1177, %v1177
    %v1234 = vsel %vm107, %v1229, 0
    %1236 = vmatprep.subr.bf16.mxu0 0
    %1237 = vmatpush1.bf16.msra.mxu0 %v1230
    %1238 = vmatprep.subr.bf16.mxu0 0
    %1239 = vmatpush1.bf16.msra.mxu0 %v1231
    %1240 = vmatprep.subr.bf16.mxu0 0
    %1241 = vmatpush1.bf16.msra.mxu0 0
    %1242 = vmatprep.subr.bf16.mxu0 0
    %1243 = vmatpush1.bf16.msra.mxu0 0
    %1244 = vmatprep.subr.bf16.mxu0 0
    %1245 = vmatpush1.bf16.msra.mxu0 0
    %1246 = vmatprep.subr.bf16.mxu0 0
    %1247 = vmatpush1.bf16.msra.mxu0 0
    %1248 = vmatprep.subr.bf16.mxu0 0
    %1249 = vmatpush1.bf16.msra.mxu0 0
    %1250 = vmatprep.subr.bf16.mxu0 0
    %1251 = vmatpush1.bf16.msra.mxu0 0
    %1252 = vmatprep.subr.bf16.mxu0 0
    %1253 = vmatpush1.bf16.msra.mxu0 0
    %1254 = vmatprep.subr.bf16.mxu0 0
    %1255 = vmatpush1.bf16.msra.mxu0 0
    %1256 = vmatprep.subr.bf16.mxu0 0
    %1257 = vmatpush1.bf16.msra.mxu0 0
    %1258 = vmatprep.subr.bf16.mxu0 0
    %1259 = vmatpush1.bf16.msra.mxu0 0
    %1260 = vmatprep.subr.bf16.mxu0 0
    %1261 = vmatpush1.bf16.msra.mxu0 0
    %1262 = vmatprep.subr.bf16.mxu0 0
    %1263 = vmatpush1.bf16.msra.mxu0 0
    %1264 = vmatprep.subr.bf16.mxu0 0
    %1265 = vmatpush1.bf16.msra.mxu0 0
    %1266 = vmatprep.subr.bf16.mxu0 0
    %1267 = vmatpush1.bf16.msra.mxu0 0
    %1268 = vmatprep.mubr.bf16.mxu0 0
    %1269 = vmatmul.mubr.bf16.gmra.mrb[0].mxu0 %v1234
    %v1270 = vpop.f32.mrb[0].mxu0
    %v1271 = vadd.f32 0.0, %v1270
    %v1272 = vpop.f32.mrb[0].mxu0
    %v1273 = vpop.f32.mrb[0].mxu0
    %v1274 = vpop.f32.mrb[0].mxu0
    %1275 = vdwg.mxu0
    %v1277 = vsel %vm107, %v1232, 0
    %1279 = vmatprep.subr.bf16.mxu0 0
    %1280 = vmatpush1.bf16.xpose.msra.mxu0 %v1234
    %1281 = vmatprep.subr.bf16.mxu0 0
    %1282 = vmatpush1.bf16.xpose.msra.mxu0 0
    %1283 = vmatprep.subr.bf16.mxu0 0
    %1284 = vmatpush1.bf16.xpose.msra.mxu0 0
    %1285 = vmatprep.subr.bf16.mxu0 0
    %1286 = vmatpush1.bf16.xpose.msra.mxu0 0
    %1287 = vmatprep.subr.bf16.mxu0 0
    %1288 = vmatpush1.bf16.xpose.msra.mxu0 0
    %1289 = vmatprep.subr.bf16.mxu0 0
    %1290 = vmatpush1.bf16.xpose.msra.mxu0 0
    %1291 = vmatprep.subr.bf16.mxu0 0
    %1292 = vmatpush1.bf16.xpose.msra.mxu0 0
    %1293 = vmatprep.subr.bf16.mxu0 0
    %1294 = vmatpush1.bf16.xpose.msra.mxu0 0
    %1295 = vmatprep.subr.bf16.mxu0 0
    %1296 = vmatpush1.bf16.xpose.msra.mxu0 0
    %1297 = vmatprep.subr.bf16.mxu0 0
    %1298 = vmatpush1.bf16.xpose.msra.mxu0 0
    %1299 = vmatprep.subr.bf16.mxu0 0
    %1300 = vmatpush1.bf16.xpose.msra.mxu0 0
    %1301 = vmatprep.subr.bf16.mxu0 0
    %1302 = vmatpush1.bf16.xpose.msra.mxu0 0
    %1303 = vmatprep.subr.bf16.mxu0 0
    %1304 = vmatpush1.bf16.xpose.msra.mxu0 0
    %1305 = vmatprep.subr.bf16.mxu0 0
    %1306 = vmatpush1.bf16.xpose.msra.mxu0 0
    %1307 = vmatprep.subr.bf16.mxu0 0
    %1308 = vmatpush1.bf16.xpose.msra.mxu0 0
    %1309 = vmatprep.subr.bf16.mxu0 0
    %1310 = vmatpush1.bf16.xpose.msra.mxu0 0
    %1311 = vmatprep.mubr.bf16.mxu0 0
    %1312 = vmatmul.mubr.bf16.gmra.mrb[0].mxu0 %v1277
    %v1313 = vpop.f32.mrb[0].mxu0
    %v1314 = vadd.f32 0.0, %v1313
    %v1315 = vpop.f32.mrb[0].mxu0
    %v1316 = vpop.f32.mrb[0].mxu0
    %v1317 = vpop.f32.mrb[0].mxu0
    %1318 = vdwg.mxu0
    %v1319 = vsel %vm194, %v1314, -inf
    %1320 = vmax.xlane.f32.xlu0 %v1319
    %v1321 = vpop.xlane.xlu0 %1320
    %1323 = vset.pattern.permute.xlu0 0
    %1324 = vperm.xlu0 %1323, %v1271
    %v1325 = vpop.permute.xlu0 %1324
    %v1327 = vlaneseq
    %v1328 = vshrl.u32 %v1327, 7
    %v1329 = vsub.s32 0, %v1328
    %v1330 = vrot.slane %v1314, %v1329
    %v1331 = vadd.f32 %v1325, %v1330
    %v1332 = vmul.f32 %v1331, 0.2
    %v1333 = vmax.f32 %v1331, %v1332
    %v1334 = vlaneseq
    %v1335 = vshrl.u32 %v1334, 7
    %v1336 = vsub.s32 0, %v1335
    %v1337 = vrot.slane %v1321, %v1336
    %v1338 = vadd.f32 %v1271, %v1337
    %v1339 = vmul.f32 %v1338, 0.2
    %v1340 = vmax.f32 %v1338, %v1339
    %1342 = vset.pattern.permute.xlu0 0
    %1343 = vperm.xlu0 %1342, %v1340
    %v1344 = vpop.permute.xlu0 %1343
    %v1346 = vsub.f32 %v1333, %v1344
    %v1347 = vadd.f32 %v1346, %v48
    %v1348 = vmul.f32 %v1347, 1.442695
    %v1349 = vpow.pop %v1348
    %v1350 = vsel %vm226, %v1229, 1065369472
    %v1351 = vpack.c.bf16 %v1349, %v1349
    %v1353 = vsel %vm226, %v1351, 0
    %v1355 = vsel %vm233, %v1350, 0
    %1357 = vmatprep.subr.bf16.mxu0 0
    %1358 = vmatpush1.bf16.msra.mxu0 %v1355
    %1359 = vmatprep.subr.bf16.mxu0 0
    %1360 = vmatpush1.bf16.msra.mxu0 0
    %1361 = vmatprep.subr.bf16.mxu0 0
    %1362 = vmatpush1.bf16.msra.mxu0 0
    %1363 = vmatprep.subr.bf16.mxu0 0
    %1364 = vmatpush1.bf16.msra.mxu0 0
    %1365 = vmatprep.subr.bf16.mxu0 0
    %1366 = vmatpush1.bf16.msra.mxu0 0
    %1367 = vmatprep.subr.bf16.mxu0 0
    %1368 = vmatpush1.bf16.msra.mxu0 0
    %1369 = vmatprep.subr.bf16.mxu0 0
    %1370 = vmatpush1.bf16.msra.mxu0 0
    %1371 = vmatprep.subr.bf16.mxu0 0
    %1372 = vmatpush1.bf16.msra.mxu0 0
    %1373 = vmatprep.subr.bf16.mxu0 0
    %1374 = vmatpush1.bf16.msra.mxu0 0
    %1375 = vmatprep.subr.bf16.mxu0 0
    %1376 = vmatpush1.bf16.msra.mxu0 0
    %1377 = vmatprep.subr.bf16.mxu0 0
    %1378 = vmatpush1.bf16.msra.mxu0 0
    %1379 = vmatprep.subr.bf16.mxu0 0
    %1380 = vmatpush1.bf16.msra.mxu0 0
    %1381 = vmatprep.subr.bf16.mxu0 0
    %1382 = vmatpush1.bf16.msra.mxu0 0
    %1383 = vmatprep.subr.bf16.mxu0 0
    %1384 = vmatpush1.bf16.msra.mxu0 0
    %1385 = vmatprep.subr.bf16.mxu0 0
    %1386 = vmatpush1.bf16.msra.mxu0 0
    %1387 = vmatprep.subr.bf16.mxu0 0
    %1388 = vmatpush1.bf16.msra.mxu0 0
    %1389 = vmatprep.mubr.bf16.mxu0 0
    %1390 = vmatmul.mubr.bf16.gmra.mrb[0].mxu0 %v1353
    %v1391 = vpop.f32.mrb[0].mxu0
    %v1392 = vadd.f32 0.0, %v1391
    %v1393 = vpop.f32.mrb[0].mxu0
    %v1394 = vpop.f32.mrb[0].mxu0
    %v1395 = vpop.f32.mrb[0].mxu0
    %1396 = vdwg.mxu0
    %v1397 = vrcp.pop %v1392
    %1399 = vset.pattern.permute.xlu0 8
    %1400 = vperm.xlu0 %1399, %v1397
    %v1401 = vpop.permute.xlu0 %1400
    %v1403 = vmul.f32 %v1392, %v1401
    %1404 = vset.pattern.permute.xlu0 1
    %1405 = vperm.xlu0 %1404, %v1271
    %v1406 = vpop.permute.xlu0 %1405
    %v1408 = vlaneseq
    %v1409 = vshrl.u32 %v1408, 7
    %v1410 = vsub.s32 1, %v1409
    %v1411 = vrot.slane %v1314, %v1410
    %v1412 = vadd.f32 %v1406, %v1411
    %v1413 = vmul.f32 %v1412, 0.2
    %v1414 = vmax.f32 %v1412, %v1413
    %v1415 = vlaneseq
    %v1416 = vshrl.u32 %v1415, 7
    %v1417 = vsub.s32 1, %v1416
    %v1418 = vrot.slane %v1321, %v1417
    %v1419 = vadd.f32 %v1271, %v1418
    %v1420 = vmul.f32 %v1419, 0.2
    %v1421 = vmax.f32 %v1419, %v1420
    %1423 = vset.pattern.permute.xlu0 1
    %1424 = vperm.xlu0 %1423, %v1421
    %v1425 = vpop.permute.xlu0 %1424
    %v1427 = vsub.f32 %v1414, %v1425
    %v1428 = vadd.f32 %v1427, %v48
    %v1429 = vmul.f32 %v1428, 1.442695
    %v1430 = vpow.pop %v1429
    %1432 = vrot.lane.b32.xlu0 %v1229, 120
    %v1433 = vpop.permute.xlu0 %1432
    %v1435 = vsel %vm226, %v1433, 1065369472
    %v1436 = vpack.c.bf16 %v1430, %v1430
    %v1438 = vsel %vm226, %v1436, 0
    %v1440 = vsel %vm233, %v1435, 0
    %1442 = vmatprep.subr.bf16.mxu0 0
    %1443 = vmatpush1.bf16.msra.mxu0 %v1440
    %1444 = vmatprep.subr.bf16.mxu0 0
    %1445 = vmatpush1.bf16.msra.mxu0 0
    %1446 = vmatprep.subr.bf16.mxu0 0
    %1447 = vmatpush1.bf16.msra.mxu0 0
    %1448 = vmatprep.subr.bf16.mxu0 0
    %1449 = vmatpush1.bf16.msra.mxu0 0
    %1450 = vmatprep.subr.bf16.mxu0 0
    %1451 = vmatpush1.bf16.msra.mxu0 0
    %1452 = vmatprep.subr.bf16.mxu0 0
    %1453 = vmatpush1.bf16.msra.mxu0 0
    %1454 = vmatprep.subr.bf16.mxu0 0
    %1455 = vmatpush1.bf16.msra.mxu0 0
    %1456 = vmatprep.subr.bf16.mxu0 0
    %1457 = vmatpush1.bf16.msra.mxu0 0
    %1458 = vmatprep.subr.bf16.mxu0 0
    %1459 = vmatpush1.bf16.msra.mxu0 0
    %1460 = vmatprep.subr.bf16.mxu0 0
    %1461 = vmatpush1.bf16.msra.mxu0 0
    %1462 = vmatprep.subr.bf16.mxu0 0
    %1463 = vmatpush1.bf16.msra.mxu0 0
    %1464 = vmatprep.subr.bf16.mxu0 0
    %1465 = vmatpush1.bf16.msra.mxu0 0
    %1466 = vmatprep.subr.bf16.mxu0 0
    %1467 = vmatpush1.bf16.msra.mxu0 0
    %1468 = vmatprep.subr.bf16.mxu0 0
    %1469 = vmatpush1.bf16.msra.mxu0 0
    %1470 = vmatprep.subr.bf16.mxu0 0
    %1471 = vmatpush1.bf16.msra.mxu0 0
    %1472 = vmatprep.subr.bf16.mxu0 0
    %1473 = vmatpush1.bf16.msra.mxu0 0
    %1474 = vmatprep.mubr.bf16.mxu0 0
    %1475 = vmatmul.mubr.bf16.gmra.mrb[0].mxu0 %v1438
    %v1476 = vpop.f32.mrb[0].mxu0
    %v1477 = vadd.f32 0.0, %v1476
    %v1478 = vpop.f32.mrb[0].mxu0
    %v1479 = vpop.f32.mrb[0].mxu0
    %v1480 = vpop.f32.mrb[0].mxu0
    %1481 = vdwg.mxu0
    %v1482 = vrcp.pop %v1477
    %1484 = vset.pattern.permute.xlu0 8
    %1485 = vperm.xlu0 %1484, %v1482
    %v1486 = vpop.permute.xlu0 %1485
    %v1488 = vmul.f32 %v1477, %v1486
    %1489 = vset.pattern.permute.xlu0 2
    %1490 = vperm.xlu0 %1489, %v1271
    %v1491 = vpop.permute.xlu0 %1490
    %v1493 = vlaneseq
    %v1494 = vshrl.u32 %v1493, 7
    %v1495 = vsub.s32 2, %v1494
    %v1496 = vrot.slane %v1314, %v1495
    %v1497 = vadd.f32 %v1491, %v1496
    %v1498 = vmul.f32 %v1497, 0.2
    %v1499 = vmax.f32 %v1497, %v1498
    %v1500 = vlaneseq
    %v1501 = vshrl.u32 %v1500, 7
    %v1502 = vsub.s32 2, %v1501
    %v1503 = vrot.slane %v1321, %v1502
    %v1504 = vadd.f32 %v1271, %v1503
    %v1505 = vmul.f32 %v1504, 0.2
    %v1506 = vmax.f32 %v1504, %v1505
    %1508 = vset.pattern.permute.xlu0 2
    %1509 = vperm.xlu0 %1508, %v1506
    %v1510 = vpop.permute.xlu0 %1509
    %v1512 = vsub.f32 %v1499, %v1510
    %v1513 = vadd.f32 %v1512, %v48
    %v1514 = vmul.f32 %v1513, 1.442695
    %v1515 = vpow.pop %v1514
    %1516 = vrot.lane.b32.xlu0 %v1229, 112
    %v1517 = vpop.permute.xlu0 %1516
    %v1519 = vsel %vm226, %v1517, 1065369472
    %v1520 = vpack.c.bf16 %v1515, %v1515
    %v1522 = vsel %vm226, %v1520, 0
    %v1524 = vsel %vm233, %v1519, 0
    %1526 = vmatprep.subr.bf16.mxu0 0
    %1527 = vmatpush1.bf16.msra.mxu0 %v1524
    %1528 = vmatprep.subr.bf16.mxu0 0
    %1529 = vmatpush1.bf16.msra.mxu0 0
    %1530 = vmatprep.subr.bf16.mxu0 0
    %1531 = vmatpush1.bf16.msra.mxu0 0
    %1532 = vmatprep.subr.bf16.mxu0 0
    %1533 = vmatpush1.bf16.msra.mxu0 0
    %1534 = vmatprep.subr.bf16.mxu0 0
    %1535 = vmatpush1.bf16.msra.mxu0 0
    %1536 = vmatprep.subr.bf16.mxu0 0
    %1537 = vmatpush1.bf16.msra.mxu0 0
    %1538 = vmatprep.subr.bf16.mxu0 0
    %1539 = vmatpush1.bf16.msra.mxu0 0
    %1540 = vmatprep.subr.bf16.mxu0 0
    %1541 = vmatpush1.bf16.msra.mxu0 0
    %1542 = vmatprep.subr.bf16.mxu0 0
    %1543 = vmatpush1.bf16.msra.mxu0 0
    %1544 = vmatprep.subr.bf16.mxu0 0
    %1545 = vmatpush1.bf16.msra.mxu0 0
    %1546 = vmatprep.subr.bf16.mxu0 0
    %1547 = vmatpush1.bf16.msra.mxu0 0
    %1548 = vmatprep.subr.bf16.mxu0 0
    %1549 = vmatpush1.bf16.msra.mxu0 0
    %1550 = vmatprep.subr.bf16.mxu0 0
    %1551 = vmatpush1.bf16.msra.mxu0 0
    %1552 = vmatprep.subr.bf16.mxu0 0
    %1553 = vmatpush1.bf16.msra.mxu0 0
    %1554 = vmatprep.subr.bf16.mxu0 0
    %1555 = vmatpush1.bf16.msra.mxu0 0
    %1556 = vmatprep.subr.bf16.mxu0 0
    %1557 = vmatpush1.bf16.msra.mxu0 0
    %1558 = vmatprep.mubr.bf16.mxu0 0
    %1559 = vmatmul.mubr.bf16.gmra.mrb[0].mxu0 %v1522
    %v1560 = vpop.f32.mrb[0].mxu0
    %v1561 = vadd.f32 0.0, %v1560
    %v1562 = vpop.f32.mrb[0].mxu0
    %v1563 = vpop.f32.mrb[0].mxu0
    %v1564 = vpop.f32.mrb[0].mxu0
    %1565 = vdwg.mxu0
    %v1566 = vrcp.pop %v1561
    %1568 = vset.pattern.permute.xlu0 8
    %1569 = vperm.xlu0 %1568, %v1566
    %v1570 = vpop.permute.xlu0 %1569
    %v1572 = vmul.f32 %v1561, %v1570
    %1573 = vset.pattern.permute.xlu0 3
    %1574 = vperm.xlu0 %1573, %v1271
    %v1575 = vpop.permute.xlu0 %1574
    %v1577 = vlaneseq
    %v1578 = vshrl.u32 %v1577, 7
    %v1579 = vsub.s32 3, %v1578
    %v1580 = vrot.slane %v1314, %v1579
    %v1581 = vadd.f32 %v1575, %v1580
    %v1582 = vmul.f32 %v1581, 0.2
    %v1583 = vmax.f32 %v1581, %v1582
    %v1584 = vlaneseq
    %v1585 = vshrl.u32 %v1584, 7
    %v1586 = vsub.s32 3, %v1585
    %v1587 = vrot.slane %v1321, %v1586
    %v1588 = vadd.f32 %v1271, %v1587
    %v1589 = vmul.f32 %v1588, 0.2
    %v1590 = vmax.f32 %v1588, %v1589
    %1592 = vset.pattern.permute.xlu0 3
    %1593 = vperm.xlu0 %1592, %v1590
    %v1594 = vpop.permute.xlu0 %1593
    %v1596 = vsub.f32 %v1583, %v1594
    %v1597 = vadd.f32 %v1596, %v48
    %v1598 = vmul.f32 %v1597, 1.442695
    %v1599 = vpow.pop %v1598
    %1600 = vrot.lane.b32.xlu0 %v1229, 104
    %v1601 = vpop.permute.xlu0 %1600
    %v1603 = vsel %vm226, %v1601, 1065369472
    %v1604 = vpack.c.bf16 %v1599, %v1599
    %v1606 = vsel %vm226, %v1604, 0
    %v1608 = vsel %vm233, %v1603, 0
    %1610 = vmatprep.subr.bf16.mxu0 0
    %1611 = vmatpush1.bf16.msra.mxu0 %v1608
    %1612 = vmatprep.subr.bf16.mxu0 0
    %1613 = vmatpush1.bf16.msra.mxu0 0
    %1614 = vmatprep.subr.bf16.mxu0 0
    %1615 = vmatpush1.bf16.msra.mxu0 0
    %1616 = vmatprep.subr.bf16.mxu0 0
    %1617 = vmatpush1.bf16.msra.mxu0 0
    %1618 = vmatprep.subr.bf16.mxu0 0
    %1619 = vmatpush1.bf16.msra.mxu0 0
    %1620 = vmatprep.subr.bf16.mxu0 0
    %1621 = vmatpush1.bf16.msra.mxu0 0
    %1622 = vmatprep.subr.bf16.mxu0 0
    %1623 = vmatpush1.bf16.msra.mxu0 0
    %1624 = vmatprep.subr.bf16.mxu0 0
    %1625 = vmatpush1.bf16.msra.mxu0 0
    %1626 = vmatprep.subr.bf16.mxu0 0
    %1627 = vmatpush1.bf16.msra.mxu0 0
    %1628 = vmatprep.subr.bf16.mxu0 0
    %1629 = vmatpush1.bf16.msra.mxu0 0
    %1630 = vmatprep.subr.bf16.mxu0 0
    %1631 = vmatpush1.bf16.msra.mxu0 0
    %1632 = vmatprep.subr.bf16.mxu0 0
    %1633 = vmatpush1.bf16.msra.mxu0 0
    %1634 = vmatprep.subr.bf16.mxu0 0
    %1635 = vmatpush1.bf16.msra.mxu0 0
    %1636 = vmatprep.subr.bf16.mxu0 0
    %1637 = vmatpush1.bf16.msra.mxu0 0
    %1638 = vmatprep.subr.bf16.mxu0 0
    %1639 = vmatpush1.bf16.msra.mxu0 0
    %1640 = vmatprep.subr.bf16.mxu0 0
    %1641 = vmatpush1.bf16.msra.mxu0 0
    %1642 = vmatprep.mubr.bf16.mxu0 0
    %1643 = vmatmul.mubr.bf16.gmra.mrb[0].mxu0 %v1606
    %v1644 = vpop.f32.mrb[0].mxu0
    %v1645 = vadd.f32 0.0, %v1644
    %v1646 = vpop.f32.mrb[0].mxu0
    %v1647 = vpop.f32.mrb[0].mxu0
    %v1648 = vpop.f32.mrb[0].mxu0
    %1649 = vdwg.mxu0
    %v1650 = vrcp.pop %v1645
    %1652 = vset.pattern.permute.xlu0 8
    %1653 = vperm.xlu0 %1652, %v1650
    %v1654 = vpop.permute.xlu0 %1653
    %v1656 = vmul.f32 %v1645, %v1654
    %1658 = vrot.lane.b32.xlu0 %v1488, 8
    %v1659 = vpop.permute.xlu0 %1658
    %1662 = vrot.lane.b32.xlu0 %v1572, 16
    %v1663 = vpop.permute.xlu0 %1662
    %1666 = vrot.lane.b32.xlu0 %v1656, 24
    %v1667 = vpop.permute.xlu0 %1666
    %v1669 = vsel %vm226, %v1403, %v1659
    %v1670 = vsel %vm59, %v1669, %v1663
    %v1671 = vsel %vm550, %v1670, %v1667
    %v1672 = vlaneseq
    %v1673 = vshrl.u32 %v1672, 7
    %v1674 = vsub.s32 0, %v1673
    %v1675 = vrot.slane %v1182, %v1674
    %v1676 = vadd.f32 %v1671, %v1675
    %v1677 = vld [vmem:[#allocation5 + $0x130] sm:$0xff]
    %v1678 = vld [vmem:[#allocation5 + $0x138] sm:$0xff]
    %v1679 = vld [vmem:[#allocation5 + $0x140] sm:$0xff]
    %v1680 = vld [vmem:[#allocation5 + $0x148] sm:$0xff]
    %v1681 = vld [vmem:[#allocation5 + $0x150] sm:$0xf]
    %v1682 = vld [vmem:[#allocation5 + $0x158] sm:$0xff]
    %v1683 = vld [vmem:[#allocation5 + $0x160] sm:$0xff]
    %v1684 = vld [vmem:[#allocation5 + $0x168] sm:$0xff]
    %v1685 = vld [vmem:[#allocation5 + $0x170] sm:$0xff]
    %v1686 = vld [vmem:[#allocation5 + $0x178] sm:$0xff]
    %v1687 = vld [vmem:[#allocation5 + $0x180] sm:$0xff]
    %v1688 = vld [vmem:[#allocation5 + $0x188] sm:$0xff]
    %v1689 = vld [vmem:[#allocation5 + $0x190] sm:$0xff]
    %v1690 = vld [vmem:[#allocation5 + $0x198] sm:$0x1]
    %v1691 = vpack.c.bf16 %v1676, %v1676
    %v1692 = vpack.c.bf16 %v1678, %v1677
    %v1693 = vpack.c.bf16 %v1680, %v1679
    %v1695 = vsel %vm107, %v1691, 0
    %1697 = vmatprep.subr.bf16.mxu0 0
    %1698 = vmatpush1.bf16.msra.mxu0 %v1692
    %1699 = vmatprep.subr.bf16.mxu0 0
    %1700 = vmatpush1.bf16.msra.mxu0 %v1693
    %1701 = vmatprep.subr.bf16.mxu0 0
    %1702 = vmatpush1.bf16.msra.mxu0 0
    %1703 = vmatprep.subr.bf16.mxu0 0
    %1704 = vmatpush1.bf16.msra.mxu0 0
    %1705 = vmatprep.subr.bf16.mxu0 0
    %1706 = vmatpush1.bf16.msra.mxu0 0
    %1707 = vmatprep.subr.bf16.mxu0 0
    %1708 = vmatpush1.bf16.msra.mxu0 0
    %1709 = vmatprep.subr.bf16.mxu0 0
    %1710 = vmatpush1.bf16.msra.mxu0 0
    %1711 = vmatprep.subr.bf16.mxu0 0
    %1712 = vmatpush1.bf16.msra.mxu0 0
    %1713 = vmatprep.subr.bf16.mxu0 0
    %1714 = vmatpush1.bf16.msra.mxu0 0
    %1715 = vmatprep.subr.bf16.mxu0 0
    %1716 = vmatpush1.bf16.msra.mxu0 0
    %1717 = vmatprep.subr.bf16.mxu0 0
    %1718 = vmatpush1.bf16.msra.mxu0 0
    %1719 = vmatprep.subr.bf16.mxu0 0
    %1720 = vmatpush1.bf16.msra.mxu0 0
    %1721 = vmatprep.subr.bf16.mxu0 0
    %1722 = vmatpush1.bf16.msra.mxu0 0
    %1723 = vmatprep.subr.bf16.mxu0 0
    %1724 = vmatpush1.bf16.msra.mxu0 0
    %1725 = vmatprep.subr.bf16.mxu0 0
    %1726 = vmatpush1.bf16.msra.mxu0 0
    %1727 = vmatprep.subr.bf16.mxu0 0
    %1728 = vmatpush1.bf16.msra.mxu0 0
    %1729 = vmatprep.mubr.bf16.mxu0 0
    %1730 = vmatmul.mubr.bf16.gmra.mrb[0].mxu0 %v1695
    %v1731 = vpop.f32.mrb[0].mxu0
    %v1732 = vadd.f32 0.0, %v1731
    %v1733 = vpop.f32.mrb[0].mxu0
    %v1734 = vpop.f32.mrb[0].mxu0
    %v1735 = vpop.f32.mrb[0].mxu0
    %1736 = vdwg.mxu0
    %v1737 = vpack.c.bf16 %v1732, %v1732
    %v1738 = vpack.c.bf16 %v1683, %v1682
    %v1739 = vpack.c.bf16 %v1685, %v1684
    %v1740 = vpack.c.bf16 %v1687, %v1686
    %v1741 = vpack.c.bf16 %v1689, %v1688
    %v1742 = vpack.c.bf16 %v1681, %v1681
    %vm1743 = vcmask 523264
    %v1745 = vsel %vm1743, %v1737, 0
    %1747 = vmatprep.subr.bf16.mxu0 0
    %1748 = vmatpush1.bf16.msra.mxu0 %v1738
    %1749 = vmatprep.subr.bf16.mxu0 0
    %1750 = vmatpush1.bf16.msra.mxu0 %v1739
    %1751 = vmatprep.subr.bf16.mxu0 0
    %1752 = vmatpush1.bf16.msra.mxu0 %v1740
    %1753 = vmatprep.subr.bf16.mxu0 0
    %1754 = vmatpush1.bf16.msra.mxu0 %v1741
    %1755 = vmatprep.subr.bf16.mxu0 0
    %1756 = vmatpush1.bf16.msra.mxu0 0
    %1757 = vmatprep.subr.bf16.mxu0 0
    %1758 = vmatpush1.bf16.msra.mxu0 0
    %1759 = vmatprep.subr.bf16.mxu0 0
    %1760 = vmatpush1.bf16.msra.mxu0 0
    %1761 = vmatprep.subr.bf16.mxu0 0
    %1762 = vmatpush1.bf16.msra.mxu0 0
    %1763 = vmatprep.subr.bf16.mxu0 0
    %1764 = vmatpush1.bf16.msra.mxu0 0
    %1765 = vmatprep.subr.bf16.mxu0 0
    %1766 = vmatpush1.bf16.msra.mxu0 0
    %1767 = vmatprep.subr.bf16.mxu0 0
    %1768 = vmatpush1.bf16.msra.mxu0 0
    %1769 = vmatprep.subr.bf16.mxu0 0
    %1770 = vmatpush1.bf16.msra.mxu0 0
    %1771 = vmatprep.subr.bf16.mxu0 0
    %1772 = vmatpush1.bf16.msra.mxu0 0
    %1773 = vmatprep.subr.bf16.mxu0 0
    %1774 = vmatpush1.bf16.msra.mxu0 0
    %1775 = vmatprep.subr.bf16.mxu0 0
    %1776 = vmatpush1.bf16.msra.mxu0 0
    %1777 = vmatprep.subr.bf16.mxu0 0
    %1778 = vmatpush1.bf16.msra.mxu0 0
    %1779 = vmatprep.mubr.bf16.mxu0 0
    %1780 = vmatmul.mubr.bf16.gmra.mrb[0].mxu0 %v1745
    %v1781 = vpop.f32.mrb[0].mxu0
    %v1782 = vadd.f32 0.0, %v1781
    %v1783 = vpop.f32.mrb[0].mxu0
    %v1784 = vpop.f32.mrb[0].mxu0
    %v1785 = vpop.f32.mrb[0].mxu0
    %1786 = vdwg.mxu0
    %v1788 = vsel %vm1743, %v1742, 0
    %1790 = vmatprep.subr.bf16.mxu0 0
    %1791 = vmatpush1.bf16.xpose.msra.mxu0 %v1745
    %1792 = vmatprep.subr.bf16.mxu0 0
    %1793 = vmatpush1.bf16.xpose.msra.mxu0 0
    %1794 = vmatprep.subr.bf16.mxu0 0
    %1795 = vmatpush1.bf16.xpose.msra.mxu0 0
    %1796 = vmatprep.subr.bf16.mxu0 0
    %1797 = vmatpush1.bf16.xpose.msra.mxu0 0
    %1798 = vmatprep.subr.bf16.mxu0 0
    %1799 = vmatpush1.bf16.xpose.msra.mxu0 0
    %1800 = vmatprep.subr.bf16.mxu0 0
    %1801 = vmatpush1.bf16.xpose.msra.mxu0 0
    %1802 = vmatprep.subr.bf16.mxu0 0
    %1803 = vmatpush1.bf16.xpose.msra.mxu0 0
    %1804 = vmatprep.subr.bf16.mxu0 0
    %1805 = vmatpush1.bf16.xpose.msra.mxu0 0
    %1806 = vmatprep.subr.bf16.mxu0 0
    %1807 = vmatpush1.bf16.xpose.msra.mxu0 0
    %1808 = vmatprep.subr.bf16.mxu0 0
    %1809 = vmatpush1.bf16.xpose.msra.mxu0 0
    %1810 = vmatprep.subr.bf16.mxu0 0
    %1811 = vmatpush1.bf16.xpose.msra.mxu0 0
    %1812 = vmatprep.subr.bf16.mxu0 0
    %1813 = vmatpush1.bf16.xpose.msra.mxu0 0
    %1814 = vmatprep.subr.bf16.mxu0 0
    %1815 = vmatpush1.bf16.xpose.msra.mxu0 0
    %1816 = vmatprep.subr.bf16.mxu0 0
    %1817 = vmatpush1.bf16.xpose.msra.mxu0 0
    %1818 = vmatprep.subr.bf16.mxu0 0
    %1819 = vmatpush1.bf16.xpose.msra.mxu0 0
    %1820 = vmatprep.subr.bf16.mxu0 0
    %1821 = vmatpush1.bf16.xpose.msra.mxu0 0
    %1822 = vmatprep.mubr.bf16.mxu0 0
    %1823 = vmatmul.mubr.bf16.gmra.mrb[0].mxu0 %v1788
    %v1824 = vpop.f32.mrb[0].mxu0
    %v1825 = vadd.f32 0.0, %v1824
    %v1826 = vpop.f32.mrb[0].mxu0
    %v1827 = vpop.f32.mrb[0].mxu0
    %v1828 = vpop.f32.mrb[0].mxu0
    %1829 = vdwg.mxu0
    %v1830 = vsel %vm194, %v1825, -inf
    %1831 = vmax.xlane.f32.xlu0 %v1830
    %v1832 = vpop.xlane.xlu0 %1831
    %1834 = vset.pattern.permute.xlu0 0
    %1835 = vperm.xlu0 %1834, %v1782
    %v1836 = vpop.permute.xlu0 %1835
    %v1838 = vlaneseq
    %v1839 = vshrl.u32 %v1838, 7
    %v1840 = vsub.s32 0, %v1839
    %v1841 = vrot.slane %v1825, %v1840
    %v1842 = vadd.f32 %v1836, %v1841
    %v1843 = vmul.f32 %v1842, 0.2
    %v1844 = vmax.f32 %v1842, %v1843
    %v1845 = vlaneseq
    %v1846 = vshrl.u32 %v1845, 7
    %v1847 = vsub.s32 0, %v1846
    %v1848 = vrot.slane %v1832, %v1847
    %v1849 = vadd.f32 %v1782, %v1848
    %v1850 = vmul.f32 %v1849, 0.2
    %v1851 = vmax.f32 %v1849, %v1850
    %1853 = vset.pattern.permute.xlu0 0
    %1854 = vperm.xlu0 %1853, %v1851
    %v1855 = vpop.permute.xlu0 %1854
    %v1857 = vsub.f32 %v1844, %v1855
    %v1858 = vadd.f32 %v1857, %v48
    %v1859 = vmul.f32 %v1858, 1.442695
    %v1860 = vpow.pop %v1859
    %v1861 = vsel %vm59, %v1737, 1065369472
    %v1862 = vpack.c.bf16 %v1860, %v1860
    %v1864 = vsel %vm226, %v1862, 0
    %v1866 = vsel %vm233, %v1861, 0
    %1868 = vmatprep.subr.bf16.mxu0 0
    %1869 = vmatpush1.bf16.msra.mxu0 %v1866
    %1870 = vmatprep.subr.bf16.mxu0 0
    %1871 = vmatpush1.bf16.msra.mxu0 0
    %1872 = vmatprep.subr.bf16.mxu0 0
    %1873 = vmatpush1.bf16.msra.mxu0 0
    %1874 = vmatprep.subr.bf16.mxu0 0
    %1875 = vmatpush1.bf16.msra.mxu0 0
    %1876 = vmatprep.subr.bf16.mxu0 0
    %1877 = vmatpush1.bf16.msra.mxu0 0
    %1878 = vmatprep.subr.bf16.mxu0 0
    %1879 = vmatpush1.bf16.msra.mxu0 0
    %1880 = vmatprep.subr.bf16.mxu0 0
    %1881 = vmatpush1.bf16.msra.mxu0 0
    %1882 = vmatprep.subr.bf16.mxu0 0
    %1883 = vmatpush1.bf16.msra.mxu0 0
    %1884 = vmatprep.subr.bf16.mxu0 0
    %1885 = vmatpush1.bf16.msra.mxu0 0
    %1886 = vmatprep.subr.bf16.mxu0 0
    %1887 = vmatpush1.bf16.msra.mxu0 0
    %1888 = vmatprep.subr.bf16.mxu0 0
    %1889 = vmatpush1.bf16.msra.mxu0 0
    %1890 = vmatprep.subr.bf16.mxu0 0
    %1891 = vmatpush1.bf16.msra.mxu0 0
    %1892 = vmatprep.subr.bf16.mxu0 0
    %1893 = vmatpush1.bf16.msra.mxu0 0
    %1894 = vmatprep.subr.bf16.mxu0 0
    %1895 = vmatpush1.bf16.msra.mxu0 0
    %1896 = vmatprep.subr.bf16.mxu0 0
    %1897 = vmatpush1.bf16.msra.mxu0 0
    %1898 = vmatprep.subr.bf16.mxu0 0
    %1899 = vmatpush1.bf16.msra.mxu0 0
    %1900 = vmatprep.mubr.bf16.mxu0 0
    %1901 = vmatmul.mubr.bf16.gmra.mrb[0].mxu0 %v1864
    %v1902 = vpop.f32.mrb[0].mxu0
    %v1903 = vadd.f32 0.0, %v1902
    %v1904 = vpop.f32.mrb[0].mxu0
    %v1905 = vpop.f32.mrb[0].mxu0
    %v1906 = vpop.f32.mrb[0].mxu0
    %1907 = vdwg.mxu0
    %v1908 = vrcp.pop %v1903
    %1910 = vset.pattern.permute.xlu0 16
    %1911 = vperm.xlu0 %1910, %v1908
    %v1912 = vpop.permute.xlu0 %1911
    %v1914 = vmul.f32 %v1903, %v1912
    %1915 = vset.pattern.permute.xlu0 1
    %1916 = vperm.xlu0 %1915, %v1782
    %v1917 = vpop.permute.xlu0 %1916
    %v1919 = vlaneseq
    %v1920 = vshrl.u32 %v1919, 7
    %v1921 = vsub.s32 1, %v1920
    %v1922 = vrot.slane %v1825, %v1921
    %v1923 = vadd.f32 %v1917, %v1922
    %v1924 = vmul.f32 %v1923, 0.2
    %v1925 = vmax.f32 %v1923, %v1924
    %v1926 = vlaneseq
    %v1927 = vshrl.u32 %v1926, 7
    %v1928 = vsub.s32 1, %v1927
    %v1929 = vrot.slane %v1832, %v1928
    %v1930 = vadd.f32 %v1782, %v1929
    %v1931 = vmul.f32 %v1930, 0.2
    %v1932 = vmax.f32 %v1930, %v1931
    %1934 = vset.pattern.permute.xlu0 1
    %1935 = vperm.xlu0 %1934, %v1932
    %v1936 = vpop.permute.xlu0 %1935
    %v1938 = vsub.f32 %v1925, %v1936
    %v1939 = vadd.f32 %v1938, %v48
    %v1940 = vmul.f32 %v1939, 1.442695
    %v1941 = vpow.pop %v1940
    %1943 = vrot.lane.b32.xlu0 %v1737, 112
    %v1944 = vpop.permute.xlu0 %1943
    %v1946 = vsel %vm59, %v1944, 1065369472
    %v1947 = vpack.c.bf16 %v1941, %v1941
    %v1949 = vsel %vm226, %v1947, 0
    %v1951 = vsel %vm233, %v1946, 0
    %1953 = vmatprep.subr.bf16.mxu0 0
    %1954 = vmatpush1.bf16.msra.mxu0 %v1951
    %1955 = vmatprep.subr.bf16.mxu0 0
    %1956 = vmatpush1.bf16.msra.mxu0 0
    %1957 = vmatprep.subr.bf16.mxu0 0
    %1958 = vmatpush1.bf16.msra.mxu0 0
    %1959 = vmatprep.subr.bf16.mxu0 0
    %1960 = vmatpush1.bf16.msra.mxu0 0
    %1961 = vmatprep.subr.bf16.mxu0 0
    %1962 = vmatpush1.bf16.msra.mxu0 0
    %1963 = vmatprep.subr.bf16.mxu0 0
    %1964 = vmatpush1.bf16.msra.mxu0 0
    %1965 = vmatprep.subr.bf16.mxu0 0
    %1966 = vmatpush1.bf16.msra.mxu0 0
    %1967 = vmatprep.subr.bf16.mxu0 0
    %1968 = vmatpush1.bf16.msra.mxu0 0
    %1969 = vmatprep.subr.bf16.mxu0 0
    %1970 = vmatpush1.bf16.msra.mxu0 0
    %1971 = vmatprep.subr.bf16.mxu0 0
    %1972 = vmatpush1.bf16.msra.mxu0 0
    %1973 = vmatprep.subr.bf16.mxu0 0
    %1974 = vmatpush1.bf16.msra.mxu0 0
    %1975 = vmatprep.subr.bf16.mxu0 0
    %1976 = vmatpush1.bf16.msra.mxu0 0
    %1977 = vmatprep.subr.bf16.mxu0 0
    %1978 = vmatpush1.bf16.msra.mxu0 0
    %1979 = vmatprep.subr.bf16.mxu0 0
    %1980 = vmatpush1.bf16.msra.mxu0 0
    %1981 = vmatprep.subr.bf16.mxu0 0
    %1982 = vmatpush1.bf16.msra.mxu0 0
    %1983 = vmatprep.subr.bf16.mxu0 0
    %1984 = vmatpush1.bf16.msra.mxu0 0
    %1985 = vmatprep.mubr.bf16.mxu0 0
    %1986 = vmatmul.mubr.bf16.gmra.mrb[0].mxu0 %v1949
    %v1987 = vpop.f32.mrb[0].mxu0
    %v1988 = vadd.f32 0.0, %v1987
    %v1989 = vpop.f32.mrb[0].mxu0
    %v1990 = vpop.f32.mrb[0].mxu0
    %v1991 = vpop.f32.mrb[0].mxu0
    %1992 = vdwg.mxu0
    %v1993 = vrcp.pop %v1988
    %1995 = vset.pattern.permute.xlu0 16
    %1996 = vperm.xlu0 %1995, %v1993
    %v1997 = vpop.permute.xlu0 %1996
    %v1999 = vmul.f32 %v1988, %v1997
    %2000 = vset.pattern.permute.xlu0 2
    %2001 = vperm.xlu0 %2000, %v1782
    %v2002 = vpop.permute.xlu0 %2001
    %v2004 = vlaneseq
    %v2005 = vshrl.u32 %v2004, 7
    %v2006 = vsub.s32 2, %v2005
    %v2007 = vrot.slane %v1825, %v2006
    %v2008 = vadd.f32 %v2002, %v2007
    %v2009 = vmul.f32 %v2008, 0.2
    %v2010 = vmax.f32 %v2008, %v2009
    %v2011 = vlaneseq
    %v2012 = vshrl.u32 %v2011, 7
    %v2013 = vsub.s32 2, %v2012
    %v2014 = vrot.slane %v1832, %v2013
    %v2015 = vadd.f32 %v1782, %v2014
    %v2016 = vmul.f32 %v2015, 0.2
    %v2017 = vmax.f32 %v2015, %v2016
    %2019 = vset.pattern.permute.xlu0 2
    %2020 = vperm.xlu0 %2019, %v2017
    %v2021 = vpop.permute.xlu0 %2020
    %v2023 = vsub.f32 %v2010, %v2021
    %v2024 = vadd.f32 %v2023, %v48
    %v2025 = vmul.f32 %v2024, 1.442695
    %v2026 = vpow.pop %v2025
    %2027 = vrot.lane.b32.xlu0 %v1737, 96
    %v2028 = vpop.permute.xlu0 %2027
    %v2030 = vsel %vm59, %v2028, 1065369472
    %v2031 = vpack.c.bf16 %v2026, %v2026
    %v2033 = vsel %vm226, %v2031, 0
    %v2035 = vsel %vm233, %v2030, 0
    %2037 = vmatprep.subr.bf16.mxu0 0
    %2038 = vmatpush1.bf16.msra.mxu0 %v2035
    %2039 = vmatprep.subr.bf16.mxu0 0
    %2040 = vmatpush1.bf16.msra.mxu0 0
    %2041 = vmatprep.subr.bf16.mxu0 0
    %2042 = vmatpush1.bf16.msra.mxu0 0
    %2043 = vmatprep.subr.bf16.mxu0 0
    %2044 = vmatpush1.bf16.msra.mxu0 0
    %2045 = vmatprep.subr.bf16.mxu0 0
    %2046 = vmatpush1.bf16.msra.mxu0 0
    %2047 = vmatprep.subr.bf16.mxu0 0
    %2048 = vmatpush1.bf16.msra.mxu0 0
    %2049 = vmatprep.subr.bf16.mxu0 0
    %2050 = vmatpush1.bf16.msra.mxu0 0
    %2051 = vmatprep.subr.bf16.mxu0 0
    %2052 = vmatpush1.bf16.msra.mxu0 0
    %2053 = vmatprep.subr.bf16.mxu0 0
    %2054 = vmatpush1.bf16.msra.mxu0 0
    %2055 = vmatprep.subr.bf16.mxu0 0
    %2056 = vmatpush1.bf16.msra.mxu0 0
    %2057 = vmatprep.subr.bf16.mxu0 0
    %2058 = vmatpush1.bf16.msra.mxu0 0
    %2059 = vmatprep.subr.bf16.mxu0 0
    %2060 = vmatpush1.bf16.msra.mxu0 0
    %2061 = vmatprep.subr.bf16.mxu0 0
    %2062 = vmatpush1.bf16.msra.mxu0 0
    %2063 = vmatprep.subr.bf16.mxu0 0
    %2064 = vmatpush1.bf16.msra.mxu0 0
    %2065 = vmatprep.subr.bf16.mxu0 0
    %2066 = vmatpush1.bf16.msra.mxu0 0
    %2067 = vmatprep.subr.bf16.mxu0 0
    %2068 = vmatpush1.bf16.msra.mxu0 0
    %2069 = vmatprep.mubr.bf16.mxu0 0
    %2070 = vmatmul.mubr.bf16.gmra.mrb[0].mxu0 %v2033
    %v2071 = vpop.f32.mrb[0].mxu0
    %v2072 = vadd.f32 0.0, %v2071
    %v2073 = vpop.f32.mrb[0].mxu0
    %v2074 = vpop.f32.mrb[0].mxu0
    %v2075 = vpop.f32.mrb[0].mxu0
    %2076 = vdwg.mxu0
    %v2077 = vrcp.pop %v2072
    %2079 = vset.pattern.permute.xlu0 16
    %2080 = vperm.xlu0 %2079, %v2077
    %v2081 = vpop.permute.xlu0 %2080
    %v2083 = vmul.f32 %v2072, %v2081
    %2084 = vset.pattern.permute.xlu0 3
    %2085 = vperm.xlu0 %2084, %v1782
    %v2086 = vpop.permute.xlu0 %2085
    %v2088 = vlaneseq
    %v2089 = vshrl.u32 %v2088, 7
    %v2090 = vsub.s32 3, %v2089
    %v2091 = vrot.slane %v1825, %v2090
    %v2092 = vadd.f32 %v2086, %v2091
    %v2093 = vmul.f32 %v2092, 0.2
    %v2094 = vmax.f32 %v2092, %v2093
    %v2095 = vlaneseq
    %v2096 = vshrl.u32 %v2095, 7
    %v2097 = vsub.s32 3, %v2096
    %v2098 = vrot.slane %v1832, %v2097
    %v2099 = vadd.f32 %v1782, %v2098
    %v2100 = vmul.f32 %v2099, 0.2
    %v2101 = vmax.f32 %v2099, %v2100
    %2103 = vset.pattern.permute.xlu0 3
    %2104 = vperm.xlu0 %2103, %v2101
    %v2105 = vpop.permute.xlu0 %2104
    %v2107 = vsub.f32 %v2094, %v2105
    %v2108 = vadd.f32 %v2107, %v48
    %v2109 = vmul.f32 %v2108, 1.442695
    %v2110 = vpow.pop %v2109
    %2111 = vrot.lane.b32.xlu0 %v1737, 80
    %v2112 = vpop.permute.xlu0 %2111
    %v2114 = vsel %vm59, %v2112, 1065369472
    %v2115 = vpack.c.bf16 %v2110, %v2110
    %v2117 = vsel %vm226, %v2115, 0
    %v2119 = vsel %vm233, %v2114, 0
    %2121 = vmatprep.subr.bf16.mxu0 0
    %2122 = vmatpush1.bf16.msra.mxu0 %v2119
    %2123 = vmatprep.subr.bf16.mxu0 0
    %2124 = vmatpush1.bf16.msra.mxu0 0
    %2125 = vmatprep.subr.bf16.mxu0 0
    %2126 = vmatpush1.bf16.msra.mxu0 0
    %2127 = vmatprep.subr.bf16.mxu0 0
    %2128 = vmatpush1.bf16.msra.mxu0 0
    %2129 = vmatprep.subr.bf16.mxu0 0
    %2130 = vmatpush1.bf16.msra.mxu0 0
    %2131 = vmatprep.subr.bf16.mxu0 0
    %2132 = vmatpush1.bf16.msra.mxu0 0
    %2133 = vmatprep.subr.bf16.mxu0 0
    %2134 = vmatpush1.bf16.msra.mxu0 0
    %2135 = vmatprep.subr.bf16.mxu0 0
    %2136 = vmatpush1.bf16.msra.mxu0 0
    %2137 = vmatprep.subr.bf16.mxu0 0
    %2138 = vmatpush1.bf16.msra.mxu0 0
    %2139 = vmatprep.subr.bf16.mxu0 0
    %2140 = vmatpush1.bf16.msra.mxu0 0
    %2141 = vmatprep.subr.bf16.mxu0 0
    %2142 = vmatpush1.bf16.msra.mxu0 0
    %2143 = vmatprep.subr.bf16.mxu0 0
    %2144 = vmatpush1.bf16.msra.mxu0 0
    %2145 = vmatprep.subr.bf16.mxu0 0
    %2146 = vmatpush1.bf16.msra.mxu0 0
    %2147 = vmatprep.subr.bf16.mxu0 0
    %2148 = vmatpush1.bf16.msra.mxu0 0
    %2149 = vmatprep.subr.bf16.mxu0 0
    %2150 = vmatpush1.bf16.msra.mxu0 0
    %2151 = vmatprep.subr.bf16.mxu0 0
    %2152 = vmatpush1.bf16.msra.mxu0 0
    %2153 = vmatprep.mubr.bf16.mxu0 0
    %2154 = vmatmul.mubr.bf16.gmra.mrb[0].mxu0 %v2117
    %v2155 = vpop.f32.mrb[0].mxu0
    %v2156 = vadd.f32 0.0, %v2155
    %v2157 = vpop.f32.mrb[0].mxu0
    %v2158 = vpop.f32.mrb[0].mxu0
    %v2159 = vpop.f32.mrb[0].mxu0
    %2160 = vdwg.mxu0
    %v2161 = vrcp.pop %v2156
    %2163 = vset.pattern.permute.xlu0 16
    %2164 = vperm.xlu0 %2163, %v2161
    %v2165 = vpop.permute.xlu0 %2164
    %v2167 = vmul.f32 %v2156, %v2165
    %v2168 = vadd.f32 %v1914, %v1999
    %v2169 = vadd.f32 %v2168, %v2083
    %v2170 = vadd.f32 %v2169, %v2167
    %v2171 = vmul.f32 %v2170, 0.25
    %v2172 = vlaneseq
    %v2173 = vshrl.u32 %v2172, 7
    %v2174 = vsub.s32 0, %v2173
    %v2175 = vrot.slane %v1690, %v2174
    %v2176 = vadd.f32 %v2171, %v2175
    %v2177 = vsel %vm59, %v2176, 0.0
    %2178 = vst [vmem:[#allocation7] sm:$0xff] %v2177
    // Predicated region
    $region22: #{tpu_custom_call.1} parent=1 // pred_check
      _
    $region23: #{tpu_custom_call.1} parent=1 // pred_check_branch
      %2180 = sbr.rel (0) target = $region25
    $region24: #{tpu_custom_call.1} parent=1 // pred_region
      %s2182 = ssub.s32 128, 128
      %2183 = vsyncadd [#allocation4], %s2182
      %s2185 = sshll.u32 [#allocation7], 4
      %s2186 = int_to_ptr.vmem [resolvable:$true] %s2185
      %2188 = dma.vmem_to_hbm [thread:$0]  %s2186, 128, %s3, [#allocation4]
    $region25: #{tpu_custom_call.1} parent=1 // pred_fallthru
      _
    // Predicated region
    $region26: #{tpu_custom_call.1} parent=1 // pred_check
      _
    $region27: #{tpu_custom_call.1} parent=1 // pred_check_branch
      %2190 = sbr.rel (0) target = $region29
    $region28: #{tpu_custom_call.1} parent=1 // pred_region
      %2191 = dma.done [#allocation4], 128
    $region29: #{tpu_custom_call.1} parent=1 // pred_fallthru
      _
    %2192 = vsyncpa [#allocation3], 1
    %2193 = vsyncpa [#allocation6], 1
    %2194 = vsyncpa [#allocation4], 1

</llo_original>
